<compile_context>
chip_gen: v7x
topology: tpu7x:2x2x1
jax: 0.10.0
libtpu: 0.0.40
codegen_flags: <defaults>
</compile_context>

<pallas_src>
import math
import functools

import jax
import jax.numpy as jnp
from jax.experimental import pallas as pl
from jax.experimental.pallas import tpu as pltpu


# ----------------------------------------------------------------------------
# Fused encoder kernel: one grid step == one batch element, fully in VMEM.
# ----------------------------------------------------------------------------
def encoder_kernel(x_ref, pe_ref, m_ref,
                   wq_ref, bq_ref, wk_ref, bk_ref, wv_ref, bv_ref,
                   wo_ref, bo_ref, g1_ref, b1_ref,
                   w1_ref, bf1_ref, w2_ref, bf2_ref, g2_ref, b2_ref,
                   wd_ref, bd_ref, wl_ref, bl_ref,
                   y_ref, *, nheads, nlayers, emb_scale, eps=1e-5):
    # embedding scale + positional encoding; dropout = identity (eval mode)
    x = x_ref[0] * emb_scale + pe_ref[...]            # (S, E)
    S, E = x.shape
    H = nheads
    Dh = E // H
    scale = 1.0 / math.sqrt(Dh)

    # key padding mask -> additive bias over key positions; m_ref block is (1,1,S)
    bias = m_ref[0] * (-1e9)                          # (1, S)

    def lin(v, w, b):                                 # x @ W + b, W is (in, out)
        return jnp.dot(v, w, preferred_element_type=jnp.float32) + b

    def layernorm(v, g, b):
        mu = jnp.mean(v, axis=-1, keepdims=True)
        var = jnp.mean((v - mu) ** 2, axis=-1, keepdims=True)
        return (v - mu) * jax.lax.rsqrt(var + eps) * g + b

    for l in range(nlayers):                          # unrolled; weights VMEM-resident
        # ---- multi-head self-attention (head-batched einsums) ----
        q = lin(x, wq_ref[l], bq_ref[l])              # (S, E)
        k = lin(x, wk_ref[l], bk_ref[l])
        v = lin(x, wv_ref[l], bv_ref[l])
        qh = jnp.swapaxes(q.reshape(S, H, Dh), 0, 1)  # (H, S, Dh)
        kh = jnp.swapaxes(k.reshape(S, H, Dh), 0, 1)
        vh = jnp.swapaxes(v.reshape(S, H, Dh), 0, 1)

        s = jnp.einsum('hqd,hkd->hqk', qh, kh,
                       preferred_element_type=jnp.float32) * scale
        s = s + bias[:, None, :]                      # broadcast over heads & queries
        s = s - jnp.max(s, axis=-1, keepdims=True)
        p = jnp.exp(s)
        p = p * pl.reciprocal(jnp.sum(p, axis=-1, keepdims=True), approx=True)
        ctx = jnp.einsum('hqk,hkd->hqd', p, vh,
                         preferred_element_type=jnp.float32)          # (H, S, Dh)
        attn = lin(jnp.swapaxes(ctx, 0, 1).reshape(S, E),
                   wo_ref[l], bo_ref[l])              # single out-projection

        x1 = layernorm(x + attn, g1_ref[l], b1_ref[l])

        # ---- feed-forward (relu) ----
        hff = jnp.maximum(lin(x1, w1_ref[l], bf1_ref[l]), 0.0)        # (S, ff)
        ff_out = lin(hff, w2_ref[l], bf2_ref[l])
        x = layernorm(x1 + ff_out, g2_ref[l], b2_ref[l])

    # ---- Word2SentenceEmbedding (tanh pool on first token) + hid2latparams ----
    pooled = jnp.tanh(lin(x[0:1, :], wd_ref[...], bd_ref[...]))       # (1, E)
    y = lin(pooled, wl_ref[...], bl_ref[...])                         # (1, 2*z)
    y_ref[0] = y


def encoder_fused(x, pe, mask3, P, *, nheads, e_dim, z_dim, nlayers):
    N, S, E = x.shape
    ff = P['W1'].shape[-1]
    L = nlayers

    def fullspec(shape):
        nd = len(shape)
        return pl.BlockSpec(shape, lambda n, _nd=nd: (0,) * _nd)

    in_specs = [
        pl.BlockSpec((1, S, E), lambda n: (n, 0, 0)),      # x
        fullspec((S, E)),                                  # positional encoding
        pl.BlockSpec((1, 1, S), lambda n: (n, 0, 0)),      # key-padding mask
        fullspec((L, E, E)), fullspec((L, 1, E)),          # Wq, bq
        fullspec((L, E, E)), fullspec((L, 1, E)),          # Wk, bk
        fullspec((L, E, E)), fullspec((L, 1, E)),          # Wv, bv
        fullspec((L, E, E)), fullspec((L, 1, E)),          # Wo, bo
        fullspec((L, 1, E)), fullspec((L, 1, E)),          # ln1 gamma, beta
        fullspec((L, E, ff)), fullspec((L, 1, ff)),        # W1, b1
        fullspec((L, ff, E)), fullspec((L, 1, E)),         # W2, b2
        fullspec((L, 1, E)), fullspec((L, 1, E)),          # ln2 gamma, beta
        fullspec((E, E)), fullspec((1, E)),                # pooler Wd, bd
        fullspec((E, 2 * z_dim)), fullspec((1, 2 * z_dim)),  # hid2latparams Wl, bl
    ]
    out_spec = pl.BlockSpec((1, 1, 2 * z_dim), lambda n: (n, 0, 0))

    y = pl.pallas_call(
        functools.partial(encoder_kernel, nheads=nheads, nlayers=nlayers,
                          emb_scale=math.sqrt(e_dim)),
        out_shape=jax.ShapeDtypeStruct((N, 1, 2 * z_dim), jnp.float32),
        grid=(N,),
        in_specs=in_specs,
        out_specs=out_spec,
        compiler_params=pltpu.CompilerParams(dimension_semantics=("parallel",)),
    )(x, pe, mask3,
      P['Wq'], P['bq'], P['Wk'], P['bk'], P['Wv'], P['bv'], P['Wo'], P['bo'],
      P['g1'], P['b1'], P['W1'], P['bf1'], P['W2'], P['bf2'], P['g2'], P['b2'],
      P['Wd'], P['bd'], P['Wl'], P['bl'])
    return y.reshape(N, 2 * z_dim)


# ----------------------------------------------------------------------------
# Parameter construction (deterministic, synthetic)
# ----------------------------------------------------------------------------
def make_positional_encoding(max_len, d_model):
    pos = jnp.arange(max_len, dtype=jnp.float32)[:, None]
    div = jnp.exp(jnp.arange(0, d_model, 2, dtype=jnp.float32)
                  * (-math.log(10000.0) / d_model))
    pe = jnp.zeros((max_len, d_model), jnp.float32)
    pe = pe.at[:, 0::2].set(jnp.sin(pos * div))
    pe = pe.at[:, 1::2].set(jnp.cos(pos * div))
    return pe


def init_params(key, ntokens, e_dim, z_dim, nlayers, ff_dim, pad_idx, max_len=50):
    # 12 random tensors per layer + emb + (Wd, bd, Wl, bl); allocate with margin.
    keys = iter(jax.random.split(key, 12 * nlayers + 8))

    def nrm(shape, scale=0.02):
        return (scale * jax.random.normal(next(keys), shape)).astype(jnp.float32)

    emb = nrm((ntokens, e_dim))
    emb = emb.at[pad_idx].set(0.0)                # padding_idx row is zero

    # Per-layer weights: stacked on a leading layer axis and PRE-TRANSPOSED to
    # (in_dim, out_dim) so the kernel computes x @ W + b (== PyTorch x @ W.T + b).
    names = ('Wq', 'bq', 'Wk', 'bk', 'Wv', 'bv', 'Wo', 'bo',
             'g1', 'b1', 'W1', 'bf1', 'W2', 'bf2', 'g2', 'b2')
    acc = {k: [] for k in names}
    for _ in range(nlayers):
        acc['Wq'].append(nrm((e_dim, e_dim))); acc['bq'].append(nrm((1, e_dim)))
        acc['Wk'].append(nrm((e_dim, e_dim))); acc['bk'].append(nrm((1, e_dim)))
        acc['Wv'].append(nrm((e_dim, e_dim))); acc['bv'].append(nrm((1, e_dim)))
        acc['Wo'].append(nrm((e_dim, e_dim))); acc['bo'].append(nrm((1, e_dim)))
        acc['g1'].append(jnp.ones((1, e_dim), jnp.float32))
        acc['b1'].append(jnp.zeros((1, e_dim), jnp.float32))
        acc['W1'].append(nrm((e_dim, ff_dim))); acc['bf1'].append(nrm((1, ff_dim)))
        acc['W2'].append(nrm((ff_dim, e_dim))); acc['bf2'].append(nrm((1, e_dim)))
        acc['g2'].append(jnp.ones((1, e_dim), jnp.float32))
        acc['b2'].append(jnp.zeros((1, e_dim), jnp.float32))

    params = {k: jnp.stack(v, axis=0) for k, v in acc.items()}
    params.update(
        emb=emb,
        pe=make_positional_encoding(max_len, e_dim),
        Wd=nrm((e_dim, e_dim)), bd=nrm((1, e_dim)),
        Wl=nrm((e_dim, 2 * z_dim)), bl=nrm((1, 2 * z_dim)),
    )
    return params


# ----------------------------------------------------------------------------
# Full Encoder forward
# ----------------------------------------------------------------------------
def encoder_forward(sentences, pad_mask, params, *, e_dim, z_dim, nheads, nlayers):
    # sentences: (S, N) int32 ; pad_mask: (N, S) bool (True = padded key)
    S, N = sentences.shape
    # embedding gather kept as plain-JAX glue (data-dependent gather)
    emb = jnp.take(params['emb'], sentences, axis=0)          # (S, N, E)
    x = jnp.transpose(emb, (1, 0, 2)).astype(jnp.float32)     # (N, S, E)

    mask3 = pad_mask.astype(jnp.float32).reshape(N, 1, S)
    y = encoder_fused(x, params['pe'][:S], mask3, params,
                      nheads=nheads, e_dim=e_dim, z_dim=z_dim, nlayers=nlayers)
    mu, logvar = y[:, :z_dim], y[:, z_dim:]
    return mu, logvar


if __name__ == "__main__":
    # small, forward-consistent shapes
    ntokens, e_dim, z_dim, nheads, nlayers, ff_dim, pad_idx = 50, 32, 8, 4, 2, 64, 1
    S, N = 8, 2

    key = jax.random.PRNGKey(0)
    kp, ks = jax.random.split(key)
    params = init_params(kp, ntokens, e_dim, z_dim, nlayers, ff_dim, pad_idx)

    sentences = jax.random.randint(ks, (S, N), 0, ntokens, dtype=jnp.int32)
    sentences = sentences.at[-2:, :].set(pad_idx)             # pad the last 2 positions
    pad_mask = (sentences == pad_idx).T                       # (N, S) bool, True = pad

    mu, logvar = encoder_forward(sentences, pad_mask, params,
                                 e_dim=e_dim, z_dim=z_dim,
                                 nheads=nheads, nlayers=nlayers)
    mu = jax.block_until_ready(mu)
    logvar = jax.block_until_ready(logvar)

    assert mu.shape == (N, z_dim) and logvar.shape == (N, z_dim)
    assert bool(jnp.all(jnp.isfinite(mu))) and bool(jnp.all(jnp.isfinite(logvar)))
    print("KERNEL_OK")
</pallas_src>

<mosaic_0001>
module attributes {stable_mosaic.version = 11 : i64} {
  func.func @encoder_kernel(%arg0: i32, %arg1: memref<1x8x32xf32, #tpu.memory_space<vmem>>, %arg2: memref<8x32xf32, #tpu.memory_space<vmem>>, %arg3: memref<1x1x8xf32, #tpu.memory_space<vmem>>, %arg4: memref<2x32x32xf32, #tpu.memory_space<vmem>>, %arg5: memref<2x1x32xf32, #tpu.memory_space<vmem>>, %arg6: memref<2x32x32xf32, #tpu.memory_space<vmem>>, %arg7: memref<2x1x32xf32, #tpu.memory_space<vmem>>, %arg8: memref<2x32x32xf32, #tpu.memory_space<vmem>>, %arg9: memref<2x1x32xf32, #tpu.memory_space<vmem>>, %arg10: memref<2x32x32xf32, #tpu.memory_space<vmem>>, %arg11: memref<2x1x32xf32, #tpu.memory_space<vmem>>, %arg12: memref<2x1x32xf32, #tpu.memory_space<vmem>>, %arg13: memref<2x1x32xf32, #tpu.memory_space<vmem>>, %arg14: memref<2x32x64xf32, #tpu.memory_space<vmem>>, %arg15: memref<2x1x64xf32, #tpu.memory_space<vmem>>, %arg16: memref<2x64x32xf32, #tpu.memory_space<vmem>>, %arg17: memref<2x1x32xf32, #tpu.memory_space<vmem>>, %arg18: memref<2x1x32xf32, #tpu.memory_space<vmem>>, %arg19: memref<2x1x32xf32, #tpu.memory_space<vmem>>, %arg20: memref<32x32xf32, #tpu.memory_space<vmem>>, %arg21: memref<1x32xf32, #tpu.memory_space<vmem>>, %arg22: memref<32x16xf32, #tpu.memory_space<vmem>>, %arg23: memref<1x16xf32, #tpu.memory_space<vmem>>, %arg24: memref<1x1x16xf32, #tpu.memory_space<vmem>>) attributes {dimension_semantics = [#tpu.dimension_semantics<parallel>], iteration_bounds = array<i64: 2>, scalar_prefetch = 0 : i64, scratch_operands = 0 : i64, tpu.core_type = #tpu.core_type<tc>, window_params = [{transform_indices = @transform_0, window_bounds = array<i64: 1, 8, 32>}, {pipeline_mode = #tpu.pipeline_mode<synchronous>, transform_indices = @transform_1, window_bounds = array<i64: 8, 32>}, {transform_indices = @transform_2, window_bounds = array<i64: 1, 1, 8>}, {pipeline_mode = #tpu.pipeline_mode<synchronous>, transform_indices = @transform_3, window_bounds = array<i64: 2, 32, 32>}, {pipeline_mode = #tpu.pipeline_mode<synchronous>, transform_indices = @transform_4, window_bounds = array<i64: 2, 1, 32>}, {pipeline_mode = #tpu.pipeline_mode<synchronous>, transform_indices = @transform_5, window_bounds = array<i64: 2, 32, 32>}, {pipeline_mode = #tpu.pipeline_mode<synchronous>, transform_indices = @transform_6, window_bounds = array<i64: 2, 1, 32>}, {pipeline_mode = #tpu.pipeline_mode<synchronous>, transform_indices = @transform_7, window_bounds = array<i64: 2, 32, 32>}, {pipeline_mode = #tpu.pipeline_mode<synchronous>, transform_indices = @transform_8, window_bounds = array<i64: 2, 1, 32>}, {pipeline_mode = #tpu.pipeline_mode<synchronous>, transform_indices = @transform_9, window_bounds = array<i64: 2, 32, 32>}, {pipeline_mode = #tpu.pipeline_mode<synchronous>, transform_indices = @transform_10, window_bounds = array<i64: 2, 1, 32>}, {pipeline_mode = #tpu.pipeline_mode<synchronous>, transform_indices = @transform_11, window_bounds = array<i64: 2, 1, 32>}, {pipeline_mode = #tpu.pipeline_mode<synchronous>, transform_indices = @transform_12, window_bounds = array<i64: 2, 1, 32>}, {pipeline_mode = #tpu.pipeline_mode<synchronous>, transform_indices = @transform_13, window_bounds = array<i64: 2, 32, 64>}, {pipeline_mode = #tpu.pipeline_mode<synchronous>, transform_indices = @transform_14, window_bounds = array<i64: 2, 1, 64>}, {pipeline_mode = #tpu.pipeline_mode<synchronous>, transform_indices = @transform_15, window_bounds = array<i64: 2, 64, 32>}, {pipeline_mode = #tpu.pipeline_mode<synchronous>, transform_indices = @transform_16, window_bounds = array<i64: 2, 1, 32>}, {pipeline_mode = #tpu.pipeline_mode<synchronous>, transform_indices = @transform_17, window_bounds = array<i64: 2, 1, 32>}, {pipeline_mode = #tpu.pipeline_mode<synchronous>, transform_indices = @transform_18, window_bounds = array<i64: 2, 1, 32>}, {pipeline_mode = #tpu.pipeline_mode<synchronous>, transform_indices = @transform_19, window_bounds = array<i64: 32, 32>}, {pipeline_mode = #tpu.pipeline_mode<synchronous>, transform_indices = @transform_20, window_bounds = array<i64: 1, 32>}, {pipeline_mode = #tpu.pipeline_mode<synchronous>, transform_indices = @transform_21, window_bounds = array<i64: 32, 16>}, {pipeline_mode = #tpu.pipeline_mode<synchronous>, transform_indices = @transform_22, window_bounds = array<i64: 1, 16>}, {transform_indices = @transform_23, window_bounds = array<i64: 1, 1, 16>}]} {
    %c0 = arith.constant 0 : index
    %c0_0 = arith.constant 0 : index
    %c0_1 = arith.constant 0 : index
    %0 = vector.load %arg1[%c0, %c0_0, %c0_1] : memref<1x8x32xf32, #tpu.memory_space<vmem>>, vector<1x8x32xf32>
    %1 = vector.shape_cast %0 : vector<1x8x32xf32> to vector<8x32xf32>
    %cst = arith.constant 5.65685415 : f32
    %2 = vector.broadcast %cst : f32 to vector<8x32xf32>
    %3 = arith.mulf %1, %2 : vector<8x32xf32>
    %c0_2 = arith.constant 0 : index
    %c0_3 = arith.constant 0 : index
    %4 = vector.load %arg2[%c0_2, %c0_3] : memref<8x32xf32, #tpu.memory_space<vmem>>, vector<8x32xf32>
    %5 = arith.addf %3, %4 : vector<8x32xf32>
    %c0_4 = arith.constant 0 : index
    %c0_5 = arith.constant 0 : index
    %c0_6 = arith.constant 0 : index
    %6 = vector.load %arg3[%c0_4, %c0_5, %c0_6] : memref<1x1x8xf32, #tpu.memory_space<vmem>>, vector<1x1x8xf32>
    %7 = vector.shape_cast %6 : vector<1x1x8xf32> to vector<1x8xf32>
    %cst_7 = arith.constant -1.000000e+09 : f32
    %8 = vector.broadcast %cst_7 : f32 to vector<1x8xf32>
    %9 = arith.mulf %7, %8 : vector<1x8xf32>
    %c0_8 = arith.constant 0 : index
    %c0_9 = arith.constant 0 : index
    %c0_10 = arith.constant 0 : index
    %10 = vector.load %arg4[%c0_8, %c0_9, %c0_10] : memref<2x32x32xf32, #tpu.memory_space<vmem>>, vector<1x32x32xf32>
    %11 = vector.shape_cast %10 : vector<1x32x32xf32> to vector<32x32xf32>
    %c0_11 = arith.constant 0 : index
    %c0_12 = arith.constant 0 : index
    %c0_13 = arith.constant 0 : index
    %12 = vector.load %arg5[%c0_11, %c0_12, %c0_13] : memref<2x1x32xf32, #tpu.memory_space<vmem>>, vector<1x1x32xf32>
    %13 = vector.shape_cast %12 : vector<1x1x32xf32> to vector<1x32xf32>
    %cst_14 = arith.constant dense<0.000000e+00> : vector<8x32xf32>
    %14 = tpu.matmul %5, %11, %cst_14 {dimension_numbers = #tpu.dot_dimension_numbers<[1], [0], [0], [1], [0, 0, 1, 1], [], []>} : vector<8x32xf32>, vector<32x32xf32>, vector<8x32xf32> -> vector<8x32xf32>
    %15 = vector.broadcast %13 : vector<1x32xf32> to vector<8x32xf32>
    %16 = arith.addf %14, %15 : vector<8x32xf32>
    %c0_15 = arith.constant 0 : index
    %c0_16 = arith.constant 0 : index
    %c0_17 = arith.constant 0 : index
    %17 = vector.load %arg6[%c0_15, %c0_16, %c0_17] : memref<2x32x32xf32, #tpu.memory_space<vmem>>, vector<1x32x32xf32>
    %18 = vector.shape_cast %17 : vector<1x32x32xf32> to vector<32x32xf32>
    %c0_18 = arith.constant 0 : index
    %c0_19 = arith.constant 0 : index
    %c0_20 = arith.constant 0 : index
    %19 = vector.load %arg7[%c0_18, %c0_19, %c0_20] : memref<2x1x32xf32, #tpu.memory_space<vmem>>, vector<1x1x32xf32>
    %20 = vector.shape_cast %19 : vector<1x1x32xf32> to vector<1x32xf32>
    %cst_21 = arith.constant dense<0.000000e+00> : vector<8x32xf32>
    %21 = tpu.matmul %5, %18, %cst_21 {dimension_numbers = #tpu.dot_dimension_numbers<[1], [0], [0], [1], [0, 0, 1, 1], [], []>} : vector<8x32xf32>, vector<32x32xf32>, vector<8x32xf32> -> vector<8x32xf32>
    %22 = vector.broadcast %20 : vector<1x32xf32> to vector<8x32xf32>
    %23 = arith.addf %21, %22 : vector<8x32xf32>
    %c0_22 = arith.constant 0 : index
    %c0_23 = arith.constant 0 : index
    %c0_24 = arith.constant 0 : index
    %24 = vector.load %arg8[%c0_22, %c0_23, %c0_24] : memref<2x32x32xf32, #tpu.memory_space<vmem>>, vector<1x32x32xf32>
    %25 = vector.shape_cast %24 : vector<1x32x32xf32> to vector<32x32xf32>
    %c0_25 = arith.constant 0 : index
    %c0_26 = arith.constant 0 : index
    %c0_27 = arith.constant 0 : index
    %26 = vector.load %arg9[%c0_25, %c0_26, %c0_27] : memref<2x1x32xf32, #tpu.memory_space<vmem>>, vector<1x1x32xf32>
    %27 = vector.shape_cast %26 : vector<1x1x32xf32> to vector<1x32xf32>
    %cst_28 = arith.constant dense<0.000000e+00> : vector<8x32xf32>
    %28 = tpu.matmul %5, %25, %cst_28 {dimension_numbers = #tpu.dot_dimension_numbers<[1], [0], [0], [1], [0, 0, 1, 1], [], []>} : vector<8x32xf32>, vector<32x32xf32>, vector<8x32xf32> -> vector<8x32xf32>
    %29 = vector.broadcast %27 : vector<1x32xf32> to vector<8x32xf32>
    %30 = arith.addf %28, %29 : vector<8x32xf32>
    %31 = vector.shape_cast %16 : vector<8x32xf32> to vector<8x4x8xf32>
    %32 = tpu.transpose %31, [1, 0, 2] : vector<8x4x8xf32> -> vector<4x8x8xf32>
    %33 = vector.shape_cast %23 : vector<8x32xf32> to vector<8x4x8xf32>
    %34 = tpu.transpose %33, [1, 0, 2] : vector<8x4x8xf32> -> vector<4x8x8xf32>
    %35 = vector.shape_cast %30 : vector<8x32xf32> to vector<8x4x8xf32>
    %36 = tpu.transpose %35, [1, 0, 2] : vector<8x4x8xf32> -> vector<4x8x8xf32>
    "tpu.trace_start"() <{level = 10 : i32, message = "hqd,hkd->hqk"}> : () -> ()
    %cst_29 = arith.constant dense<0.000000e+00> : vector<4x8x8xf32>
    %37 = tpu.matmul %32, %34, %cst_29 {dimension_numbers = #tpu.dot_dimension_numbers<[2], [2], [1], [1], [0, 0, 0, 1, 1, 1], [0], [0]>} : vector<4x8x8xf32>, vector<4x8x8xf32>, vector<4x8x8xf32> -> vector<4x8x8xf32>
    "tpu.trace_stop"() : () -> ()
    %cst_30 = arith.constant 0.353553385 : f32
    %38 = vector.broadcast %cst_30 : f32 to vector<4x8x8xf32>
    %39 = arith.mulf %37, %38 : vector<4x8x8xf32>
    %40 = vector.shape_cast %9 : vector<1x8xf32> to vector<1x1x8xf32>
    %41 = vector.broadcast %40 : vector<1x1x8xf32> to vector<4x8x8xf32>
    %42 = arith.addf %39, %41 : vector<4x8x8xf32>
    %cst_31 = arith.constant dense<0xFF800000> : vector<4x8xf32>
    %43 = vector.multi_reduction <maximumf>, %42, %cst_31 [2] : vector<4x8x8xf32> to vector<4x8xf32>
    %44 = vector.shape_cast %43 : vector<4x8xf32> to vector<4x8x1xf32>
    %45 = vector.broadcast %44 : vector<4x8x1xf32> to vector<4x8x8xf32>
    %46 = arith.subf %42, %45 : vector<4x8x8xf32>
    %47 = math.exp %46 : vector<4x8x8xf32>
    %cst_32 = arith.constant dense<0.000000e+00> : vector<4x8xf32>
    %48 = vector.multi_reduction <add>, %47, %cst_32 [2] : vector<4x8x8xf32> to vector<4x8xf32>
    %49 = vector.shape_cast %48 : vector<4x8xf32> to vector<4x8x1xf32>
    %50 = tpu.reciprocal %49 {approx = true} : vector<4x8x1xf32> -> vector<4x8x1xf32>
    %51 = vector.broadcast %50 : vector<4x8x1xf32> to vector<4x8x8xf32>
    %52 = arith.mulf %47, %51 : vector<4x8x8xf32>
    "tpu.trace_start"() <{level = 10 : i32, message = "hqk,hkd->hqd"}> : () -> ()
    %cst_33 = arith.constant dense<0.000000e+00> : vector<4x8x8xf32>
    %53 = tpu.matmul %52, %36, %cst_33 {dimension_numbers = #tpu.dot_dimension_numbers<[2], [1], [1], [2], [0, 0, 0, 1, 1, 2], [0], [0]>} : vector<4x8x8xf32>, vector<4x8x8xf32>, vector<4x8x8xf32> -> vector<4x8x8xf32>
    "tpu.trace_stop"() : () -> ()
    %54 = tpu.transpose %53, [1, 0, 2] : vector<4x8x8xf32> -> vector<8x4x8xf32>
    %55 = vector.shape_cast %54 : vector<8x4x8xf32> to vector<8x32xf32>
    %c0_34 = arith.constant 0 : index
    %c0_35 = arith.constant 0 : index
    %c0_36 = arith.constant 0 : index
    %56 = vector.load %arg10[%c0_34, %c0_35, %c0_36] : memref<2x32x32xf32, #tpu.memory_space<vmem>>, vector<1x32x32xf32>
    %57 = vector.shape_cast %56 : vector<1x32x32xf32> to vector<32x32xf32>
    %c0_37 = arith.constant 0 : index
    %c0_38 = arith.constant 0 : index
    %c0_39 = arith.constant 0 : index
    %58 = vector.load %arg11[%c0_37, %c0_38, %c0_39] : memref<2x1x32xf32, #tpu.memory_space<vmem>>, vector<1x1x32xf32>
    %59 = vector.shape_cast %58 : vector<1x1x32xf32> to vector<1x32xf32>
    %cst_40 = arith.constant dense<0.000000e+00> : vector<8x32xf32>
    %60 = tpu.matmul %55, %57, %cst_40 {dimension_numbers = #tpu.dot_dimension_numbers<[1], [0], [0], [1], [0, 0, 1, 1], [], []>} : vector<8x32xf32>, vector<32x32xf32>, vector<8x32xf32> -> vector<8x32xf32>
    %61 = vector.broadcast %59 : vector<1x32xf32> to vector<8x32xf32>
    %62 = arith.addf %60, %61 : vector<8x32xf32>
    %63 = arith.addf %5, %62 : vector<8x32xf32>
    %c0_41 = arith.constant 0 : index
    %c0_42 = arith.constant 0 : index
    %c0_43 = arith.constant 0 : index
    %64 = vector.load %arg12[%c0_41, %c0_42, %c0_43] : memref<2x1x32xf32, #tpu.memory_space<vmem>>, vector<1x1x32xf32>
    %65 = vector.shape_cast %64 : vector<1x1x32xf32> to vector<1x32xf32>
    %c0_44 = arith.constant 0 : index
    %c0_45 = arith.constant 0 : index
    %c0_46 = arith.constant 0 : index
    %66 = vector.load %arg13[%c0_44, %c0_45, %c0_46] : memref<2x1x32xf32, #tpu.memory_space<vmem>>, vector<1x1x32xf32>
    %67 = vector.shape_cast %66 : vector<1x1x32xf32> to vector<1x32xf32>
    %cst_47 = arith.constant dense<0.000000e+00> : vector<8xf32>
    %68 = vector.multi_reduction <add>, %63, %cst_47 [1] : vector<8x32xf32> to vector<8xf32>
    %69 = vector.shape_cast %68 : vector<8xf32> to vector<8x1xf32>
    %cst_48 = arith.constant 3.200000e+01 : f32
    %70 = vector.broadcast %cst_48 : f32 to vector<8x1xf32>
    %71 = arith.divf %69, %70 : vector<8x1xf32>
    %72 = vector.broadcast %71 : vector<8x1xf32> to vector<8x32xf32>
    %73 = arith.subf %63, %72 : vector<8x32xf32>
    %74 = arith.mulf %73, %73 : vector<8x32xf32>
    %cst_49 = arith.constant dense<0.000000e+00> : vector<8xf32>
    %75 = vector.multi_reduction <add>, %74, %cst_49 [1] : vector<8x32xf32> to vector<8xf32>
    %76 = vector.shape_cast %75 : vector<8xf32> to vector<8x1xf32>
    %cst_50 = arith.constant 3.200000e+01 : f32
    %77 = vector.broadcast %cst_50 : f32 to vector<8x1xf32>
    %78 = arith.divf %76, %77 : vector<8x1xf32>
    %79 = vector.broadcast %71 : vector<8x1xf32> to vector<8x32xf32>
    %80 = arith.subf %63, %79 : vector<8x32xf32>
    %cst_51 = arith.constant 9.99999974E-6 : f32
    %81 = vector.broadcast %cst_51 : f32 to vector<8x1xf32>
    %82 = arith.addf %78, %81 : vector<8x1xf32>
    %83 = math.rsqrt %82 : vector<8x1xf32>
    %84 = vector.broadcast %83 : vector<8x1xf32> to vector<8x32xf32>
    %85 = arith.mulf %80, %84 : vector<8x32xf32>
    %86 = vector.broadcast %65 : vector<1x32xf32> to vector<8x32xf32>
    %87 = arith.mulf %85, %86 : vector<8x32xf32>
    %88 = vector.broadcast %67 : vector<1x32xf32> to vector<8x32xf32>
    %89 = arith.addf %87, %88 : vector<8x32xf32>
    %c0_52 = arith.constant 0 : index
    %c0_53 = arith.constant 0 : index
    %c0_54 = arith.constant 0 : index
    %90 = vector.load %arg14[%c0_52, %c0_53, %c0_54] : memref<2x32x64xf32, #tpu.memory_space<vmem>>, vector<1x32x64xf32>
    %91 = vector.shape_cast %90 : vector<1x32x64xf32> to vector<32x64xf32>
    %c0_55 = arith.constant 0 : index
    %c0_56 = arith.constant 0 : index
    %c0_57 = arith.constant 0 : index
    %92 = vector.load %arg15[%c0_55, %c0_56, %c0_57] : memref<2x1x64xf32, #tpu.memory_space<vmem>>, vector<1x1x64xf32>
    %93 = vector.shape_cast %92 : vector<1x1x64xf32> to vector<1x64xf32>
    %cst_58 = arith.constant dense<0.000000e+00> : vector<8x64xf32>
    %94 = tpu.matmul %89, %91, %cst_58 {dimension_numbers = #tpu.dot_dimension_numbers<[1], [0], [0], [1], [0, 0, 1, 1], [], []>} : vector<8x32xf32>, vector<32x64xf32>, vector<8x64xf32> -> vector<8x64xf32>
    %95 = vector.broadcast %93 : vector<1x64xf32> to vector<8x64xf32>
    %96 = arith.addf %94, %95 : vector<8x64xf32>
    %cst_59 = arith.constant 0.000000e+00 : f32
    %97 = vector.broadcast %cst_59 : f32 to vector<8x64xf32>
    %98 = arith.maximumf %96, %97 : vector<8x64xf32>
    %c0_60 = arith.constant 0 : index
    %c0_61 = arith.constant 0 : index
    %c0_62 = arith.constant 0 : index
    %99 = vector.load %arg16[%c0_60, %c0_61, %c0_62] : memref<2x64x32xf32, #tpu.memory_space<vmem>>, vector<1x64x32xf32>
    %100 = vector.shape_cast %99 : vector<1x64x32xf32> to vector<64x32xf32>
    %c0_63 = arith.constant 0 : index
    %c0_64 = arith.constant 0 : index
    %c0_65 = arith.constant 0 : index
    %101 = vector.load %arg17[%c0_63, %c0_64, %c0_65] : memref<2x1x32xf32, #tpu.memory_space<vmem>>, vector<1x1x32xf32>
    %102 = vector.shape_cast %101 : vector<1x1x32xf32> to vector<1x32xf32>
    %cst_66 = arith.constant dense<0.000000e+00> : vector<8x32xf32>
    %103 = tpu.matmul %98, %100, %cst_66 {dimension_numbers = #tpu.dot_dimension_numbers<[1], [0], [0], [1], [0, 0, 1, 1], [], []>} : vector<8x64xf32>, vector<64x32xf32>, vector<8x32xf32> -> vector<8x32xf32>
    %104 = vector.broadcast %102 : vector<1x32xf32> to vector<8x32xf32>
    %105 = arith.addf %103, %104 : vector<8x32xf32>
    %106 = arith.addf %89, %105 : vector<8x32xf32>
    %c0_67 = arith.constant 0 : index
    %c0_68 = arith.constant 0 : index
    %c0_69 = arith.constant 0 : index
    %107 = vector.load %arg18[%c0_67, %c0_68, %c0_69] : memref<2x1x32xf32, #tpu.memory_space<vmem>>, vector<1x1x32xf32>
    %108 = vector.shape_cast %107 : vector<1x1x32xf32> to vector<1x32xf32>
    %c0_70 = arith.constant 0 : index
    %c0_71 = arith.constant 0 : index
    %c0_72 = arith.constant 0 : index
    %109 = vector.load %arg19[%c0_70, %c0_71, %c0_72] : memref<2x1x32xf32, #tpu.memory_space<vmem>>, vector<1x1x32xf32>
    %110 = vector.shape_cast %109 : vector<1x1x32xf32> to vector<1x32xf32>
    %cst_73 = arith.constant dense<0.000000e+00> : vector<8xf32>
    %111 = vector.multi_reduction <add>, %106, %cst_73 [1] : vector<8x32xf32> to vector<8xf32>
    %112 = vector.shape_cast %111 : vector<8xf32> to vector<8x1xf32>
    %cst_74 = arith.constant 3.200000e+01 : f32
    %113 = vector.broadcast %cst_74 : f32 to vector<8x1xf32>
    %114 = arith.divf %112, %113 : vector<8x1xf32>
    %115 = vector.broadcast %114 : vector<8x1xf32> to vector<8x32xf32>
    %116 = arith.subf %106, %115 : vector<8x32xf32>
    %117 = arith.mulf %116, %116 : vector<8x32xf32>
    %cst_75 = arith.constant dense<0.000000e+00> : vector<8xf32>
    %118 = vector.multi_reduction <add>, %117, %cst_75 [1] : vector<8x32xf32> to vector<8xf32>
    %119 = vector.shape_cast %118 : vector<8xf32> to vector<8x1xf32>
    %cst_76 = arith.constant 3.200000e+01 : f32
    %120 = vector.broadcast %cst_76 : f32 to vector<8x1xf32>
    %121 = arith.divf %119, %120 : vector<8x1xf32>
    %122 = vector.broadcast %114 : vector<8x1xf32> to vector<8x32xf32>
    %123 = arith.subf %106, %122 : vector<8x32xf32>
    %cst_77 = arith.constant 9.99999974E-6 : f32
    %124 = vector.broadcast %cst_77 : f32 to vector<8x1xf32>
    %125 = arith.addf %121, %124 : vector<8x1xf32>
    %126 = math.rsqrt %125 : vector<8x1xf32>
    %127 = vector.broadcast %126 : vector<8x1xf32> to vector<8x32xf32>
    %128 = arith.mulf %123, %127 : vector<8x32xf32>
    %129 = vector.broadcast %108 : vector<1x32xf32> to vector<8x32xf32>
    %130 = arith.mulf %128, %129 : vector<8x32xf32>
    %131 = vector.broadcast %110 : vector<1x32xf32> to vector<8x32xf32>
    %132 = arith.addf %130, %131 : vector<8x32xf32>
    %c1 = arith.constant 1 : index
    %c0_78 = arith.constant 0 : index
    %c0_79 = arith.constant 0 : index
    %133 = vector.load %arg4[%c1, %c0_78, %c0_79] : memref<2x32x32xf32, #tpu.memory_space<vmem>>, vector<1x32x32xf32>
    %134 = vector.shape_cast %133 : vector<1x32x32xf32> to vector<32x32xf32>
    %c1_80 = arith.constant 1 : index
    %c0_81 = arith.constant 0 : index
    %c0_82 = arith.constant 0 : index
    %135 = vector.load %arg5[%c1_80, %c0_81, %c0_82] : memref<2x1x32xf32, #tpu.memory_space<vmem>>, vector<1x1x32xf32>
    %136 = vector.shape_cast %135 : vector<1x1x32xf32> to vector<1x32xf32>
    %cst_83 = arith.constant dense<0.000000e+00> : vector<8x32xf32>
    %137 = tpu.matmul %132, %134, %cst_83 {dimension_numbers = #tpu.dot_dimension_numbers<[1], [0], [0], [1], [0, 0, 1, 1], [], []>} : vector<8x32xf32>, vector<32x32xf32>, vector<8x32xf32> -> vector<8x32xf32>
    %138 = vector.broadcast %136 : vector<1x32xf32> to vector<8x32xf32>
    %139 = arith.addf %137, %138 : vector<8x32xf32>
    %c1_84 = arith.constant 1 : index
    %c0_85 = arith.constant 0 : index
    %c0_86 = arith.constant 0 : index
    %140 = vector.load %arg6[%c1_84, %c0_85, %c0_86] : memref<2x32x32xf32, #tpu.memory_space<vmem>>, vector<1x32x32xf32>
    %141 = vector.shape_cast %140 : vector<1x32x32xf32> to vector<32x32xf32>
    %c1_87 = arith.constant 1 : index
    %c0_88 = arith.constant 0 : index
    %c0_89 = arith.constant 0 : index
    %142 = vector.load %arg7[%c1_87, %c0_88, %c0_89] : memref<2x1x32xf32, #tpu.memory_space<vmem>>, vector<1x1x32xf32>
    %143 = vector.shape_cast %142 : vector<1x1x32xf32> to vector<1x32xf32>
    %cst_90 = arith.constant dense<0.000000e+00> : vector<8x32xf32>
    %144 = tpu.matmul %132, %141, %cst_90 {dimension_numbers = #tpu.dot_dimension_numbers<[1], [0], [0], [1], [0, 0, 1, 1], [], []>} : vector<8x32xf32>, vector<32x32xf32>, vector<8x32xf32> -> vector<8x32xf32>
    %145 = vector.broadcast %143 : vector<1x32xf32> to vector<8x32xf32>
    %146 = arith.addf %144, %145 : vector<8x32xf32>
    %c1_91 = arith.constant 1 : index
    %c0_92 = arith.constant 0 : index
    %c0_93 = arith.constant 0 : index
    %147 = vector.load %arg8[%c1_91, %c0_92, %c0_93] : memref<2x32x32xf32, #tpu.memory_space<vmem>>, vector<1x32x32xf32>
    %148 = vector.shape_cast %147 : vector<1x32x32xf32> to vector<32x32xf32>
    %c1_94 = arith.constant 1 : index
    %c0_95 = arith.constant 0 : index
    %c0_96 = arith.constant 0 : index
    %149 = vector.load %arg9[%c1_94, %c0_95, %c0_96] : memref<2x1x32xf32, #tpu.memory_space<vmem>>, vector<1x1x32xf32>
    %150 = vector.shape_cast %149 : vector<1x1x32xf32> to vector<1x32xf32>
    %cst_97 = arith.constant dense<0.000000e+00> : vector<8x32xf32>
    %151 = tpu.matmul %132, %148, %cst_97 {dimension_numbers = #tpu.dot_dimension_numbers<[1], [0], [0], [1], [0, 0, 1, 1], [], []>} : vector<8x32xf32>, vector<32x32xf32>, vector<8x32xf32> -> vector<8x32xf32>
    %152 = vector.broadcast %150 : vector<1x32xf32> to vector<8x32xf32>
    %153 = arith.addf %151, %152 : vector<8x32xf32>
    %154 = vector.shape_cast %139 : vector<8x32xf32> to vector<8x4x8xf32>
    %155 = tpu.transpose %154, [1, 0, 2] : vector<8x4x8xf32> -> vector<4x8x8xf32>
    %156 = vector.shape_cast %146 : vector<8x32xf32> to vector<8x4x8xf32>
    %157 = tpu.transpose %156, [1, 0, 2] : vector<8x4x8xf32> -> vector<4x8x8xf32>
    %158 = vector.shape_cast %153 : vector<8x32xf32> to vector<8x4x8xf32>
    %159 = tpu.transpose %158, [1, 0, 2] : vector<8x4x8xf32> -> vector<4x8x8xf32>
    "tpu.trace_start"() <{level = 10 : i32, message = "hqd,hkd->hqk"}> : () -> ()
    %cst_98 = arith.constant dense<0.000000e+00> : vector<4x8x8xf32>
    %160 = tpu.matmul %155, %157, %cst_98 {dimension_numbers = #tpu.dot_dimension_numbers<[2], [2], [1], [1], [0, 0, 0, 1, 1, 1], [0], [0]>} : vector<4x8x8xf32>, vector<4x8x8xf32>, vector<4x8x8xf32> -> vector<4x8x8xf32>
    "tpu.trace_stop"() : () -> ()
    %cst_99 = arith.constant 0.353553385 : f32
    %161 = vector.broadcast %cst_99 : f32 to vector<4x8x8xf32>
    %162 = arith.mulf %160, %161 : vector<4x8x8xf32>
    %163 = vector.shape_cast %9 : vector<1x8xf32> to vector<1x1x8xf32>
    %164 = vector.broadcast %163 : vector<1x1x8xf32> to vector<4x8x8xf32>
    %165 = arith.addf %162, %164 : vector<4x8x8xf32>
    %cst_100 = arith.constant dense<0xFF800000> : vector<4x8xf32>
    %166 = vector.multi_reduction <maximumf>, %165, %cst_100 [2] : vector<4x8x8xf32> to vector<4x8xf32>
    %167 = vector.shape_cast %166 : vector<4x8xf32> to vector<4x8x1xf32>
    %168 = vector.broadcast %167 : vector<4x8x1xf32> to vector<4x8x8xf32>
    %169 = arith.subf %165, %168 : vector<4x8x8xf32>
    %170 = math.exp %169 : vector<4x8x8xf32>
    %cst_101 = arith.constant dense<0.000000e+00> : vector<4x8xf32>
    %171 = vector.multi_reduction <add>, %170, %cst_101 [2] : vector<4x8x8xf32> to vector<4x8xf32>
    %172 = vector.shape_cast %171 : vector<4x8xf32> to vector<4x8x1xf32>
    %173 = tpu.reciprocal %172 {approx = true} : vector<4x8x1xf32> -> vector<4x8x1xf32>
    %174 = vector.broadcast %173 : vector<4x8x1xf32> to vector<4x8x8xf32>
    %175 = arith.mulf %170, %174 : vector<4x8x8xf32>
    "tpu.trace_start"() <{level = 10 : i32, message = "hqk,hkd->hqd"}> : () -> ()
    %cst_102 = arith.constant dense<0.000000e+00> : vector<4x8x8xf32>
    %176 = tpu.matmul %175, %159, %cst_102 {dimension_numbers = #tpu.dot_dimension_numbers<[2], [1], [1], [2], [0, 0, 0, 1, 1, 2], [0], [0]>} : vector<4x8x8xf32>, vector<4x8x8xf32>, vector<4x8x8xf32> -> vector<4x8x8xf32>
    "tpu.trace_stop"() : () -> ()
    %177 = tpu.transpose %176, [1, 0, 2] : vector<4x8x8xf32> -> vector<8x4x8xf32>
    %178 = vector.shape_cast %177 : vector<8x4x8xf32> to vector<8x32xf32>
    %c1_103 = arith.constant 1 : index
    %c0_104 = arith.constant 0 : index
    %c0_105 = arith.constant 0 : index
    %179 = vector.load %arg10[%c1_103, %c0_104, %c0_105] : memref<2x32x32xf32, #tpu.memory_space<vmem>>, vector<1x32x32xf32>
    %180 = vector.shape_cast %179 : vector<1x32x32xf32> to vector<32x32xf32>
    %c1_106 = arith.constant 1 : index
    %c0_107 = arith.constant 0 : index
    %c0_108 = arith.constant 0 : index
    %181 = vector.load %arg11[%c1_106, %c0_107, %c0_108] : memref<2x1x32xf32, #tpu.memory_space<vmem>>, vector<1x1x32xf32>
    %182 = vector.shape_cast %181 : vector<1x1x32xf32> to vector<1x32xf32>
    %cst_109 = arith.constant dense<0.000000e+00> : vector<8x32xf32>
    %183 = tpu.matmul %178, %180, %cst_109 {dimension_numbers = #tpu.dot_dimension_numbers<[1], [0], [0], [1], [0, 0, 1, 1], [], []>} : vector<8x32xf32>, vector<32x32xf32>, vector<8x32xf32> -> vector<8x32xf32>
    %184 = vector.broadcast %182 : vector<1x32xf32> to vector<8x32xf32>
    %185 = arith.addf %183, %184 : vector<8x32xf32>
    %186 = arith.addf %132, %185 : vector<8x32xf32>
    %c1_110 = arith.constant 1 : index
    %c0_111 = arith.constant 0 : index
    %c0_112 = arith.constant 0 : index
    %187 = vector.load %arg12[%c1_110, %c0_111, %c0_112] : memref<2x1x32xf32, #tpu.memory_space<vmem>>, vector<1x1x32xf32>
    %188 = vector.shape_cast %187 : vector<1x1x32xf32> to vector<1x32xf32>
    %c1_113 = arith.constant 1 : index
    %c0_114 = arith.constant 0 : index
    %c0_115 = arith.constant 0 : index
    %189 = vector.load %arg13[%c1_113, %c0_114, %c0_115] : memref<2x1x32xf32, #tpu.memory_space<vmem>>, vector<1x1x32xf32>
    %190 = vector.shape_cast %189 : vector<1x1x32xf32> to vector<1x32xf32>
    %cst_116 = arith.constant dense<0.000000e+00> : vector<8xf32>
    %191 = vector.multi_reduction <add>, %186, %cst_116 [1] : vector<8x32xf32> to vector<8xf32>
    %192 = vector.shape_cast %191 : vector<8xf32> to vector<8x1xf32>
    %cst_117 = arith.constant 3.200000e+01 : f32
    %193 = vector.broadcast %cst_117 : f32 to vector<8x1xf32>
    %194 = arith.divf %192, %193 : vector<8x1xf32>
    %195 = vector.broadcast %194 : vector<8x1xf32> to vector<8x32xf32>
    %196 = arith.subf %186, %195 : vector<8x32xf32>
    %197 = arith.mulf %196, %196 : vector<8x32xf32>
    %cst_118 = arith.constant dense<0.000000e+00> : vector<8xf32>
    %198 = vector.multi_reduction <add>, %197, %cst_118 [1] : vector<8x32xf32> to vector<8xf32>
    %199 = vector.shape_cast %198 : vector<8xf32> to vector<8x1xf32>
    %cst_119 = arith.constant 3.200000e+01 : f32
    %200 = vector.broadcast %cst_119 : f32 to vector<8x1xf32>
    %201 = arith.divf %199, %200 : vector<8x1xf32>
    %202 = vector.broadcast %194 : vector<8x1xf32> to vector<8x32xf32>
    %203 = arith.subf %186, %202 : vector<8x32xf32>
    %cst_120 = arith.constant 9.99999974E-6 : f32
    %204 = vector.broadcast %cst_120 : f32 to vector<8x1xf32>
    %205 = arith.addf %201, %204 : vector<8x1xf32>
    %206 = math.rsqrt %205 : vector<8x1xf32>
    %207 = vector.broadcast %206 : vector<8x1xf32> to vector<8x32xf32>
    %208 = arith.mulf %203, %207 : vector<8x32xf32>
    %209 = vector.broadcast %188 : vector<1x32xf32> to vector<8x32xf32>
    %210 = arith.mulf %208, %209 : vector<8x32xf32>
    %211 = vector.broadcast %190 : vector<1x32xf32> to vector<8x32xf32>
    %212 = arith.addf %210, %211 : vector<8x32xf32>
    %c1_121 = arith.constant 1 : index
    %c0_122 = arith.constant 0 : index
    %c0_123 = arith.constant 0 : index
    %213 = vector.load %arg14[%c1_121, %c0_122, %c0_123] : memref<2x32x64xf32, #tpu.memory_space<vmem>>, vector<1x32x64xf32>
    %214 = vector.shape_cast %213 : vector<1x32x64xf32> to vector<32x64xf32>
    %c1_124 = arith.constant 1 : index
    %c0_125 = arith.constant 0 : index
    %c0_126 = arith.constant 0 : index
    %215 = vector.load %arg15[%c1_124, %c0_125, %c0_126] : memref<2x1x64xf32, #tpu.memory_space<vmem>>, vector<1x1x64xf32>
    %216 = vector.shape_cast %215 : vector<1x1x64xf32> to vector<1x64xf32>
    %cst_127 = arith.constant dense<0.000000e+00> : vector<8x64xf32>
    %217 = tpu.matmul %212, %214, %cst_127 {dimension_numbers = #tpu.dot_dimension_numbers<[1], [0], [0], [1], [0, 0, 1, 1], [], []>} : vector<8x32xf32>, vector<32x64xf32>, vector<8x64xf32> -> vector<8x64xf32>
    %218 = vector.broadcast %216 : vector<1x64xf32> to vector<8x64xf32>
    %219 = arith.addf %217, %218 : vector<8x64xf32>
    %cst_128 = arith.constant 0.000000e+00 : f32
    %220 = vector.broadcast %cst_128 : f32 to vector<8x64xf32>
    %221 = arith.maximumf %219, %220 : vector<8x64xf32>
    %c1_129 = arith.constant 1 : index
    %c0_130 = arith.constant 0 : index
    %c0_131 = arith.constant 0 : index
    %222 = vector.load %arg16[%c1_129, %c0_130, %c0_131] : memref<2x64x32xf32, #tpu.memory_space<vmem>>, vector<1x64x32xf32>
    %223 = vector.shape_cast %222 : vector<1x64x32xf32> to vector<64x32xf32>
    %c1_132 = arith.constant 1 : index
    %c0_133 = arith.constant 0 : index
    %c0_134 = arith.constant 0 : index
    %224 = vector.load %arg17[%c1_132, %c0_133, %c0_134] : memref<2x1x32xf32, #tpu.memory_space<vmem>>, vector<1x1x32xf32>
    %225 = vector.shape_cast %224 : vector<1x1x32xf32> to vector<1x32xf32>
    %cst_135 = arith.constant dense<0.000000e+00> : vector<8x32xf32>
    %226 = tpu.matmul %221, %223, %cst_135 {dimension_numbers = #tpu.dot_dimension_numbers<[1], [0], [0], [1], [0, 0, 1, 1], [], []>} : vector<8x64xf32>, vector<64x32xf32>, vector<8x32xf32> -> vector<8x32xf32>
    %227 = vector.broadcast %225 : vector<1x32xf32> to vector<8x32xf32>
    %228 = arith.addf %226, %227 : vector<8x32xf32>
    %229 = arith.addf %212, %228 : vector<8x32xf32>
    %c1_136 = arith.constant 1 : index
    %c0_137 = arith.constant 0 : index
    %c0_138 = arith.constant 0 : index
    %230 = vector.load %arg18[%c1_136, %c0_137, %c0_138] : memref<2x1x32xf32, #tpu.memory_space<vmem>>, vector<1x1x32xf32>
    %231 = vector.shape_cast %230 : vector<1x1x32xf32> to vector<1x32xf32>
    %c1_139 = arith.constant 1 : index
    %c0_140 = arith.constant 0 : index
    %c0_141 = arith.constant 0 : index
    %232 = vector.load %arg19[%c1_139, %c0_140, %c0_141] : memref<2x1x32xf32, #tpu.memory_space<vmem>>, vector<1x1x32xf32>
    %233 = vector.shape_cast %232 : vector<1x1x32xf32> to vector<1x32xf32>
    %cst_142 = arith.constant dense<0.000000e+00> : vector<8xf32>
    %234 = vector.multi_reduction <add>, %229, %cst_142 [1] : vector<8x32xf32> to vector<8xf32>
    %235 = vector.shape_cast %234 : vector<8xf32> to vector<8x1xf32>
    %cst_143 = arith.constant 3.200000e+01 : f32
    %236 = vector.broadcast %cst_143 : f32 to vector<8x1xf32>
    %237 = arith.divf %235, %236 : vector<8x1xf32>
    %238 = vector.broadcast %237 : vector<8x1xf32> to vector<8x32xf32>
    %239 = arith.subf %229, %238 : vector<8x32xf32>
    %240 = arith.mulf %239, %239 : vector<8x32xf32>
    %cst_144 = arith.constant dense<0.000000e+00> : vector<8xf32>
    %241 = vector.multi_reduction <add>, %240, %cst_144 [1] : vector<8x32xf32> to vector<8xf32>
    %242 = vector.shape_cast %241 : vector<8xf32> to vector<8x1xf32>
    %cst_145 = arith.constant 3.200000e+01 : f32
    %243 = vector.broadcast %cst_145 : f32 to vector<8x1xf32>
    %244 = arith.divf %242, %243 : vector<8x1xf32>
    %245 = vector.broadcast %237 : vector<8x1xf32> to vector<8x32xf32>
    %246 = arith.subf %229, %245 : vector<8x32xf32>
    %cst_146 = arith.constant 9.99999974E-6 : f32
    %247 = vector.broadcast %cst_146 : f32 to vector<8x1xf32>
    %248 = arith.addf %244, %247 : vector<8x1xf32>
    %249 = math.rsqrt %248 : vector<8x1xf32>
    %250 = vector.broadcast %249 : vector<8x1xf32> to vector<8x32xf32>
    %251 = arith.mulf %246, %250 : vector<8x32xf32>
    %252 = vector.broadcast %231 : vector<1x32xf32> to vector<8x32xf32>
    %253 = arith.mulf %251, %252 : vector<8x32xf32>
    %254 = vector.broadcast %233 : vector<1x32xf32> to vector<8x32xf32>
    %255 = arith.addf %253, %254 : vector<8x32xf32>
    %256 = vector.extract_strided_slice %255 {offsets = [0, 0], sizes = [1, 32], strides = [1, 1]} : vector<8x32xf32> to vector<1x32xf32>
    %c0_147 = arith.constant 0 : index
    %c0_148 = arith.constant 0 : index
    %257 = vector.load %arg20[%c0_147, %c0_148] : memref<32x32xf32, #tpu.memory_space<vmem>>, vector<32x32xf32>
    %c0_149 = arith.constant 0 : index
    %c0_150 = arith.constant 0 : index
    %258 = vector.load %arg21[%c0_149, %c0_150] : memref<1x32xf32, #tpu.memory_space<vmem>>, vector<1x32xf32>
    %cst_151 = arith.constant dense<0.000000e+00> : vector<1x32xf32>
    %259 = tpu.matmul %256, %257, %cst_151 {dimension_numbers = #tpu.dot_dimension_numbers<[1], [0], [0], [1], [0, 0, 1, 1], [], []>} : vector<1x32xf32>, vector<32x32xf32>, vector<1x32xf32> -> vector<1x32xf32>
    %260 = arith.addf %259, %258 : vector<1x32xf32>
    %261 = math.tanh %260 : vector<1x32xf32>
    %c0_152 = arith.constant 0 : index
    %c0_153 = arith.constant 0 : index
    %262 = vector.load %arg22[%c0_152, %c0_153] : memref<32x16xf32, #tpu.memory_space<vmem>>, vector<32x16xf32>
    %c0_154 = arith.constant 0 : index
    %c0_155 = arith.constant 0 : index
    %263 = vector.load %arg23[%c0_154, %c0_155] : memref<1x16xf32, #tpu.memory_space<vmem>>, vector<1x16xf32>
    %cst_156 = arith.constant dense<0.000000e+00> : vector<1x16xf32>
    %264 = tpu.matmul %261, %262, %cst_156 {dimension_numbers = #tpu.dot_dimension_numbers<[1], [0], [0], [1], [0, 0, 1, 1], [], []>} : vector<1x32xf32>, vector<32x16xf32>, vector<1x16xf32> -> vector<1x16xf32>
    %265 = arith.addf %264, %263 : vector<1x16xf32>
    %c0_157 = arith.constant 0 : index
    %c0_158 = arith.constant 0 : index
    %c0_159 = arith.constant 0 : index
    %266 = vector.load %arg24[%c0_157, %c0_158, %c0_159] : memref<1x1x16xf32, #tpu.memory_space<vmem>>, vector<1x1x16xf32>
    %267 = vector.shape_cast %266 : vector<1x1x16xf32> to vector<1x16xf32>
    %268 = vector.shape_cast %265 : vector<1x16xf32> to vector<1x1x16xf32>
    tpu.vector_store %arg24[%c0_157, %c0_158, %c0_159], %268 {strides = array<i32>} : memref<1x1x16xf32, #tpu.memory_space<vmem>>, vector<1x1x16xf32>,
    return
  }
  func.func @transform_0(%arg0: i32) -> (i32, i32, i32) {
    %c0_i32 = arith.constant 0 : i32
    %c0_i32_0 = arith.constant 0 : i32
    %c0_i32_1 = arith.constant 0 : i32
    return %arg0, %c0_i32, %c0_i32_0 : i32, i32, i32
  }
  func.func @transform_1(%arg0: i32) -> (i32, i32) {
    %c0_i32 = arith.constant 0 : i32
    %c0_i32_0 = arith.constant 0 : i32
    %c0_i32_1 = arith.constant 0 : i32
    return %c0_i32, %c0_i32_0 : i32, i32
  }
  func.func @transform_2(%arg0: i32) -> (i32, i32, i32) {
    %c0_i32 = arith.constant 0 : i32
    %c0_i32_0 = arith.constant 0 : i32
    %c0_i32_1 = arith.constant 0 : i32
    return %arg0, %c0_i32, %c0_i32_0 : i32, i32, i32
  }
  func.func @transform_3(%arg0: i32) -> (i32, i32, i32) {
    %c0_i32 = arith.constant 0 : i32
    %c0_i32_0 = arith.constant 0 : i32
    %c0_i32_1 = arith.constant 0 : i32
    %c0_i32_2 = arith.constant 0 : i32
    return %c0_i32, %c0_i32_0, %c0_i32_1 : i32, i32, i32
  }
  func.func @transform_4(%arg0: i32) -> (i32, i32, i32) {
    %c0_i32 = arith.constant 0 : i32
    %c0_i32_0 = arith.constant 0 : i32
    %c0_i32_1 = arith.constant 0 : i32
    %c0_i32_2 = arith.constant 0 : i32
    return %c0_i32, %c0_i32_0, %c0_i32_1 : i32, i32, i32
  }
  func.func @transform_5(%arg0: i32) -> (i32, i32, i32) {
    %c0_i32 = arith.constant 0 : i32
    %c0_i32_0 = arith.constant 0 : i32
    %c0_i32_1 = arith.constant 0 : i32
    %c0_i32_2 = arith.constant 0 : i32
    return %c0_i32, %c0_i32_0, %c0_i32_1 : i32, i32, i32
  }
  func.func @transform_6(%arg0: i32) -> (i32, i32, i32) {
    %c0_i32 = arith.constant 0 : i32
    %c0_i32_0 = arith.constant 0 : i32
    %c0_i32_1 = arith.constant 0 : i32
    %c0_i32_2 = arith.constant 0 : i32
    return %c0_i32, %c0_i32_0, %c0_i32_1 : i32, i32, i32
  }
  func.func @transform_7(%arg0: i32) -> (i32, i32, i32) {
    %c0_i32 = arith.constant 0 : i32
    %c0_i32_0 = arith.constant 0 : i32
    %c0_i32_1 = arith.constant 0 : i32
    %c0_i32_2 = arith.constant 0 : i32
    return %c0_i32, %c0_i32_0, %c0_i32_1 : i32, i32, i32
  }
  func.func @transform_8(%arg0: i32) -> (i32, i32, i32) {
    %c0_i32 = arith.constant 0 : i32
    %c0_i32_0 = arith.constant 0 : i32
    %c0_i32_1 = arith.constant 0 : i32
    %c0_i32_2 = arith.constant 0 : i32
    return %c0_i32, %c0_i32_0, %c0_i32_1 : i32, i32, i32
  }
  func.func @transform_9(%arg0: i32) -> (i32, i32, i32) {
    %c0_i32 = arith.constant 0 : i32
    %c0_i32_0 = arith.constant 0 : i32
    %c0_i32_1 = arith.constant 0 : i32
    %c0_i32_2 = arith.constant 0 : i32
    return %c0_i32, %c0_i32_0, %c0_i32_1 : i32, i32, i32
  }
  func.func @transform_10(%arg0: i32) -> (i32, i32, i32) {
    %c0_i32 = arith.constant 0 : i32
    %c0_i32_0 = arith.constant 0 : i32
    %c0_i32_1 = arith.constant 0 : i32
    %c0_i32_2 = arith.constant 0 : i32
    return %c0_i32, %c0_i32_0, %c0_i32_1 : i32, i32, i32
  }
  func.func @transform_11(%arg0: i32) -> (i32, i32, i32) {
    %c0_i32 = arith.constant 0 : i32
    %c0_i32_0 = arith.constant 0 : i32
    %c0_i32_1 = arith.constant 0 : i32
    %c0_i32_2 = arith.constant 0 : i32
    return %c0_i32, %c0_i32_0, %c0_i32_1 : i32, i32, i32
  }
  func.func @transform_12(%arg0: i32) -> (i32, i32, i32) {
    %c0_i32 = arith.constant 0 : i32
    %c0_i32_0 = arith.constant 0 : i32
    %c0_i32_1 = arith.constant 0 : i32
    %c0_i32_2 = arith.constant 0 : i32
    return %c0_i32, %c0_i32_0, %c0_i32_1 : i32, i32, i32
  }
  func.func @transform_13(%arg0: i32) -> (i32, i32, i32) {
    %c0_i32 = arith.constant 0 : i32
    %c0_i32_0 = arith.constant 0 : i32
    %c0_i32_1 = arith.constant 0 : i32
    %c0_i32_2 = arith.constant 0 : i32
    return %c0_i32, %c0_i32_0, %c0_i32_1 : i32, i32, i32
  }
  func.func @transform_14(%arg0: i32) -> (i32, i32, i32) {
    %c0_i32 = arith.constant 0 : i32
    %c0_i32_0 = arith.constant 0 : i32
    %c0_i32_1 = arith.constant 0 : i32
    %c0_i32_2 = arith.constant 0 : i32
    return %c0_i32, %c0_i32_0, %c0_i32_1 : i32, i32, i32
  }
  func.func @transform_15(%arg0: i32) -> (i32, i32, i32) {
    %c0_i32 = arith.constant 0 : i32
    %c0_i32_0 = arith.constant 0 : i32
    %c0_i32_1 = arith.constant 0 : i32
    %c0_i32_2 = arith.constant 0 : i32
    return %c0_i32, %c0_i32_0, %c0_i32_1 : i32, i32, i32
  }
  func.func @transform_16(%arg0: i32) -> (i32, i32, i32) {
    %c0_i32 = arith.constant 0 : i32
    %c0_i32_0 = arith.constant 0 : i32
    %c0_i32_1 = arith.constant 0 : i32
    %c0_i32_2 = arith.constant 0 : i32
    return %c0_i32, %c0_i32_0, %c0_i32_1 : i32, i32, i32
  }
  func.func @transform_17(%arg0: i32) -> (i32, i32, i32) {
    %c0_i32 = arith.constant 0 : i32
    %c0_i32_0 = arith.constant 0 : i32
    %c0_i32_1 = arith.constant 0 : i32
    %c0_i32_2 = arith.constant 0 : i32
    return %c0_i32, %c0_i32_0, %c0_i32_1 : i32, i32, i32
  }
  func.func @transform_18(%arg0: i32) -> (i32, i32, i32) {
    %c0_i32 = arith.constant 0 : i32
    %c0_i32_0 = arith.constant 0 : i32
    %c0_i32_1 = arith.constant 0 : i32
    %c0_i32_2 = arith.constant 0 : i32
    return %c0_i32, %c0_i32_0, %c0_i32_1 : i32, i32, i32
  }
  func.func @transform_19(%arg0: i32) -> (i32, i32) {
    %c0_i32 = arith.constant 0 : i32
    %c0_i32_0 = arith.constant 0 : i32
    %c0_i32_1 = arith.constant 0 : i32
    return %c0_i32, %c0_i32_0 : i32, i32
  }
  func.func @transform_20(%arg0: i32) -> (i32, i32) {
    %c0_i32 = arith.constant 0 : i32
    %c0_i32_0 = arith.constant 0 : i32
    %c0_i32_1 = arith.constant 0 : i32
    return %c0_i32, %c0_i32_0 : i32, i32
  }
  func.func @transform_21(%arg0: i32) -> (i32, i32) {
    %c0_i32 = arith.constant 0 : i32
    %c0_i32_0 = arith.constant 0 : i32
    %c0_i32_1 = arith.constant 0 : i32
    return %c0_i32, %c0_i32_0 : i32, i32
  }
  func.func @transform_22(%arg0: i32) -> (i32, i32) {
    %c0_i32 = arith.constant 0 : i32
    %c0_i32_0 = arith.constant 0 : i32
    %c0_i32_1 = arith.constant 0 : i32
    return %c0_i32, %c0_i32_0 : i32, i32
  }
  func.func @transform_23(%arg0: i32) -> (i32, i32, i32) {
    %c0_i32 = arith.constant 0 : i32
    %c0_i32_0 = arith.constant 0 : i32
    %c0_i32_1 = arith.constant 0 : i32
    return %arg0, %c0_i32, %c0_i32_0 : i32, i32, i32
  }
}

</mosaic_0001>

<llo_original>
// kernel: tpu_custom_call.1
$region0: #{tpu_custom_call.1}
  #allocation0 [shape = 'u32[]', space=smem, size = 0x4, offset = 0x4, fixed_abs, tag = 'smem constant byte address 0x4 - core index']
  #allocation1 [shape = 'u32[144,128]{1,0:T(1,128)}', space=vmem, size = 0x12000, scoped, tag = 'internal scratch']
  %s0 = inlined_call_operand.hbm [shape: f32[2,8,32], index: 0, kind: input, shape index: {}]
  %s1 = inlined_call_operand.hbm [shape: f32[8,32], index: 1, kind: input, shape index: {}]
  %s2 = inlined_call_operand.hbm [shape: f32[2,1,8], index: 2, kind: input, shape index: {}]
  %s3 = inlined_call_operand.vmem [shape: f32[2,32,32], index: 3, kind: input, shape index: {}]
  %s4 = inlined_call_operand.hbm [shape: f32[2,1,32], index: 4, kind: input, shape index: {}]
  %s5 = inlined_call_operand.vmem [shape: f32[2,32,32], index: 5, kind: input, shape index: {}]
  %s6 = inlined_call_operand.hbm [shape: f32[2,1,32], index: 6, kind: input, shape index: {}]
  %s7 = inlined_call_operand.vmem [shape: f32[2,32,32], index: 7, kind: input, shape index: {}]
  %s8 = inlined_call_operand.hbm [shape: f32[2,1,32], index: 8, kind: input, shape index: {}]
  %s9 = inlined_call_operand.hbm [shape: f32[2,32,32], index: 9, kind: input, shape index: {}]
  %s10 = inlined_call_operand.hbm [shape: f32[2,1,32], index: 10, kind: input, shape index: {}]
  %s11 = inlined_call_operand.hbm [shape: f32[2,1,32], index: 11, kind: input, shape index: {}]
  %s12 = inlined_call_operand.hbm [shape: f32[2,1,32], index: 12, kind: input, shape index: {}]
  %s13 = inlined_call_operand.hbm [shape: f32[2,32,64], index: 13, kind: input, shape index: {}]
  %s14 = inlined_call_operand.hbm [shape: f32[2,1,64], index: 14, kind: input, shape index: {}]
  %s15 = inlined_call_operand.vmem [shape: f32[2,64,32], index: 15, kind: input, shape index: {}]
  %s16 = inlined_call_operand.hbm [shape: f32[2,1,32], index: 16, kind: input, shape index: {}]
  %s17 = inlined_call_operand.hbm [shape: f32[2,1,32], index: 17, kind: input, shape index: {}]
  %s18 = inlined_call_operand.vmem [shape: f32[2,1,32], index: 18, kind: input, shape index: {}]
  %s19 = inlined_call_operand.vmem [shape: f32[32,32], index: 19, kind: input, shape index: {}]
  %s20 = inlined_call_operand.vmem [shape: f32[1,32], index: 20, kind: input, shape index: {}]
  %s21 = inlined_call_operand.vmem [shape: f32[32,16], index: 21, kind: input, shape index: {}]
  %s22 = inlined_call_operand.vmem [shape: f32[1,16], index: 22, kind: input, shape index: {}]
  %s23 = inlined_call_operand.hbm [shape: f32[2,1,16], index: 23, kind: output, shape index: {}]
  %s24 = sld [smem:[#allocation0]]
  $region181: #{tpu_custom_call.1} parent=0
    _
  %s26 = ssub.s32 1, %s24
  %s27 = scalar_select 0, %s26, %s24
  $region1: #{tpu_custom_call.1} parent=0
    #allocation2 [shape = 'u8[8192]{0}', space=vmem, size = 0x2000, scoped, tag = 'input window, operand 0']
    #allocation3 [shape = 's32[2]{0}', space=sflag, size = 0x8, scoped, tag = 'scoped memory for tpu_custom_call.1']
    #allocation4 [shape = 's32[2]{0}', space=sflag, size = 0x8, scoped, tag = 'scoped memory for tpu_custom_call.1']
    #allocation5 [shape = 'u8[4096]{0}', space=vmem, size = 0x1000, scoped, tag = 'input window, operand 1, single buffered']
    #allocation6 [shape = 's32[1]{0}', space=sflag, size = 0x4, scoped, tag = 'scoped memory for tpu_custom_call.1']
    #allocation7 [shape = 'u8[1024]{0}', space=vmem, size = 0x400, scoped, tag = 'input window, operand 2']
    #allocation8 [shape = 'u8[1024]{0}', space=vmem, size = 0x400, scoped, tag = 'input window, operand 4, single buffered']
    #allocation9 [shape = 'u8[1024]{0}', space=vmem, size = 0x400, scoped, tag = 'input window, operand 6, single buffered']
    #allocation10 [shape = 's32[1]{0}', space=sflag, size = 0x4, scoped, tag = 'scoped memory for tpu_custom_call.1']
    #allocation11 [shape = 'u8[1024]{0}', space=vmem, size = 0x400, scoped, tag = 'input window, operand 8, single buffered']
    #allocation12 [shape = 'u8[32768]{0}', space=vmem, size = 0x8000, scoped, tag = 'input window, operand 9, single buffered']
    #allocation13 [shape = 's32[1]{0}', space=sflag, size = 0x4, scoped, tag = 'scoped memory for tpu_custom_call.1']
    #allocation14 [shape = 'u8[1024]{0}', space=vmem, size = 0x400, scoped, tag = 'input window, operand 10, single buffered']
    #allocation15 [shape = 'u8[1024]{0}', space=vmem, size = 0x400, scoped, tag = 'input window, operand 11, single buffered']
    #allocation16 [shape = 's32[1]{0}', space=sflag, size = 0x4, scoped, tag = 'scoped memory for tpu_custom_call.1']
    #allocation17 [shape = 'u8[1024]{0}', space=vmem, size = 0x400, scoped, tag = 'input window, operand 12, single buffered']
    #allocation18 [shape = 'u8[32768]{0}', space=vmem, size = 0x8000, scoped, tag = 'input window, operand 13, single buffered']
    #allocation19 [shape = 's32[1]{0}', space=sflag, size = 0x4, scoped, tag = 'scoped memory for tpu_custom_call.1']
    #allocation20 [shape = 'u8[1024]{0}', space=vmem, size = 0x400, scoped, tag = 'input window, operand 14, single buffered']
    #allocation21 [shape = 'u8[1024]{0}', space=vmem, size = 0x400, scoped, tag = 'input window, operand 16, single buffered']
    #allocation22 [shape = 's32[1]{0}', space=sflag, size = 0x4, scoped, tag = 'scoped memory for tpu_custom_call.1']
    #allocation23 [shape = 'u8[1024]{0}', space=vmem, size = 0x400, scoped, tag = 'input window, operand 17, single buffered']
    #allocation24 [shape = 'u8[1024]{0}', space=vmem, size = 0x400, scoped, tag = 'output window, operand 0']
    %28 = vsyncpa [#allocation3], 0
    %s29 = scalar_lea.sflag [#allocation3], 1
    %30 = vsyncpa %s29, 0
    %31 = vsyncpa [#allocation6], 0
    %32 = vsyncpa [#allocation10], 0
    %33 = vsyncpa [#allocation13], 0
    %34 = vsyncpa [#allocation16], 0
    %35 = vsyncpa [#allocation19], 0
    %36 = vsyncpa [#allocation22], 0
    %37 = vsyncpa [#allocation4], 0
    %s38 = scalar_lea.sflag [#allocation4], 1
    %39 = vsyncpa %s38, 0
    loop: start=0, step=1, limit=4
    $region2: #{tpu_custom_call.1} parent=1 // loop_pre_header
      _
    $region3: #{tpu_custom_call.1} parent=1 // loop_header
      %s41 = sphi 0, %s45
      %p42 = scmp.ge.s32.totalorder %s41, 4
      %s51 = sphi 0, %s53
      %s54 = sphi 0, %s51
      %s55 = sphi 0, %s54
      %s71 = sphi 0, %s55
      %s75 = sphi 0, %s75
      %s77 = sphi 0, %s75
      %s78 = sphi 0, %s77
      %s92 = sphi 0, %s78
      %s98 = sphi 0, %s100
      %s101 = sphi 0, %s98
      %s102 = sphi 0, %s101
      %s118 = sphi 0, %s102
      %s122 = sphi 0, %s122
      %s124 = sphi 0, %s122
      %s125 = sphi 0, %s124
      %s139 = sphi 0, %s125
      %s143 = sphi 0, %s143
      %s145 = sphi 0, %s143
      %s146 = sphi 0, %s145
      %s160 = sphi 0, %s146
      %s164 = sphi 0, %s164
      %s166 = sphi 0, %s164
      %s167 = sphi 0, %s166
      %s181 = sphi 0, %s167
      %s185 = sphi 0, %s185
      %s187 = sphi 0, %s185
      %s188 = sphi 0, %s187
      %s202 = sphi 0, %s188
      %s206 = sphi 0, %s206
      %s208 = sphi 0, %s206
      %s209 = sphi 0, %s208
      %s223 = sphi 0, %s209
      %s227 = sphi 0, %s227
      %s229 = sphi 0, %s227
      %s230 = sphi 0, %s229
      %s244 = sphi 0, %s230
      %s248 = sphi 0, %s248
      %s250 = sphi 0, %s248
      %s251 = sphi 0, %s250
      %s265 = sphi 0, %s251
      %s269 = sphi 0, %s269
      %s271 = sphi 0, %s269
      %s272 = sphi 0, %s271
      %s286 = sphi 0, %s272
      %s290 = sphi 0, %s290
      %s292 = sphi 0, %s290
      %s293 = sphi 0, %s292
      %s307 = sphi 0, %s293
      %s311 = sphi 0, %s311
      %s313 = sphi 0, %s311
      %s314 = sphi 0, %s313
      %s328 = sphi 0, %s314
      %s332 = sphi 0, %s332
      %s334 = sphi 0, %s332
      %s335 = sphi 0, %s334
      %s349 = sphi 0, %s335
      %s353 = sphi 0, %s353
      %s355 = sphi 0, %s353
      %s356 = sphi 0, %s355
      %s370 = sphi 0, %s356
      %s374 = sphi 0, %s374
      %s376 = sphi 0, %s374
      %s377 = sphi 0, %s376
      %s391 = sphi 0, %s377
      %s395 = sphi 0, %s395
      %s397 = sphi 0, %s395
      %s398 = sphi 0, %s397
      %s412 = sphi 0, %s398
      %s416 = sphi 0, %s416
      %s418 = sphi 0, %s416
      %s419 = sphi 0, %s418
      %s433 = sphi 0, %s419
      %s437 = sphi 0, %s437
      %s439 = sphi 0, %s437
      %s440 = sphi 0, %s439
      %s454 = sphi 0, %s440
      %s458 = sphi 0, %s458
      %s460 = sphi 0, %s458
      %s461 = sphi 0, %s460
      %s475 = sphi 0, %s461
      %s479 = sphi 0, %s479
      %s481 = sphi 0, %s479
      %s482 = sphi 0, %s481
      %s496 = sphi 0, %s482
      %s500 = sphi 0, %s500
      %s502 = sphi 0, %s500
      %s503 = sphi 0, %s502
      %s517 = sphi 0, %s503
      %s521 = sphi 0, %s521
      %s523 = sphi 0, %s521
      %s524 = sphi 0, %s523
      %s538 = sphi 0, %s524
      %s544 = sphi 0, %s546
      %s547 = sphi 0, %s544
      %s548 = sphi 0, %s547
      %s564 = sphi 0, %s548
    $region4: #{tpu_custom_call.1} parent=1 // loop_header_branch
      %44 = sbr.rel (%p42) target = $region8
    $region5: #{tpu_custom_call.1} parent=1 // loop_body
      %s46 = ssub.s32 %s41, 1
      %s47 = ssub.s32 %s41, 2
      %s48 = sadd.s32 %s41, 1
      %s49 = ssub.s32 %s41, %s48
      %p50 = scmp.eq.s32.totalorder %s49, 0
      %s52 = sadd.s32 %s51, 1
      %s53 = scalar_select %p50, %s51, %s52
      %p56 = pneg %p50
      %p57 = scmp.eq.s32.totalorder %s41, 1
      %p58 = por %p56, %p57
      %p59 = scmp.ne.s32.totalorder %s51, %s54
      %p60 = scmp.eq.s32.totalorder %s41, 0
      %p61 = por %p59, %p60
      %p62 = scmp.ne.s32.totalorder %s51, %s54
      %p63 = scmp.eq.s32.totalorder %s46, 1
      %p64 = por %p62, %p63
      %p65 = scmp.ne.s32.totalorder %s54, %s55
      %p66 = scmp.eq.s32.totalorder %s46, 0
      %p67 = por %p65, %p66
      %p68 = scmp.ne.s32.totalorder %s54, %s55
      %p69 = scmp.eq.s32.totalorder %s47, 1
      %p70 = por %p68, %p69
      %p72 = scmp.ne.s32.totalorder %s55, %s71
      %p73 = scmp.eq.s32.totalorder %s47, 0
      %p74 = por %p72, %p73
      %s76 = sadd.s32 %s75, 1
      %p79 = scmp.eq.s32.totalorder %s41, 1
      %p80 = scmp.ne.s32.totalorder %s75, %s77
      %p81 = scmp.eq.s32.totalorder %s41, 0
      %p82 = por %p80, %p81
      %p83 = scmp.ne.s32.totalorder %s75, %s77
      %p84 = scmp.eq.s32.totalorder %s46, 1
      %p85 = por %p83, %p84
      %p86 = scmp.ne.s32.totalorder %s77, %s78
      %p87 = scmp.eq.s32.totalorder %s46, 0
      %p88 = por %p86, %p87
      %p89 = scmp.ne.s32.totalorder %s77, %s78
      %p90 = scmp.eq.s32.totalorder %s47, 1
      %p91 = por %p89, %p90
      %p93 = scmp.ne.s32.totalorder %s78, %s92
      %p94 = scmp.eq.s32.totalorder %s47, 0
      %p95 = por %p93, %p94
      %s96 = ssub.s32 %s41, %s48
      %p97 = scmp.eq.s32.totalorder %s96, 0
      %s99 = sadd.s32 %s98, 1
      %s100 = scalar_select %p97, %s98, %s99
      %p103 = pneg %p97
      %p104 = scmp.eq.s32.totalorder %s41, 1
      %p105 = por %p103, %p104
      %p106 = scmp.ne.s32.totalorder %s98, %s101
      %p107 = scmp.eq.s32.totalorder %s41, 0
      %p108 = por %p106, %p107
      %p109 = scmp.ne.s32.totalorder %s98, %s101
      %p110 = scmp.eq.s32.totalorder %s46, 1
      %p111 = por %p109, %p110
      %p112 = scmp.ne.s32.totalorder %s101, %s102
      %p113 = scmp.eq.s32.totalorder %s46, 0
      %p114 = por %p112, %p113
      %p115 = scmp.ne.s32.totalorder %s101, %s102
      %p116 = scmp.eq.s32.totalorder %s47, 1
      %p117 = por %p115, %p116
      %p119 = scmp.ne.s32.totalorder %s102, %s118
      %p120 = scmp.eq.s32.totalorder %s47, 0
      %p121 = por %p119, %p120
      %s123 = sadd.s32 %s122, 1
      %p126 = scmp.eq.s32.totalorder %s41, 1
      %p127 = scmp.ne.s32.totalorder %s122, %s124
      %p128 = scmp.eq.s32.totalorder %s41, 0
      %p129 = por %p127, %p128
      %p130 = scmp.ne.s32.totalorder %s122, %s124
      %p131 = scmp.eq.s32.totalorder %s46, 1
      %p132 = por %p130, %p131
      %p133 = scmp.ne.s32.totalorder %s124, %s125
      %p134 = scmp.eq.s32.totalorder %s46, 0
      %p135 = por %p133, %p134
      %p136 = scmp.ne.s32.totalorder %s124, %s125
      %p137 = scmp.eq.s32.totalorder %s47, 1
      %p138 = por %p136, %p137
      %p140 = scmp.ne.s32.totalorder %s125, %s139
      %p141 = scmp.eq.s32.totalorder %s47, 0
      %p142 = por %p140, %p141
      %s144 = sadd.s32 %s143, 1
      %p147 = scmp.eq.s32.totalorder %s41, 1
      %p148 = scmp.ne.s32.totalorder %s143, %s145
      %p149 = scmp.eq.s32.totalorder %s41, 0
      %p150 = por %p148, %p149
      %p151 = scmp.ne.s32.totalorder %s143, %s145
      %p152 = scmp.eq.s32.totalorder %s46, 1
      %p153 = por %p151, %p152
      %p154 = scmp.ne.s32.totalorder %s145, %s146
      %p155 = scmp.eq.s32.totalorder %s46, 0
      %p156 = por %p154, %p155
      %p157 = scmp.ne.s32.totalorder %s145, %s146
      %p158 = scmp.eq.s32.totalorder %s47, 1
      %p159 = por %p157, %p158
      %p161 = scmp.ne.s32.totalorder %s146, %s160
      %p162 = scmp.eq.s32.totalorder %s47, 0
      %p163 = por %p161, %p162
      %s165 = sadd.s32 %s164, 1
      %p168 = scmp.eq.s32.totalorder %s41, 1
      %p169 = scmp.ne.s32.totalorder %s164, %s166
      %p170 = scmp.eq.s32.totalorder %s41, 0
      %p171 = por %p169, %p170
      %p172 = scmp.ne.s32.totalorder %s164, %s166
      %p173 = scmp.eq.s32.totalorder %s46, 1
      %p174 = por %p172, %p173
      %p175 = scmp.ne.s32.totalorder %s166, %s167
      %p176 = scmp.eq.s32.totalorder %s46, 0
      %p177 = por %p175, %p176
      %p178 = scmp.ne.s32.totalorder %s166, %s167
      %p179 = scmp.eq.s32.totalorder %s47, 1
      %p180 = por %p178, %p179
      %p182 = scmp.ne.s32.totalorder %s167, %s181
      %p183 = scmp.eq.s32.totalorder %s47, 0
      %p184 = por %p182, %p183
      %s186 = sadd.s32 %s185, 1
      %p189 = scmp.eq.s32.totalorder %s41, 1
      %p190 = scmp.ne.s32.totalorder %s185, %s187
      %p191 = scmp.eq.s32.totalorder %s41, 0
      %p192 = por %p190, %p191
      %p193 = scmp.ne.s32.totalorder %s185, %s187
      %p194 = scmp.eq.s32.totalorder %s46, 1
      %p195 = por %p193, %p194
      %p196 = scmp.ne.s32.totalorder %s187, %s188
      %p197 = scmp.eq.s32.totalorder %s46, 0
      %p198 = por %p196, %p197
      %p199 = scmp.ne.s32.totalorder %s187, %s188
      %p200 = scmp.eq.s32.totalorder %s47, 1
      %p201 = por %p199, %p200
      %p203 = scmp.ne.s32.totalorder %s188, %s202
      %p204 = scmp.eq.s32.totalorder %s47, 0
      %p205 = por %p203, %p204
      %s207 = sadd.s32 %s206, 1
      %p210 = scmp.eq.s32.totalorder %s41, 1
      %p211 = scmp.ne.s32.totalorder %s206, %s208
      %p212 = scmp.eq.s32.totalorder %s41, 0
      %p213 = por %p211, %p212
      %p214 = scmp.ne.s32.totalorder %s206, %s208
      %p215 = scmp.eq.s32.totalorder %s46, 1
      %p216 = por %p214, %p215
      %p217 = scmp.ne.s32.totalorder %s208, %s209
      %p218 = scmp.eq.s32.totalorder %s46, 0
      %p219 = por %p217, %p218
      %p220 = scmp.ne.s32.totalorder %s208, %s209
      %p221 = scmp.eq.s32.totalorder %s47, 1
      %p222 = por %p220, %p221
      %p224 = scmp.ne.s32.totalorder %s209, %s223
      %p225 = scmp.eq.s32.totalorder %s47, 0
      %p226 = por %p224, %p225
      %s228 = sadd.s32 %s227, 1
      %p231 = scmp.eq.s32.totalorder %s41, 1
      %p232 = scmp.ne.s32.totalorder %s227, %s229
      %p233 = scmp.eq.s32.totalorder %s41, 0
      %p234 = por %p232, %p233
      %p235 = scmp.ne.s32.totalorder %s227, %s229
      %p236 = scmp.eq.s32.totalorder %s46, 1
      %p237 = por %p235, %p236
      %p238 = scmp.ne.s32.totalorder %s229, %s230
      %p239 = scmp.eq.s32.totalorder %s46, 0
      %p240 = por %p238, %p239
      %p241 = scmp.ne.s32.totalorder %s229, %s230
      %p242 = scmp.eq.s32.totalorder %s47, 1
      %p243 = por %p241, %p242
      %p245 = scmp.ne.s32.totalorder %s230, %s244
      %p246 = scmp.eq.s32.totalorder %s47, 0
      %p247 = por %p245, %p246
      %s249 = sadd.s32 %s248, 1
      %p252 = scmp.eq.s32.totalorder %s41, 1
      %p253 = scmp.ne.s32.totalorder %s248, %s250
      %p254 = scmp.eq.s32.totalorder %s41, 0
      %p255 = por %p253, %p254
      %p256 = scmp.ne.s32.totalorder %s248, %s250
      %p257 = scmp.eq.s32.totalorder %s46, 1
      %p258 = por %p256, %p257
      %p259 = scmp.ne.s32.totalorder %s250, %s251
      %p260 = scmp.eq.s32.totalorder %s46, 0
      %p261 = por %p259, %p260
      %p262 = scmp.ne.s32.totalorder %s250, %s251
      %p263 = scmp.eq.s32.totalorder %s47, 1
      %p264 = por %p262, %p263
      %p266 = scmp.ne.s32.totalorder %s251, %s265
      %p267 = scmp.eq.s32.totalorder %s47, 0
      %p268 = por %p266, %p267
      %s270 = sadd.s32 %s269, 1
      %p273 = scmp.eq.s32.totalorder %s41, 1
      %p274 = scmp.ne.s32.totalorder %s269, %s271
      %p275 = scmp.eq.s32.totalorder %s41, 0
      %p276 = por %p274, %p275
      %p277 = scmp.ne.s32.totalorder %s269, %s271
      %p278 = scmp.eq.s32.totalorder %s46, 1
      %p279 = por %p277, %p278
      %p280 = scmp.ne.s32.totalorder %s271, %s272
      %p281 = scmp.eq.s32.totalorder %s46, 0
      %p282 = por %p280, %p281
      %p283 = scmp.ne.s32.totalorder %s271, %s272
      %p284 = scmp.eq.s32.totalorder %s47, 1
      %p285 = por %p283, %p284
      %p287 = scmp.ne.s32.totalorder %s272, %s286
      %p288 = scmp.eq.s32.totalorder %s47, 0
      %p289 = por %p287, %p288
      %s291 = sadd.s32 %s290, 1
      %p294 = scmp.eq.s32.totalorder %s41, 1
      %p295 = scmp.ne.s32.totalorder %s290, %s292
      %p296 = scmp.eq.s32.totalorder %s41, 0
      %p297 = por %p295, %p296
      %p298 = scmp.ne.s32.totalorder %s290, %s292
      %p299 = scmp.eq.s32.totalorder %s46, 1
      %p300 = por %p298, %p299
      %p301 = scmp.ne.s32.totalorder %s292, %s293
      %p302 = scmp.eq.s32.totalorder %s46, 0
      %p303 = por %p301, %p302
      %p304 = scmp.ne.s32.totalorder %s292, %s293
      %p305 = scmp.eq.s32.totalorder %s47, 1
      %p306 = por %p304, %p305
      %p308 = scmp.ne.s32.totalorder %s293, %s307
      %p309 = scmp.eq.s32.totalorder %s47, 0
      %p310 = por %p308, %p309
      %s312 = sadd.s32 %s311, 1
      %p315 = scmp.eq.s32.totalorder %s41, 1
      %p316 = scmp.ne.s32.totalorder %s311, %s313
      %p317 = scmp.eq.s32.totalorder %s41, 0
      %p318 = por %p316, %p317
      %p319 = scmp.ne.s32.totalorder %s311, %s313
      %p320 = scmp.eq.s32.totalorder %s46, 1
      %p321 = por %p319, %p320
      %p322 = scmp.ne.s32.totalorder %s313, %s314
      %p323 = scmp.eq.s32.totalorder %s46, 0
      %p324 = por %p322, %p323
      %p325 = scmp.ne.s32.totalorder %s313, %s314
      %p326 = scmp.eq.s32.totalorder %s47, 1
      %p327 = por %p325, %p326
      %p329 = scmp.ne.s32.totalorder %s314, %s328
      %p330 = scmp.eq.s32.totalorder %s47, 0
      %p331 = por %p329, %p330
      %s333 = sadd.s32 %s332, 1
      %p336 = scmp.eq.s32.totalorder %s41, 1
      %p337 = scmp.ne.s32.totalorder %s332, %s334
      %p338 = scmp.eq.s32.totalorder %s41, 0
      %p339 = por %p337, %p338
      %p340 = scmp.ne.s32.totalorder %s332, %s334
      %p341 = scmp.eq.s32.totalorder %s46, 1
      %p342 = por %p340, %p341
      %p343 = scmp.ne.s32.totalorder %s334, %s335
      %p344 = scmp.eq.s32.totalorder %s46, 0
      %p345 = por %p343, %p344
      %p346 = scmp.ne.s32.totalorder %s334, %s335
      %p347 = scmp.eq.s32.totalorder %s47, 1
      %p348 = por %p346, %p347
      %p350 = scmp.ne.s32.totalorder %s335, %s349
      %p351 = scmp.eq.s32.totalorder %s47, 0
      %p352 = por %p350, %p351
      %s354 = sadd.s32 %s353, 1
      %p357 = scmp.eq.s32.totalorder %s41, 1
      %p358 = scmp.ne.s32.totalorder %s353, %s355
      %p359 = scmp.eq.s32.totalorder %s41, 0
      %p360 = por %p358, %p359
      %p361 = scmp.ne.s32.totalorder %s353, %s355
      %p362 = scmp.eq.s32.totalorder %s46, 1
      %p363 = por %p361, %p362
      %p364 = scmp.ne.s32.totalorder %s355, %s356
      %p365 = scmp.eq.s32.totalorder %s46, 0
      %p366 = por %p364, %p365
      %p367 = scmp.ne.s32.totalorder %s355, %s356
      %p368 = scmp.eq.s32.totalorder %s47, 1
      %p369 = por %p367, %p368
      %p371 = scmp.ne.s32.totalorder %s356, %s370
      %p372 = scmp.eq.s32.totalorder %s47, 0
      %p373 = por %p371, %p372
      %s375 = sadd.s32 %s374, 1
      %p378 = scmp.eq.s32.totalorder %s41, 1
      %p379 = scmp.ne.s32.totalorder %s374, %s376
      %p380 = scmp.eq.s32.totalorder %s41, 0
      %p381 = por %p379, %p380
      %p382 = scmp.ne.s32.totalorder %s374, %s376
      %p383 = scmp.eq.s32.totalorder %s46, 1
      %p384 = por %p382, %p383
      %p385 = scmp.ne.s32.totalorder %s376, %s377
      %p386 = scmp.eq.s32.totalorder %s46, 0
      %p387 = por %p385, %p386
      %p388 = scmp.ne.s32.totalorder %s376, %s377
      %p389 = scmp.eq.s32.totalorder %s47, 1
      %p390 = por %p388, %p389
      %p392 = scmp.ne.s32.totalorder %s377, %s391
      %p393 = scmp.eq.s32.totalorder %s47, 0
      %p394 = por %p392, %p393
      %s396 = sadd.s32 %s395, 1
      %p399 = scmp.eq.s32.totalorder %s41, 1
      %p400 = scmp.ne.s32.totalorder %s395, %s397
      %p401 = scmp.eq.s32.totalorder %s41, 0
      %p402 = por %p400, %p401
      %p403 = scmp.ne.s32.totalorder %s395, %s397
      %p404 = scmp.eq.s32.totalorder %s46, 1
      %p405 = por %p403, %p404
      %p406 = scmp.ne.s32.totalorder %s397, %s398
      %p407 = scmp.eq.s32.totalorder %s46, 0
      %p408 = por %p406, %p407
      %p409 = scmp.ne.s32.totalorder %s397, %s398
      %p410 = scmp.eq.s32.totalorder %s47, 1
      %p411 = por %p409, %p410
      %p413 = scmp.ne.s32.totalorder %s398, %s412
      %p414 = scmp.eq.s32.totalorder %s47, 0
      %p415 = por %p413, %p414
      %s417 = sadd.s32 %s416, 1
      %p420 = scmp.eq.s32.totalorder %s41, 1
      %p421 = scmp.ne.s32.totalorder %s416, %s418
      %p422 = scmp.eq.s32.totalorder %s41, 0
      %p423 = por %p421, %p422
      %p424 = scmp.ne.s32.totalorder %s416, %s418
      %p425 = scmp.eq.s32.totalorder %s46, 1
      %p426 = por %p424, %p425
      %p427 = scmp.ne.s32.totalorder %s418, %s419
      %p428 = scmp.eq.s32.totalorder %s46, 0
      %p429 = por %p427, %p428
      %p430 = scmp.ne.s32.totalorder %s418, %s419
      %p431 = scmp.eq.s32.totalorder %s47, 1
      %p432 = por %p430, %p431
      %p434 = scmp.ne.s32.totalorder %s419, %s433
      %p435 = scmp.eq.s32.totalorder %s47, 0
      %p436 = por %p434, %p435
      %s438 = sadd.s32 %s437, 1
      %p441 = scmp.eq.s32.totalorder %s41, 1
      %p442 = scmp.ne.s32.totalorder %s437, %s439
      %p443 = scmp.eq.s32.totalorder %s41, 0
      %p444 = por %p442, %p443
      %p445 = scmp.ne.s32.totalorder %s437, %s439
      %p446 = scmp.eq.s32.totalorder %s46, 1
      %p447 = por %p445, %p446
      %p448 = scmp.ne.s32.totalorder %s439, %s440
      %p449 = scmp.eq.s32.totalorder %s46, 0
      %p450 = por %p448, %p449
      %p451 = scmp.ne.s32.totalorder %s439, %s440
      %p452 = scmp.eq.s32.totalorder %s47, 1
      %p453 = por %p451, %p452
      %p455 = scmp.ne.s32.totalorder %s440, %s454
      %p456 = scmp.eq.s32.totalorder %s47, 0
      %p457 = por %p455, %p456
      %s459 = sadd.s32 %s458, 1
      %p462 = scmp.eq.s32.totalorder %s41, 1
      %p463 = scmp.ne.s32.totalorder %s458, %s460
      %p464 = scmp.eq.s32.totalorder %s41, 0
      %p465 = por %p463, %p464
      %p466 = scmp.ne.s32.totalorder %s458, %s460
      %p467 = scmp.eq.s32.totalorder %s46, 1
      %p468 = por %p466, %p467
      %p469 = scmp.ne.s32.totalorder %s460, %s461
      %p470 = scmp.eq.s32.totalorder %s46, 0
      %p471 = por %p469, %p470
      %p472 = scmp.ne.s32.totalorder %s460, %s461
      %p473 = scmp.eq.s32.totalorder %s47, 1
      %p474 = por %p472, %p473
      %p476 = scmp.ne.s32.totalorder %s461, %s475
      %p477 = scmp.eq.s32.totalorder %s47, 0
      %p478 = por %p476, %p477
      %s480 = sadd.s32 %s479, 1
      %p483 = scmp.eq.s32.totalorder %s41, 1
      %p484 = scmp.ne.s32.totalorder %s479, %s481
      %p485 = scmp.eq.s32.totalorder %s41, 0
      %p486 = por %p484, %p485
      %p487 = scmp.ne.s32.totalorder %s479, %s481
      %p488 = scmp.eq.s32.totalorder %s46, 1
      %p489 = por %p487, %p488
      %p490 = scmp.ne.s32.totalorder %s481, %s482
      %p491 = scmp.eq.s32.totalorder %s46, 0
      %p492 = por %p490, %p491
      %p493 = scmp.ne.s32.totalorder %s481, %s482
      %p494 = scmp.eq.s32.totalorder %s47, 1
      %p495 = por %p493, %p494
      %p497 = scmp.ne.s32.totalorder %s482, %s496
      %p498 = scmp.eq.s32.totalorder %s47, 0
      %p499 = por %p497, %p498
      %s501 = sadd.s32 %s500, 1
      %p504 = scmp.eq.s32.totalorder %s41, 1
      %p505 = scmp.ne.s32.totalorder %s500, %s502
      %p506 = scmp.eq.s32.totalorder %s41, 0
      %p507 = por %p505, %p506
      %p508 = scmp.ne.s32.totalorder %s500, %s502
      %p509 = scmp.eq.s32.totalorder %s46, 1
      %p510 = por %p508, %p509
      %p511 = scmp.ne.s32.totalorder %s502, %s503
      %p512 = scmp.eq.s32.totalorder %s46, 0
      %p513 = por %p511, %p512
      %p514 = scmp.ne.s32.totalorder %s502, %s503
      %p515 = scmp.eq.s32.totalorder %s47, 1
      %p516 = por %p514, %p515
      %p518 = scmp.ne.s32.totalorder %s503, %s517
      %p519 = scmp.eq.s32.totalorder %s47, 0
      %p520 = por %p518, %p519
      %s522 = sadd.s32 %s521, 1
      %p525 = scmp.eq.s32.totalorder %s41, 1
      %p526 = scmp.ne.s32.totalorder %s521, %s523
      %p527 = scmp.eq.s32.totalorder %s41, 0
      %p528 = por %p526, %p527
      %p529 = scmp.ne.s32.totalorder %s521, %s523
      %p530 = scmp.eq.s32.totalorder %s46, 1
      %p531 = por %p529, %p530
      %p532 = scmp.ne.s32.totalorder %s523, %s524
      %p533 = scmp.eq.s32.totalorder %s46, 0
      %p534 = por %p532, %p533
      %p535 = scmp.ne.s32.totalorder %s523, %s524
      %p536 = scmp.eq.s32.totalorder %s47, 1
      %p537 = por %p535, %p536
      %p539 = scmp.ne.s32.totalorder %s524, %s538
      %p540 = scmp.eq.s32.totalorder %s47, 0
      %p541 = por %p539, %p540
      %s542 = ssub.s32 %s41, %s48
      %p543 = scmp.eq.s32.totalorder %s542, 0
      %s545 = sadd.s32 %s544, 1
      %s546 = scalar_select %p543, %s544, %s545
      %p549 = pneg %p543
      %p550 = scmp.eq.s32.totalorder %s41, 1
      %p551 = por %p549, %p550
      %p552 = scmp.ne.s32.totalorder %s544, %s547
      %p553 = scmp.eq.s32.totalorder %s41, 0
      %p554 = por %p552, %p553
      %p555 = scmp.ne.s32.totalorder %s544, %s547
      %p556 = scmp.eq.s32.totalorder %s46, 1
      %p557 = por %p555, %p556
      %p558 = scmp.ne.s32.totalorder %s547, %s548
      %p559 = scmp.eq.s32.totalorder %s46, 0
      %p560 = por %p558, %p559
      %p561 = scmp.ne.s32.totalorder %s547, %s548
      %p562 = scmp.eq.s32.totalorder %s47, 1
      %p563 = por %p561, %p562
      %p565 = scmp.ne.s32.totalorder %s548, %s564
      %p566 = scmp.eq.s32.totalorder %s47, 0
      %p567 = por %p565, %p566
      %p568 = scmp.le.s32.totalorder 1, %s41
      %p569 = scmp.lt.s32.totalorder %s41, 3
      %p570 = pnand %p568, %p569
      %p571 = pneg %p570
      // Predicated region
      $region9: #{tpu_custom_call.1} parent=5 // pred_check
        _
      $region10: #{tpu_custom_call.1} parent=5 // pred_check_branch
        %573 = sbr.rel (%p570) target = $region12
      $region11: #{tpu_custom_call.1} parent=5 // pred_region
        %s574 = ssub.s32 %s41, 1
        // Predicated region
        $region13: #{tpu_custom_call.1} parent=11 // pred_check
          %p575 = pneg %p88
        $region14: #{tpu_custom_call.1} parent=11 // pred_check_branch
          %577 = sbr.rel (%p575) target = $region16
        $region15: #{tpu_custom_call.1} parent=11 // pred_region
          %s579 = ssub.s32 128, 128
          %580 = vsyncadd [#allocation6], %s579
          %s582 = sshll.u32 [#allocation5], 4
          %s583 = int_to_ptr.vmem [resolvable:$true] %s582
          %585 = dma.hbm_to_vmem [thread:$0]  %s1, 128, %s583, [#allocation6]
        $region16: #{tpu_custom_call.1} parent=11 // pred_fallthru
          _
        // Predicated region
        $region17: #{tpu_custom_call.1} parent=11 // pred_check
          %p586 = pneg %p135
        $region18: #{tpu_custom_call.1} parent=11 // pred_check_branch
          %588 = sbr.rel (%p586) target = $region20
        $region19: #{tpu_custom_call.1} parent=11 // pred_region
          _
        $region20: #{tpu_custom_call.1} parent=11 // pred_fallthru
          _
        // Predicated region
        $region21: #{tpu_custom_call.1} parent=11 // pred_check
          %p589 = pneg %p156
        $region22: #{tpu_custom_call.1} parent=11 // pred_check_branch
          %591 = sbr.rel (%p589) target = $region24
        $region23: #{tpu_custom_call.1} parent=11 // pred_region
          %s593 = ssub.s32 32, 32
          %594 = vsyncadd [#allocation6], %s593
          %s595 = sshll.u32 [#allocation8], 4
          %s596 = int_to_ptr.vmem [resolvable:$true] %s595
          %601 = dma.hbm_to_vmem [thread:$0]  %s4, 32, %s596, [#allocation6], 16, 16, 1
        $region24: #{tpu_custom_call.1} parent=11 // pred_fallthru
          _
        // Predicated region
        $region25: #{tpu_custom_call.1} parent=11 // pred_check
          %p602 = pneg %p177
        $region26: #{tpu_custom_call.1} parent=11 // pred_check_branch
          %604 = sbr.rel (%p602) target = $region28
        $region27: #{tpu_custom_call.1} parent=11 // pred_region
          _
        $region28: #{tpu_custom_call.1} parent=11 // pred_fallthru
          _
        // Predicated region
        $region29: #{tpu_custom_call.1} parent=11 // pred_check
          %p605 = pneg %p198
        $region30: #{tpu_custom_call.1} parent=11 // pred_check_branch
          %607 = sbr.rel (%p605) target = $region32
        $region31: #{tpu_custom_call.1} parent=11 // pred_region
          %s609 = ssub.s32 32, 32
          %610 = vsyncadd [#allocation10], %s609
          %s611 = sshll.u32 [#allocation9], 4
          %s612 = int_to_ptr.vmem [resolvable:$true] %s611
          %617 = dma.hbm_to_vmem [thread:$0]  %s6, 32, %s612, [#allocation10], 16, 16, 1
        $region32: #{tpu_custom_call.1} parent=11 // pred_fallthru
          _
        // Predicated region
        $region33: #{tpu_custom_call.1} parent=11 // pred_check
          %p618 = pneg %p219
        $region34: #{tpu_custom_call.1} parent=11 // pred_check_branch
          %620 = sbr.rel (%p618) target = $region36
        $region35: #{tpu_custom_call.1} parent=11 // pred_region
          _
        $region36: #{tpu_custom_call.1} parent=11 // pred_fallthru
          _
        // Predicated region
        $region37: #{tpu_custom_call.1} parent=11 // pred_check
          %p621 = pneg %p240
        $region38: #{tpu_custom_call.1} parent=11 // pred_check_branch
          %623 = sbr.rel (%p621) target = $region40
        $region39: #{tpu_custom_call.1} parent=11 // pred_region
          %s625 = ssub.s32 32, 32
          %626 = vsyncadd [#allocation10], %s625
          %s627 = sshll.u32 [#allocation11], 4
          %s628 = int_to_ptr.vmem [resolvable:$true] %s627
          %633 = dma.hbm_to_vmem [thread:$0]  %s8, 32, %s628, [#allocation10], 16, 16, 1
        $region40: #{tpu_custom_call.1} parent=11 // pred_fallthru
          _
        // Predicated region
        $region41: #{tpu_custom_call.1} parent=11 // pred_check
          %p634 = pneg %p261
        $region42: #{tpu_custom_call.1} parent=11 // pred_check_branch
          %636 = sbr.rel (%p634) target = $region44
        $region43: #{tpu_custom_call.1} parent=11 // pred_region
          %s638 = ssub.s32 1024, 1024
          %639 = vsyncadd [#allocation13], %s638
          %s640 = sshll.u32 [#allocation12], 4
          %s641 = int_to_ptr.vmem [resolvable:$true] %s640
          %646 = dma.hbm_to_vmem [thread:$0]  %s9, 1024, %s641, [#allocation13], 128, 128, 8
        $region44: #{tpu_custom_call.1} parent=11 // pred_fallthru
          _
        // Predicated region
        $region45: #{tpu_custom_call.1} parent=11 // pred_check
          %p647 = pneg %p282
        $region46: #{tpu_custom_call.1} parent=11 // pred_check_branch
          %649 = sbr.rel (%p647) target = $region48
        $region47: #{tpu_custom_call.1} parent=11 // pred_region
          %s651 = ssub.s32 32, 32
          %652 = vsyncadd [#allocation13], %s651
          %s653 = sshll.u32 [#allocation14], 4
          %s654 = int_to_ptr.vmem [resolvable:$true] %s653
          %659 = dma.hbm_to_vmem [thread:$0]  %s10, 32, %s654, [#allocation13], 16, 16, 1
        $region48: #{tpu_custom_call.1} parent=11 // pred_fallthru
          _
        // Predicated region
        $region49: #{tpu_custom_call.1} parent=11 // pred_check
          %p660 = pneg %p303
        $region50: #{tpu_custom_call.1} parent=11 // pred_check_branch
          %662 = sbr.rel (%p660) target = $region52
        $region51: #{tpu_custom_call.1} parent=11 // pred_region
          %s664 = ssub.s32 32, 32
          %665 = vsyncadd [#allocation16], %s664
          %s666 = sshll.u32 [#allocation15], 4
          %s667 = int_to_ptr.vmem [resolvable:$true] %s666
          %672 = dma.hbm_to_vmem [thread:$0]  %s11, 32, %s667, [#allocation16], 16, 16, 1
        $region52: #{tpu_custom_call.1} parent=11 // pred_fallthru
          _
        // Predicated region
        $region53: #{tpu_custom_call.1} parent=11 // pred_check
          %p673 = pneg %p324
        $region54: #{tpu_custom_call.1} parent=11 // pred_check_branch
          %675 = sbr.rel (%p673) target = $region56
        $region55: #{tpu_custom_call.1} parent=11 // pred_region
          %s677 = ssub.s32 32, 32
          %678 = vsyncadd [#allocation16], %s677
          %s679 = sshll.u32 [#allocation17], 4
          %s680 = int_to_ptr.vmem [resolvable:$true] %s679
          %685 = dma.hbm_to_vmem [thread:$0]  %s12, 32, %s680, [#allocation16], 16, 16, 1
        $region56: #{tpu_custom_call.1} parent=11 // pred_fallthru
          _
        // Predicated region
        $region57: #{tpu_custom_call.1} parent=11 // pred_check
          %p686 = pneg %p345
        $region58: #{tpu_custom_call.1} parent=11 // pred_check_branch
          %688 = sbr.rel (%p686) target = $region60
        $region59: #{tpu_custom_call.1} parent=11 // pred_region
          %s690 = ssub.s32 1024, 1024
          %691 = vsyncadd [#allocation19], %s690
          %s692 = sshll.u32 [#allocation18], 4
          %s693 = int_to_ptr.vmem [resolvable:$true] %s692
          %698 = dma.hbm_to_vmem [thread:$0]  %s13, 1024, %s693, [#allocation19], 128, 128, 8
        $region60: #{tpu_custom_call.1} parent=11 // pred_fallthru
          _
        // Predicated region
        $region61: #{tpu_custom_call.1} parent=11 // pred_check
          %p699 = pneg %p366
        $region62: #{tpu_custom_call.1} parent=11 // pred_check_branch
          %701 = sbr.rel (%p699) target = $region64
        $region63: #{tpu_custom_call.1} parent=11 // pred_region
          %s703 = ssub.s32 32, 32
          %704 = vsyncadd [#allocation19], %s703
          %s705 = sshll.u32 [#allocation20], 4
          %s706 = int_to_ptr.vmem [resolvable:$true] %s705
          %711 = dma.hbm_to_vmem [thread:$0]  %s14, 32, %s706, [#allocation19], 16, 16, 1
        $region64: #{tpu_custom_call.1} parent=11 // pred_fallthru
          _
        // Predicated region
        $region65: #{tpu_custom_call.1} parent=11 // pred_check
          %p712 = pneg %p387
        $region66: #{tpu_custom_call.1} parent=11 // pred_check_branch
          %714 = sbr.rel (%p712) target = $region68
        $region67: #{tpu_custom_call.1} parent=11 // pred_region
          _
        $region68: #{tpu_custom_call.1} parent=11 // pred_fallthru
          _
        // Predicated region
        $region69: #{tpu_custom_call.1} parent=11 // pred_check
          %p715 = pneg %p408
        $region70: #{tpu_custom_call.1} parent=11 // pred_check_branch
          %717 = sbr.rel (%p715) target = $region72
        $region71: #{tpu_custom_call.1} parent=11 // pred_region
          %s719 = ssub.s32 32, 32
          %720 = vsyncadd [#allocation22], %s719
          %s721 = sshll.u32 [#allocation21], 4
          %s722 = int_to_ptr.vmem [resolvable:$true] %s721
          %727 = dma.hbm_to_vmem [thread:$0]  %s16, 32, %s722, [#allocation22], 16, 16, 1
        $region72: #{tpu_custom_call.1} parent=11 // pred_fallthru
          _
        // Predicated region
        $region73: #{tpu_custom_call.1} parent=11 // pred_check
          %p728 = pneg %p429
        $region74: #{tpu_custom_call.1} parent=11 // pred_check_branch
          %730 = sbr.rel (%p728) target = $region76
        $region75: #{tpu_custom_call.1} parent=11 // pred_region
          %s732 = ssub.s32 32, 32
          %733 = vsyncadd [#allocation22], %s732
          %s734 = sshll.u32 [#allocation23], 4
          %s735 = int_to_ptr.vmem [resolvable:$true] %s734
          %740 = dma.hbm_to_vmem [thread:$0]  %s17, 32, %s735, [#allocation22], 16, 16, 1
        $region76: #{tpu_custom_call.1} parent=11 // pred_fallthru
          _
        // Predicated region
        $region77: #{tpu_custom_call.1} parent=11 // pred_check
          %p741 = pneg %p450
        $region78: #{tpu_custom_call.1} parent=11 // pred_check_branch
          %743 = sbr.rel (%p741) target = $region80
        $region79: #{tpu_custom_call.1} parent=11 // pred_region
          _
        $region80: #{tpu_custom_call.1} parent=11 // pred_fallthru
          _
        // Predicated region
        $region81: #{tpu_custom_call.1} parent=11 // pred_check
          %p744 = pneg %p471
        $region82: #{tpu_custom_call.1} parent=11 // pred_check_branch
          %746 = sbr.rel (%p744) target = $region84
        $region83: #{tpu_custom_call.1} parent=11 // pred_region
          _
        $region84: #{tpu_custom_call.1} parent=11 // pred_fallthru
          _
        // Predicated region
        $region85: #{tpu_custom_call.1} parent=11 // pred_check
          %p747 = pneg %p492
        $region86: #{tpu_custom_call.1} parent=11 // pred_check_branch
          %749 = sbr.rel (%p747) target = $region88
        $region87: #{tpu_custom_call.1} parent=11 // pred_region
          _
        $region88: #{tpu_custom_call.1} parent=11 // pred_fallthru
          _
        // Predicated region
        $region89: #{tpu_custom_call.1} parent=11 // pred_check
          %p750 = pneg %p513
        $region90: #{tpu_custom_call.1} parent=11 // pred_check_branch
          %752 = sbr.rel (%p750) target = $region92
        $region91: #{tpu_custom_call.1} parent=11 // pred_region
          _
        $region92: #{tpu_custom_call.1} parent=11 // pred_fallthru
          _
        // Predicated region
        $region93: #{tpu_custom_call.1} parent=11 // pred_check
          %p753 = pneg %p534
        $region94: #{tpu_custom_call.1} parent=11 // pred_check_branch
          %755 = sbr.rel (%p753) target = $region96
        $region95: #{tpu_custom_call.1} parent=11 // pred_region
          _
        $region96: #{tpu_custom_call.1} parent=11 // pred_fallthru
          _
      $region12: #{tpu_custom_call.1} parent=5 // pred_fallthru
        _
      %p756 = scmp.lt.s32.totalorder %s41, 2
      // Predicated region
      $region97: #{tpu_custom_call.1} parent=5 // pred_check
        %p757 = pneg %p756
      $region98: #{tpu_custom_call.1} parent=5 // pred_check_branch
        %759 = sbr.rel (%p757) target = $region100
      $region99: #{tpu_custom_call.1} parent=5 // pred_region
        // Predicated region
        $region101: #{tpu_custom_call.1} parent=99 // pred_check
          %p760 = pneg %p61
        $region102: #{tpu_custom_call.1} parent=99 // pred_check_branch
          %762 = sbr.rel (%p760) target = $region104
        $region103: #{tpu_custom_call.1} parent=99 // pred_region
          %s763 = sand.u32 %s41, 1
          %s764 = scalar_lea.sflag [#allocation3], %s763
          %s765 = sand.u32 %s51, 1
          %s766 = smul.addr %s765, 8
          %s767 = scalar_lea.vmem [#allocation2], %s766
          %s769 = ssub.s32 128, 128
          %770 = vsyncadd %s764, %s769
          %s771 = smul.addr %s41, 128
          %s772 = scalar_lea.hbm %s0, %s771
          %s774 = sshll.u32 %s767, 4
          %s775 = int_to_ptr.vmem [resolvable:$true] %s774
          %777 = dma.hbm_to_vmem [thread:$0]  %s772, 128, %s775, %s764
        $region104: #{tpu_custom_call.1} parent=99 // pred_fallthru
          _
        // Predicated region
        $region105: #{tpu_custom_call.1} parent=99 // pred_check
          %p778 = pneg %p108
        $region106: #{tpu_custom_call.1} parent=99 // pred_check_branch
          %780 = sbr.rel (%p778) target = $region108
        $region107: #{tpu_custom_call.1} parent=99 // pred_region
          %s781 = sand.u32 %s41, 1
          %s782 = scalar_lea.sflag [#allocation3], %s781
          %s783 = sand.u32 %s98, 1
          %s784 = scalar_lea.vmem [#allocation7], %s783
          %s786 = ssub.s32 16, 16
          %787 = vsyncadd %s782, %s786
          %s788 = smul.addr %s41, 16
          %s789 = scalar_lea.hbm %s2, %s788
          %s791 = sshll.u32 %s784, 4
          %s792 = int_to_ptr.vmem [resolvable:$true] %s791
          %794 = dma.hbm_to_vmem [thread:$0]  %s789, 16, %s792, %s782
        $region108: #{tpu_custom_call.1} parent=99 // pred_fallthru
          _
      $region100: #{tpu_custom_call.1} parent=5 // pred_fallthru
        _
      %p795 = scmp.le.s32.totalorder 1, %s41
      %p796 = scmp.lt.s32.totalorder %s41, 3
      %p797 = pnand %p795, %p796
      %p798 = pneg %p797
      // Predicated region
      $region109: #{tpu_custom_call.1} parent=5 // pred_check
        _
      $region110: #{tpu_custom_call.1} parent=5 // pred_check_branch
        %800 = sbr.rel (%p797) target = $region112
      $region111: #{tpu_custom_call.1} parent=5 // pred_region
        %s801 = ssub.s32 %s41, 1
        %s802 = sand.u32 %s46, 1
        %s803 = scalar_lea.sflag [#allocation3], %s802
        %s804 = sand.u32 %s54, 1
        %s805 = smul.addr %s804, 8
        %s806 = scalar_lea.vmem [#allocation2], %s805
        // Predicated region
        $region113: #{tpu_custom_call.1} parent=111 // pred_check
          %p807 = pneg %p67
        $region114: #{tpu_custom_call.1} parent=111 // pred_check_branch
          %809 = sbr.rel (%p807) target = $region116
        $region115: #{tpu_custom_call.1} parent=111 // pred_region
          %810 = dma.done %s803, 128
        $region116: #{tpu_custom_call.1} parent=111 // pred_fallthru
          _
        // Predicated region
        $region117: #{tpu_custom_call.1} parent=111 // pred_check
          %p811 = pneg %p88
        $region118: #{tpu_custom_call.1} parent=111 // pred_check_branch
          %813 = sbr.rel (%p811) target = $region120
        $region119: #{tpu_custom_call.1} parent=111 // pred_region
          %814 = dma.done [#allocation6], 128
        $region120: #{tpu_custom_call.1} parent=111 // pred_fallthru
          _
        %s815 = sand.u32 %s46, 1
        %s816 = scalar_lea.sflag [#allocation3], %s815
        %s817 = sand.u32 %s101, 1
        %s818 = scalar_lea.vmem [#allocation7], %s817
        // Predicated region
        $region121: #{tpu_custom_call.1} parent=111 // pred_check
          %p819 = pneg %p114
        $region122: #{tpu_custom_call.1} parent=111 // pred_check_branch
          %821 = sbr.rel (%p819) target = $region124
        $region123: #{tpu_custom_call.1} parent=111 // pred_region
          %822 = dma.done %s816, 16
        $region124: #{tpu_custom_call.1} parent=111 // pred_fallthru
          _
        // Predicated region
        $region125: #{tpu_custom_call.1} parent=111 // pred_check
          %p823 = pneg %p156
        $region126: #{tpu_custom_call.1} parent=111 // pred_check_branch
          %825 = sbr.rel (%p823) target = $region128
        $region127: #{tpu_custom_call.1} parent=111 // pred_region
          %826 = dma.done [#allocation6], 32
        $region128: #{tpu_custom_call.1} parent=111 // pred_fallthru
          _
        // Predicated region
        $region129: #{tpu_custom_call.1} parent=111 // pred_check
          %p827 = pneg %p198
        $region130: #{tpu_custom_call.1} parent=111 // pred_check_branch
          %829 = sbr.rel (%p827) target = $region132
        $region131: #{tpu_custom_call.1} parent=111 // pred_region
          %830 = dma.done [#allocation10], 32
        $region132: #{tpu_custom_call.1} parent=111 // pred_fallthru
          _
        // Predicated region
        $region133: #{tpu_custom_call.1} parent=111 // pred_check
          %p831 = pneg %p240
        $region134: #{tpu_custom_call.1} parent=111 // pred_check_branch
          %833 = sbr.rel (%p831) target = $region136
        $region135: #{tpu_custom_call.1} parent=111 // pred_region
          %834 = dma.done [#allocation10], 32
        $region136: #{tpu_custom_call.1} parent=111 // pred_fallthru
          _
        // Predicated region
        $region137: #{tpu_custom_call.1} parent=111 // pred_check
          %p835 = pneg %p261
        $region138: #{tpu_custom_call.1} parent=111 // pred_check_branch
          %837 = sbr.rel (%p835) target = $region140
        $region139: #{tpu_custom_call.1} parent=111 // pred_region
          %838 = dma.done [#allocation13], 1024
        $region140: #{tpu_custom_call.1} parent=111 // pred_fallthru
          _
        // Predicated region
        $region141: #{tpu_custom_call.1} parent=111 // pred_check
          %p839 = pneg %p282
        $region142: #{tpu_custom_call.1} parent=111 // pred_check_branch
          %841 = sbr.rel (%p839) target = $region144
        $region143: #{tpu_custom_call.1} parent=111 // pred_region
          %842 = dma.done [#allocation13], 32
        $region144: #{tpu_custom_call.1} parent=111 // pred_fallthru
          _
        // Predicated region
        $region145: #{tpu_custom_call.1} parent=111 // pred_check
          %p843 = pneg %p303
        $region146: #{tpu_custom_call.1} parent=111 // pred_check_branch
          %845 = sbr.rel (%p843) target = $region148
        $region147: #{tpu_custom_call.1} parent=111 // pred_region
          %846 = dma.done [#allocation16], 32
        $region148: #{tpu_custom_call.1} parent=111 // pred_fallthru
          _
        // Predicated region
        $region149: #{tpu_custom_call.1} parent=111 // pred_check
          %p847 = pneg %p324
        $region150: #{tpu_custom_call.1} parent=111 // pred_check_branch
          %849 = sbr.rel (%p847) target = $region152
        $region151: #{tpu_custom_call.1} parent=111 // pred_region
          %850 = dma.done [#allocation16], 32
        $region152: #{tpu_custom_call.1} parent=111 // pred_fallthru
          _
        // Predicated region
        $region153: #{tpu_custom_call.1} parent=111 // pred_check
          %p851 = pneg %p345
        $region154: #{tpu_custom_call.1} parent=111 // pred_check_branch
          %853 = sbr.rel (%p851) target = $region156
        $region155: #{tpu_custom_call.1} parent=111 // pred_region
          %854 = dma.done [#allocation19], 1024
        $region156: #{tpu_custom_call.1} parent=111 // pred_fallthru
          _
        // Predicated region
        $region157: #{tpu_custom_call.1} parent=111 // pred_check
          %p855 = pneg %p366
        $region158: #{tpu_custom_call.1} parent=111 // pred_check_branch
          %857 = sbr.rel (%p855) target = $region160
        $region159: #{tpu_custom_call.1} parent=111 // pred_region
          %858 = dma.done [#allocation19], 32
        $region160: #{tpu_custom_call.1} parent=111 // pred_fallthru
          _
        // Predicated region
        $region161: #{tpu_custom_call.1} parent=111 // pred_check
          %p859 = pneg %p408
        $region162: #{tpu_custom_call.1} parent=111 // pred_check_branch
          %861 = sbr.rel (%p859) target = $region164
        $region163: #{tpu_custom_call.1} parent=111 // pred_region
          %862 = dma.done [#allocation22], 32
        $region164: #{tpu_custom_call.1} parent=111 // pred_fallthru
          _
        // Predicated region
        $region165: #{tpu_custom_call.1} parent=111 // pred_check
          %p863 = pneg %p429
        $region166: #{tpu_custom_call.1} parent=111 // pred_check_branch
          %865 = sbr.rel (%p863) target = $region168
        $region167: #{tpu_custom_call.1} parent=111 // pred_region
          %866 = dma.done [#allocation22], 32
        $region168: #{tpu_custom_call.1} parent=111 // pred_fallthru
          _
        %s867 = sand.u32 %s46, 1
        %s868 = scalar_lea.sflag [#allocation3], %s867
        %s869 = sand.u32 %s54, 1
        %s870 = smul.addr %s869, 8
        %s871 = scalar_lea.vmem [#allocation2], %s870
        %p872 = pneg %p67
        %p873 = pneg %p64
        %p874 = pneg %p88
        %p875 = pneg %p85
        %s876 = sand.u32 %s46, 1
        %s877 = scalar_lea.sflag [#allocation3], %s876
        %s878 = sand.u32 %s101, 1
        %s879 = scalar_lea.vmem [#allocation7], %s878
        %p880 = pneg %p114
        %p881 = pneg %p111
        %p882 = pneg %p135
        %p883 = pneg %p132
        %p884 = pneg %p156
        %p885 = pneg %p153
        %p886 = pneg %p177
        %p887 = pneg %p174
        %p888 = pneg %p198
        %p889 = pneg %p195
        %p890 = pneg %p219
        %p891 = pneg %p216
        %p892 = pneg %p240
        %p893 = pneg %p237
        %p894 = pneg %p261
        %p895 = pneg %p258
        %p896 = pneg %p282
        %p897 = pneg %p279
        %p898 = pneg %p303
        %p899 = pneg %p300
        %p900 = pneg %p324
        %p901 = pneg %p321
        %p902 = pneg %p345
        %p903 = pneg %p342
        %p904 = pneg %p366
        %p905 = pneg %p363
        %p906 = pneg %p387
        %p907 = pneg %p384
        %p908 = pneg %p408
        %p909 = pneg %p405
        %p910 = pneg %p429
        %p911 = pneg %p426
        %p912 = pneg %p450
        %p913 = pneg %p447
        %p914 = pneg %p471
        %p915 = pneg %p468
        %p916 = pneg %p492
        %p917 = pneg %p489
        %p918 = pneg %p513
        %p919 = pneg %p510
        %p920 = pneg %p534
        %p921 = pneg %p531
        %p922 = pneg %p560
        %p923 = pneg %p557
        %s924 = sand.u32 %s547, 1
        %s925 = scalar_lea.sflag [#allocation4], %s924
        %s926 = sand.u32 %s547, 1
        %s927 = scalar_lea.vmem [#allocation24], %s926
        %v928 = vld [vmem:[%s806] sm:$0xff]
        %v929 = vmul.f32 %v928, 5.656854
        %v930 = vld [vmem:[#allocation5] sm:$0xff]
        %v931 = vadd.f32 %v929, %v930
        %v932 = vld [vmem:[%s818] sm:$0x1]
        %v933 = vmul.f32 %v932, -1e+09
        %v934 = vld [vmem:[%s3] sm:$0xff]
        %v935 = vld [vmem:[%s3 + $0x8] sm:$0xff]
        %v936 = vld [vmem:[%s3 + $0x10] sm:$0xff]
        %v937 = vld [vmem:[%s3 + $0x18] sm:$0xff]
        %v938 = vld [vmem:[#allocation8] sm:$0x1]
        %v940 = vlaneseq
        %v941 = vshrl.u32 %v940, 7
        %v942 = vsub.s32 0, %v941
        %v943 = vrot.slane %v938, %v942
        %vm945 = vcmask 261120
        %v947 = vsel %vm945, %v931, 0
        %949 = vmatprep.subr.mxu0 0.0
        %950 = vmatpush1.msra.mxu0 %v934
        %951 = vmatprep.subr.mxu0 0.0
        %952 = vmatpush1.msra.mxu0 %v935
        %953 = vmatprep.subr.mxu0 0.0
        %954 = vmatpush1.msra.mxu0 %v936
        %955 = vmatprep.subr.mxu0 0.0
        %956 = vmatpush1.msra.mxu0 %v937
        %957 = vmatprep.subr.mxu0 0.0
        %958 = vmatpush1.msra.mxu0 0.0
        %959 = vmatprep.subr.mxu0 0.0
        %960 = vmatpush1.msra.mxu0 0.0
        %961 = vmatprep.subr.mxu0 0.0
        %962 = vmatpush1.msra.mxu0 0.0
        %963 = vmatprep.subr.mxu0 0.0
        %964 = vmatpush1.msra.mxu0 0.0
        %965 = vmatprep.subr.mxu0 0.0
        %966 = vmatpush1.msra.mxu0 0.0
        %967 = vmatprep.subr.mxu0 0.0
        %968 = vmatpush1.msra.mxu0 0.0
        %969 = vmatprep.subr.mxu0 0.0
        %970 = vmatpush1.msra.mxu0 0.0
        %971 = vmatprep.subr.mxu0 0.0
        %972 = vmatpush1.msra.mxu0 0.0
        %973 = vmatprep.subr.mxu0 0.0
        %974 = vmatpush1.msra.mxu0 0.0
        %975 = vmatprep.subr.mxu0 0.0
        %976 = vmatpush1.msra.mxu0 0.0
        %977 = vmatprep.subr.mxu0 0.0
        %978 = vmatpush1.msra.mxu0 0.0
        %979 = vmatprep.subr.mxu0 0.0
        %980 = vmatpush1.msra.mxu0 0.0
        %981 = vmatprep.subr.mxu0 0.0
        %982 = vmatpush1.msra.mxu0 0.0
        %983 = vmatprep.subr.mxu0 0.0
        %984 = vmatpush1.msra.mxu0 0.0
        %985 = vmatprep.subr.mxu0 0.0
        %986 = vmatpush1.msra.mxu0 0.0
        %987 = vmatprep.subr.mxu0 0.0
        %988 = vmatpush1.msra.mxu0 0.0
        %989 = vmatprep.subr.mxu0 0.0
        %990 = vmatpush1.msra.mxu0 0.0
        %991 = vmatprep.subr.mxu0 0.0
        %992 = vmatpush1.msra.mxu0 0.0
        %993 = vmatprep.subr.mxu0 0.0
        %994 = vmatpush1.msra.mxu0 0.0
        %995 = vmatprep.subr.mxu0 0.0
        %996 = vmatpush1.msra.mxu0 0.0
        %997 = vmatprep.subr.mxu0 0.0
        %998 = vmatpush1.msra.mxu0 0.0
        %999 = vmatprep.subr.mxu0 0.0
        %1000 = vmatpush1.msra.mxu0 0.0
        %1001 = vmatprep.subr.mxu0 0.0
        %1002 = vmatpush1.msra.mxu0 0.0
        %1003 = vmatprep.subr.mxu0 0.0
        %1004 = vmatpush1.msra.mxu0 0.0
        %1005 = vmatprep.subr.mxu0 0.0
        %1006 = vmatpush1.msra.mxu0 0.0
        %1007 = vmatprep.subr.mxu0 0.0
        %1008 = vmatpush1.msra.mxu0 0.0
        %1009 = vmatprep.subr.mxu0 0.0
        %1010 = vmatpush1.msra.mxu0 0.0
        %1011 = vmatprep.subr.mxu0 0.0
        %1012 = vmatpush1.msra.mxu0 0.0
        %1013 = vmatprep.mubr.f32.mxu0 0.0
        %1014 = vmatmul.mubr.f32.gmra.mrb[0].mxu0 %v947
        %v1015 = vpop.f32.mrb[0].mxu0
        %v1016 = vadd.f32 %v943, %v1015
        %v1017 = vpop.f32.mrb[0].mxu0
        %1018 = vdwg.mxu0
        %v1019 = vld [vmem:[%s5] sm:$0xff]
        %v1020 = vld [vmem:[%s5 + $0x8] sm:$0xff]
        %v1021 = vld [vmem:[%s5 + $0x10] sm:$0xff]
        %v1022 = vld [vmem:[%s5 + $0x18] sm:$0xff]
        %v1023 = vld [vmem:[#allocation9] sm:$0x1]
        %v1025 = vlaneseq
        %v1026 = vshrl.u32 %v1025, 7
        %v1027 = vsub.s32 0, %v1026
        %v1028 = vrot.slane %v1023, %v1027
        %1030 = vmatprep.subr.mxu0 0.0
        %1031 = vmatpush1.msra.mxu0 %v1019
        %1032 = vmatprep.subr.mxu0 0.0
        %1033 = vmatpush1.msra.mxu0 %v1020
        %1034 = vmatprep.subr.mxu0 0.0
        %1035 = vmatpush1.msra.mxu0 %v1021
        %1036 = vmatprep.subr.mxu0 0.0
        %1037 = vmatpush1.msra.mxu0 %v1022
        %1038 = vmatprep.subr.mxu0 0.0
        %1039 = vmatpush1.msra.mxu0 0.0
        %1040 = vmatprep.subr.mxu0 0.0
        %1041 = vmatpush1.msra.mxu0 0.0
        %1042 = vmatprep.subr.mxu0 0.0
        %1043 = vmatpush1.msra.mxu0 0.0
        %1044 = vmatprep.subr.mxu0 0.0
        %1045 = vmatpush1.msra.mxu0 0.0
        %1046 = vmatprep.subr.mxu0 0.0
        %1047 = vmatpush1.msra.mxu0 0.0
        %1048 = vmatprep.subr.mxu0 0.0
        %1049 = vmatpush1.msra.mxu0 0.0
        %1050 = vmatprep.subr.mxu0 0.0
        %1051 = vmatpush1.msra.mxu0 0.0
        %1052 = vmatprep.subr.mxu0 0.0
        %1053 = vmatpush1.msra.mxu0 0.0
        %1054 = vmatprep.subr.mxu0 0.0
        %1055 = vmatpush1.msra.mxu0 0.0
        %1056 = vmatprep.subr.mxu0 0.0
        %1057 = vmatpush1.msra.mxu0 0.0
        %1058 = vmatprep.subr.mxu0 0.0
        %1059 = vmatpush1.msra.mxu0 0.0
        %1060 = vmatprep.subr.mxu0 0.0
        %1061 = vmatpush1.msra.mxu0 0.0
        %1062 = vmatprep.subr.mxu0 0.0
        %1063 = vmatpush1.msra.mxu0 0.0
        %1064 = vmatprep.subr.mxu0 0.0
        %1065 = vmatpush1.msra.mxu0 0.0
        %1066 = vmatprep.subr.mxu0 0.0
        %1067 = vmatpush1.msra.mxu0 0.0
        %1068 = vmatprep.subr.mxu0 0.0
        %1069 = vmatpush1.msra.mxu0 0.0
        %1070 = vmatprep.subr.mxu0 0.0
        %1071 = vmatpush1.msra.mxu0 0.0
        %1072 = vmatprep.subr.mxu0 0.0
        %1073 = vmatpush1.msra.mxu0 0.0
        %1074 = vmatprep.subr.mxu0 0.0
        %1075 = vmatpush1.msra.mxu0 0.0
        %1076 = vmatprep.subr.mxu0 0.0
        %1077 = vmatpush1.msra.mxu0 0.0
        %1078 = vmatprep.subr.mxu0 0.0
        %1079 = vmatpush1.msra.mxu0 0.0
        %1080 = vmatprep.subr.mxu0 0.0
        %1081 = vmatpush1.msra.mxu0 0.0
        %1082 = vmatprep.subr.mxu0 0.0
        %1083 = vmatpush1.msra.mxu0 0.0
        %1084 = vmatprep.subr.mxu0 0.0
        %1085 = vmatpush1.msra.mxu0 0.0
        %1086 = vmatprep.subr.mxu0 0.0
        %1087 = vmatpush1.msra.mxu0 0.0
        %1088 = vmatprep.subr.mxu0 0.0
        %1089 = vmatpush1.msra.mxu0 0.0
        %1090 = vmatprep.subr.mxu0 0.0
        %1091 = vmatpush1.msra.mxu0 0.0
        %1092 = vmatprep.subr.mxu0 0.0
        %1093 = vmatpush1.msra.mxu0 0.0
        %1094 = vmatprep.mubr.f32.mxu0 0.0
        %1095 = vmatmul.mubr.f32.gmra.mrb[0].mxu0 %v947
        %v1096 = vpop.f32.mrb[0].mxu0
        %v1097 = vadd.f32 %v1028, %v1096
        %v1098 = vpop.f32.mrb[0].mxu0
        %1099 = vdwg.mxu0
        %v1100 = vld [vmem:[%s7] sm:$0xff]
        %v1101 = vld [vmem:[%s7 + $0x8] sm:$0xff]
        %v1102 = vld [vmem:[%s7 + $0x10] sm:$0xff]
        %v1103 = vld [vmem:[%s7 + $0x18] sm:$0xff]
        %v1104 = vld [vmem:[#allocation11] sm:$0x1]
        %v1106 = vlaneseq
        %v1107 = vshrl.u32 %v1106, 7
        %v1108 = vsub.s32 0, %v1107
        %v1109 = vrot.slane %v1104, %v1108
        %1111 = vmatprep.subr.mxu0 0.0
        %1112 = vmatpush1.msra.mxu0 %v1100
        %1113 = vmatprep.subr.mxu0 0.0
        %1114 = vmatpush1.msra.mxu0 %v1101
        %1115 = vmatprep.subr.mxu0 0.0
        %1116 = vmatpush1.msra.mxu0 %v1102
        %1117 = vmatprep.subr.mxu0 0.0
        %1118 = vmatpush1.msra.mxu0 %v1103
        %1119 = vmatprep.subr.mxu0 0.0
        %1120 = vmatpush1.msra.mxu0 0.0
        %1121 = vmatprep.subr.mxu0 0.0
        %1122 = vmatpush1.msra.mxu0 0.0
        %1123 = vmatprep.subr.mxu0 0.0
        %1124 = vmatpush1.msra.mxu0 0.0
        %1125 = vmatprep.subr.mxu0 0.0
        %1126 = vmatpush1.msra.mxu0 0.0
        %1127 = vmatprep.subr.mxu0 0.0
        %1128 = vmatpush1.msra.mxu0 0.0
        %1129 = vmatprep.subr.mxu0 0.0
        %1130 = vmatpush1.msra.mxu0 0.0
        %1131 = vmatprep.subr.mxu0 0.0
        %1132 = vmatpush1.msra.mxu0 0.0
        %1133 = vmatprep.subr.mxu0 0.0
        %1134 = vmatpush1.msra.mxu0 0.0
        %1135 = vmatprep.subr.mxu0 0.0
        %1136 = vmatpush1.msra.mxu0 0.0
        %1137 = vmatprep.subr.mxu0 0.0
        %1138 = vmatpush1.msra.mxu0 0.0
        %1139 = vmatprep.subr.mxu0 0.0
        %1140 = vmatpush1.msra.mxu0 0.0
        %1141 = vmatprep.subr.mxu0 0.0
        %1142 = vmatpush1.msra.mxu0 0.0
        %1143 = vmatprep.subr.mxu0 0.0
        %1144 = vmatpush1.msra.mxu0 0.0
        %1145 = vmatprep.subr.mxu0 0.0
        %1146 = vmatpush1.msra.mxu0 0.0
        %1147 = vmatprep.subr.mxu0 0.0
        %1148 = vmatpush1.msra.mxu0 0.0
        %1149 = vmatprep.subr.mxu0 0.0
        %1150 = vmatpush1.msra.mxu0 0.0
        %1151 = vmatprep.subr.mxu0 0.0
        %1152 = vmatpush1.msra.mxu0 0.0
        %1153 = vmatprep.subr.mxu0 0.0
        %1154 = vmatpush1.msra.mxu0 0.0
        %1155 = vmatprep.subr.mxu0 0.0
        %1156 = vmatpush1.msra.mxu0 0.0
        %1157 = vmatprep.subr.mxu0 0.0
        %1158 = vmatpush1.msra.mxu0 0.0
        %1159 = vmatprep.subr.mxu0 0.0
        %1160 = vmatpush1.msra.mxu0 0.0
        %1161 = vmatprep.subr.mxu0 0.0
        %1162 = vmatpush1.msra.mxu0 0.0
        %1163 = vmatprep.subr.mxu0 0.0
        %1164 = vmatpush1.msra.mxu0 0.0
        %1165 = vmatprep.subr.mxu0 0.0
        %1166 = vmatpush1.msra.mxu0 0.0
        %1167 = vmatprep.subr.mxu0 0.0
        %1168 = vmatpush1.msra.mxu0 0.0
        %1169 = vmatprep.subr.mxu0 0.0
        %1170 = vmatpush1.msra.mxu0 0.0
        %1171 = vmatprep.subr.mxu0 0.0
        %1172 = vmatpush1.msra.mxu0 0.0
        %1173 = vmatprep.subr.mxu0 0.0
        %1174 = vmatpush1.msra.mxu0 0.0
        %1175 = vmatprep.mubr.f32.mxu0 0.0
        %1176 = vmatmul.mubr.f32.gmra.mrb[0].mxu0 %v947
        %v1177 = vpop.f32.mrb[0].mxu0
        %v1178 = vadd.f32 %v1109, %v1177
        %v1179 = vpop.f32.mrb[0].mxu0
        %1180 = vdwg.mxu0
        %1182 = vrot.lane.b32.xlu0 %v1016, 120
        %v1183 = vpop.permute.xlu0 %1182
        %1185 = vrot.lane.b32.xlu0 %v1016, 112
        %v1186 = vpop.permute.xlu0 %1185
        %1188 = vrot.lane.b32.xlu0 %v1016, 104
        %v1189 = vpop.permute.xlu0 %1188
        %v1191 = vcombine.low %v1016, %v1186
        %v1192 = vcombine.high %v1016, %v1186
        %v1194 = vunpack.c.l.s4 1983009808
        %v1195 = vunpack.c.0.s8 %v1194
        %v1196 = vlaneseq
        %v1197 = vshrl.u32 %v1196, 7
        %v1198 = vsub.s32 %v1195, %v1197
        %v1199 = vrot.slane %v1191, %v1198
        %v1201 = vunpack.c.l.s4 1983009808
        %v1202 = vunpack.c.0.s8 %v1201
        %v1203 = vlaneseq
        %v1204 = vshrl.u32 %v1203, 7
        %v1205 = vsub.s32 %v1202, %v1204
        %v1206 = vrot.slane %v1192, %v1205
        %v1207 = vcombine.low %v1183, %v1189
        %v1208 = vcombine.high %v1183, %v1189
        %v1210 = vunpack.c.l.s4 1983009808
        %v1211 = vunpack.c.0.s8 %v1210
        %v1212 = vlaneseq
        %v1213 = vshrl.u32 %v1212, 7
        %v1214 = vsub.s32 %v1211, %v1213
        %v1215 = vrot.slane %v1207, %v1214
        %v1217 = vunpack.c.l.s4 1983009808
        %v1218 = vunpack.c.0.s8 %v1217
        %v1219 = vlaneseq
        %v1220 = vshrl.u32 %v1219, 7
        %v1221 = vsub.s32 %v1218, %v1220
        %v1222 = vrot.slane %v1208, %v1221
        %v1223 = vcombine.low %v1199, %v1215
        %v1224 = vcombine.high %v1199, %v1215
        %v1226 = vunpack.c.l.s4 1934713408
        %v1227 = vunpack.c.0.s8 %v1226
        %v1228 = vlaneseq
        %v1229 = vshrl.u32 %v1228, 7
        %v1230 = vsub.s32 %v1227, %v1229
        %v1231 = vrot.slane %v1223, %v1230
        %v1233 = vunpack.c.l.s4 1934713408
        %v1234 = vunpack.c.0.s8 %v1233
        %v1235 = vlaneseq
        %v1236 = vshrl.u32 %v1235, 7
        %v1237 = vsub.s32 %v1234, %v1236
        %v1238 = vrot.slane %v1224, %v1237
        %v1239 = vcombine.low %v1206, %v1222
        %v1240 = vcombine.high %v1206, %v1222
        %v1242 = vunpack.c.l.s4 1934713408
        %v1243 = vunpack.c.0.s8 %v1242
        %v1244 = vlaneseq
        %v1245 = vshrl.u32 %v1244, 7
        %v1246 = vsub.s32 %v1243, %v1245
        %v1247 = vrot.slane %v1239, %v1246
        %v1249 = vunpack.c.l.s4 1934713408
        %v1250 = vunpack.c.0.s8 %v1249
        %v1251 = vlaneseq
        %v1252 = vshrl.u32 %v1251, 7
        %v1253 = vsub.s32 %v1250, %v1252
        %v1254 = vrot.slane %v1240, %v1253
        %v1255 = vcombine.high %v1231, 0.0
        %v1256 = vcombine.high %v1238, 0.0
        %v1257 = vcombine.high %v1247, 0.0
        %v1258 = vcombine.high %v1254, 0.0
        %v1259 = vcombine.low %v1231, %v1238
        %v1261 = vunpack.c.l.s4 1983009808
        %v1262 = vunpack.c.0.s8 %v1261
        %v1263 = vlaneseq
        %v1264 = vshrl.u32 %v1263, 7
        %v1265 = vsub.s32 %v1262, %v1264
        %v1266 = vrot.slane %v1259, %v1265
        %v1267 = vcombine.low %v1255, %v1256
        %v1269 = vunpack.c.l.s4 1983009808
        %v1270 = vunpack.c.0.s8 %v1269
        %v1271 = vlaneseq
        %v1272 = vshrl.u32 %v1271, 7
        %v1273 = vsub.s32 %v1270, %v1272
        %v1274 = vrot.slane %v1267, %v1273
        %v1275 = vcombine.low %v1247, %v1254
        %v1277 = vunpack.c.l.s4 1983009808
        %v1278 = vunpack.c.0.s8 %v1277
        %v1279 = vlaneseq
        %v1280 = vshrl.u32 %v1279, 7
        %v1281 = vsub.s32 %v1278, %v1280
        %v1282 = vrot.slane %v1275, %v1281
        %v1283 = vcombine.low %v1257, %v1258
        %v1285 = vunpack.c.l.s4 1983009808
        %v1286 = vunpack.c.0.s8 %v1285
        %v1287 = vlaneseq
        %v1288 = vshrl.u32 %v1287, 7
        %v1289 = vsub.s32 %v1286, %v1288
        %v1290 = vrot.slane %v1283, %v1289
        %v1291 = vcombine.low %v1266, %v1274
        %v1292 = vcombine.high %v1266, %v1274
        %v1294 = vunpack.c.l.s4 1934713408
        %v1295 = vunpack.c.0.s8 %v1294
        %v1296 = vlaneseq
        %v1297 = vshrl.u32 %v1296, 7
        %v1298 = vsub.s32 %v1295, %v1297
        %v1299 = vrot.slane %v1291, %v1298
        %v1301 = vunpack.c.l.s4 1934713408
        %v1302 = vunpack.c.0.s8 %v1301
        %v1303 = vlaneseq
        %v1304 = vshrl.u32 %v1303, 7
        %v1305 = vsub.s32 %v1302, %v1304
        %v1306 = vrot.slane %v1292, %v1305
        %v1307 = vcombine.low %v1282, %v1290
        %v1308 = vcombine.high %v1282, %v1290
        %v1310 = vunpack.c.l.s4 1934713408
        %v1311 = vunpack.c.0.s8 %v1310
        %v1312 = vlaneseq
        %v1313 = vshrl.u32 %v1312, 7
        %v1314 = vsub.s32 %v1311, %v1313
        %v1315 = vrot.slane %v1307, %v1314
        %v1317 = vunpack.c.l.s4 1934713408
        %v1318 = vunpack.c.0.s8 %v1317
        %v1319 = vlaneseq
        %v1320 = vshrl.u32 %v1319, 7
        %v1321 = vsub.s32 %v1318, %v1320
        %v1322 = vrot.slane %v1308, %v1321
        %v1323 = vcombine.low %v1299, %v1315
        %v1324 = vcombine.high %v1299, %v1315
        %v1325 = vcombine.low %v1306, %v1322
        %v1326 = vcombine.high %v1306, %v1322
        %1328 = vrot.lane.b32.xlu0 %v1097, 120
        %v1329 = vpop.permute.xlu0 %1328
        %1331 = vrot.lane.b32.xlu0 %v1097, 112
        %v1332 = vpop.permute.xlu0 %1331
        %1334 = vrot.lane.b32.xlu0 %v1097, 104
        %v1335 = vpop.permute.xlu0 %1334
        %v1337 = vcombine.low %v1097, %v1332
        %v1338 = vcombine.high %v1097, %v1332
        %v1340 = vunpack.c.l.s4 1983009808
        %v1341 = vunpack.c.0.s8 %v1340
        %v1342 = vlaneseq
        %v1343 = vshrl.u32 %v1342, 7
        %v1344 = vsub.s32 %v1341, %v1343
        %v1345 = vrot.slane %v1337, %v1344
        %v1347 = vunpack.c.l.s4 1983009808
        %v1348 = vunpack.c.0.s8 %v1347
        %v1349 = vlaneseq
        %v1350 = vshrl.u32 %v1349, 7
        %v1351 = vsub.s32 %v1348, %v1350
        %v1352 = vrot.slane %v1338, %v1351
        %v1353 = vcombine.low %v1329, %v1335
        %v1354 = vcombine.high %v1329, %v1335
        %v1356 = vunpack.c.l.s4 1983009808
        %v1357 = vunpack.c.0.s8 %v1356
        %v1358 = vlaneseq
        %v1359 = vshrl.u32 %v1358, 7
        %v1360 = vsub.s32 %v1357, %v1359
        %v1361 = vrot.slane %v1353, %v1360
        %v1363 = vunpack.c.l.s4 1983009808
        %v1364 = vunpack.c.0.s8 %v1363
        %v1365 = vlaneseq
        %v1366 = vshrl.u32 %v1365, 7
        %v1367 = vsub.s32 %v1364, %v1366
        %v1368 = vrot.slane %v1354, %v1367
        %v1369 = vcombine.low %v1345, %v1361
        %v1370 = vcombine.high %v1345, %v1361
        %v1372 = vunpack.c.l.s4 1934713408
        %v1373 = vunpack.c.0.s8 %v1372
        %v1374 = vlaneseq
        %v1375 = vshrl.u32 %v1374, 7
        %v1376 = vsub.s32 %v1373, %v1375
        %v1377 = vrot.slane %v1369, %v1376
        %v1379 = vunpack.c.l.s4 1934713408
        %v1380 = vunpack.c.0.s8 %v1379
        %v1381 = vlaneseq
        %v1382 = vshrl.u32 %v1381, 7
        %v1383 = vsub.s32 %v1380, %v1382
        %v1384 = vrot.slane %v1370, %v1383
        %v1385 = vcombine.low %v1352, %v1368
        %v1386 = vcombine.high %v1352, %v1368
        %v1388 = vunpack.c.l.s4 1934713408
        %v1389 = vunpack.c.0.s8 %v1388
        %v1390 = vlaneseq
        %v1391 = vshrl.u32 %v1390, 7
        %v1392 = vsub.s32 %v1389, %v1391
        %v1393 = vrot.slane %v1385, %v1392
        %v1395 = vunpack.c.l.s4 1934713408
        %v1396 = vunpack.c.0.s8 %v1395
        %v1397 = vlaneseq
        %v1398 = vshrl.u32 %v1397, 7
        %v1399 = vsub.s32 %v1396, %v1398
        %v1400 = vrot.slane %v1386, %v1399
        %v1401 = vcombine.high %v1377, 0.0
        %v1402 = vcombine.high %v1384, 0.0
        %v1403 = vcombine.high %v1393, 0.0
        %v1404 = vcombine.high %v1400, 0.0
        %v1405 = vcombine.low %v1377, %v1384
        %v1407 = vunpack.c.l.s4 1983009808
        %v1408 = vunpack.c.0.s8 %v1407
        %v1409 = vlaneseq
        %v1410 = vshrl.u32 %v1409, 7
        %v1411 = vsub.s32 %v1408, %v1410
        %v1412 = vrot.slane %v1405, %v1411
        %v1413 = vcombine.low %v1401, %v1402
        %v1415 = vunpack.c.l.s4 1983009808
        %v1416 = vunpack.c.0.s8 %v1415
        %v1417 = vlaneseq
        %v1418 = vshrl.u32 %v1417, 7
        %v1419 = vsub.s32 %v1416, %v1418
        %v1420 = vrot.slane %v1413, %v1419
        %v1421 = vcombine.low %v1393, %v1400
        %v1423 = vunpack.c.l.s4 1983009808
        %v1424 = vunpack.c.0.s8 %v1423
        %v1425 = vlaneseq
        %v1426 = vshrl.u32 %v1425, 7
        %v1427 = vsub.s32 %v1424, %v1426
        %v1428 = vrot.slane %v1421, %v1427
        %v1429 = vcombine.low %v1403, %v1404
        %v1431 = vunpack.c.l.s4 1983009808
        %v1432 = vunpack.c.0.s8 %v1431
        %v1433 = vlaneseq
        %v1434 = vshrl.u32 %v1433, 7
        %v1435 = vsub.s32 %v1432, %v1434
        %v1436 = vrot.slane %v1429, %v1435
        %v1437 = vcombine.low %v1412, %v1420
        %v1438 = vcombine.high %v1412, %v1420
        %v1440 = vunpack.c.l.s4 1934713408
        %v1441 = vunpack.c.0.s8 %v1440
        %v1442 = vlaneseq
        %v1443 = vshrl.u32 %v1442, 7
        %v1444 = vsub.s32 %v1441, %v1443
        %v1445 = vrot.slane %v1437, %v1444
        %v1447 = vunpack.c.l.s4 1934713408
        %v1448 = vunpack.c.0.s8 %v1447
        %v1449 = vlaneseq
        %v1450 = vshrl.u32 %v1449, 7
        %v1451 = vsub.s32 %v1448, %v1450
        %v1452 = vrot.slane %v1438, %v1451
        %v1453 = vcombine.low %v1428, %v1436
        %v1454 = vcombine.high %v1428, %v1436
        %v1456 = vunpack.c.l.s4 1934713408
        %v1457 = vunpack.c.0.s8 %v1456
        %v1458 = vlaneseq
        %v1459 = vshrl.u32 %v1458, 7
        %v1460 = vsub.s32 %v1457, %v1459
        %v1461 = vrot.slane %v1453, %v1460
        %v1463 = vunpack.c.l.s4 1934713408
        %v1464 = vunpack.c.0.s8 %v1463
        %v1465 = vlaneseq
        %v1466 = vshrl.u32 %v1465, 7
        %v1467 = vsub.s32 %v1464, %v1466
        %v1468 = vrot.slane %v1454, %v1467
        %v1469 = vcombine.low %v1445, %v1461
        %v1470 = vcombine.high %v1445, %v1461
        %v1471 = vcombine.low %v1452, %v1468
        %v1472 = vcombine.high %v1452, %v1468
        %1474 = vrot.lane.b32.xlu0 %v1178, 120
        %v1475 = vpop.permute.xlu0 %1474
        %1477 = vrot.lane.b32.xlu0 %v1178, 112
        %v1478 = vpop.permute.xlu0 %1477
        %1480 = vrot.lane.b32.xlu0 %v1178, 104
        %v1481 = vpop.permute.xlu0 %1480
        %v1483 = vcombine.low %v1178, %v1478
        %v1484 = vcombine.high %v1178, %v1478
        %v1486 = vunpack.c.l.s4 1983009808
        %v1487 = vunpack.c.0.s8 %v1486
        %v1488 = vlaneseq
        %v1489 = vshrl.u32 %v1488, 7
        %v1490 = vsub.s32 %v1487, %v1489
        %v1491 = vrot.slane %v1483, %v1490
        %v1493 = vunpack.c.l.s4 1983009808
        %v1494 = vunpack.c.0.s8 %v1493
        %v1495 = vlaneseq
        %v1496 = vshrl.u32 %v1495, 7
        %v1497 = vsub.s32 %v1494, %v1496
        %v1498 = vrot.slane %v1484, %v1497
        %v1499 = vcombine.low %v1475, %v1481
        %v1500 = vcombine.high %v1475, %v1481
        %v1502 = vunpack.c.l.s4 1983009808
        %v1503 = vunpack.c.0.s8 %v1502
        %v1504 = vlaneseq
        %v1505 = vshrl.u32 %v1504, 7
        %v1506 = vsub.s32 %v1503, %v1505
        %v1507 = vrot.slane %v1499, %v1506
        %v1509 = vunpack.c.l.s4 1983009808
        %v1510 = vunpack.c.0.s8 %v1509
        %v1511 = vlaneseq
        %v1512 = vshrl.u32 %v1511, 7
        %v1513 = vsub.s32 %v1510, %v1512
        %v1514 = vrot.slane %v1500, %v1513
        %v1515 = vcombine.low %v1491, %v1507
        %v1516 = vcombine.high %v1491, %v1507
        %v1518 = vunpack.c.l.s4 1934713408
        %v1519 = vunpack.c.0.s8 %v1518
        %v1520 = vlaneseq
        %v1521 = vshrl.u32 %v1520, 7
        %v1522 = vsub.s32 %v1519, %v1521
        %v1523 = vrot.slane %v1515, %v1522
        %v1525 = vunpack.c.l.s4 1934713408
        %v1526 = vunpack.c.0.s8 %v1525
        %v1527 = vlaneseq
        %v1528 = vshrl.u32 %v1527, 7
        %v1529 = vsub.s32 %v1526, %v1528
        %v1530 = vrot.slane %v1516, %v1529
        %v1531 = vcombine.low %v1498, %v1514
        %v1532 = vcombine.high %v1498, %v1514
        %v1534 = vunpack.c.l.s4 1934713408
        %v1535 = vunpack.c.0.s8 %v1534
        %v1536 = vlaneseq
        %v1537 = vshrl.u32 %v1536, 7
        %v1538 = vsub.s32 %v1535, %v1537
        %v1539 = vrot.slane %v1531, %v1538
        %v1541 = vunpack.c.l.s4 1934713408
        %v1542 = vunpack.c.0.s8 %v1541
        %v1543 = vlaneseq
        %v1544 = vshrl.u32 %v1543, 7
        %v1545 = vsub.s32 %v1542, %v1544
        %v1546 = vrot.slane %v1532, %v1545
        %v1547 = vcombine.high %v1523, 0.0
        %v1548 = vcombine.high %v1530, 0.0
        %v1549 = vcombine.high %v1539, 0.0
        %v1550 = vcombine.high %v1546, 0.0
        %v1551 = vcombine.low %v1523, %v1530
        %v1553 = vunpack.c.l.s4 1983009808
        %v1554 = vunpack.c.0.s8 %v1553
        %v1555 = vlaneseq
        %v1556 = vshrl.u32 %v1555, 7
        %v1557 = vsub.s32 %v1554, %v1556
        %v1558 = vrot.slane %v1551, %v1557
        %v1559 = vcombine.low %v1547, %v1548
        %v1561 = vunpack.c.l.s4 1983009808
        %v1562 = vunpack.c.0.s8 %v1561
        %v1563 = vlaneseq
        %v1564 = vshrl.u32 %v1563, 7
        %v1565 = vsub.s32 %v1562, %v1564
        %v1566 = vrot.slane %v1559, %v1565
        %v1567 = vcombine.low %v1539, %v1546
        %v1569 = vunpack.c.l.s4 1983009808
        %v1570 = vunpack.c.0.s8 %v1569
        %v1571 = vlaneseq
        %v1572 = vshrl.u32 %v1571, 7
        %v1573 = vsub.s32 %v1570, %v1572
        %v1574 = vrot.slane %v1567, %v1573
        %v1575 = vcombine.low %v1549, %v1550
        %v1577 = vunpack.c.l.s4 1983009808
        %v1578 = vunpack.c.0.s8 %v1577
        %v1579 = vlaneseq
        %v1580 = vshrl.u32 %v1579, 7
        %v1581 = vsub.s32 %v1578, %v1580
        %v1582 = vrot.slane %v1575, %v1581
        %v1583 = vcombine.low %v1558, %v1566
        %v1584 = vcombine.high %v1558, %v1566
        %v1586 = vunpack.c.l.s4 1934713408
        %v1587 = vunpack.c.0.s8 %v1586
        %v1588 = vlaneseq
        %v1589 = vshrl.u32 %v1588, 7
        %v1590 = vsub.s32 %v1587, %v1589
        %v1591 = vrot.slane %v1583, %v1590
        %v1593 = vunpack.c.l.s4 1934713408
        %v1594 = vunpack.c.0.s8 %v1593
        %v1595 = vlaneseq
        %v1596 = vshrl.u32 %v1595, 7
        %v1597 = vsub.s32 %v1594, %v1596
        %v1598 = vrot.slane %v1584, %v1597
        %v1599 = vcombine.low %v1574, %v1582
        %v1600 = vcombine.high %v1574, %v1582
        %v1602 = vunpack.c.l.s4 1934713408
        %v1603 = vunpack.c.0.s8 %v1602
        %v1604 = vlaneseq
        %v1605 = vshrl.u32 %v1604, 7
        %v1606 = vsub.s32 %v1603, %v1605
        %v1607 = vrot.slane %v1599, %v1606
        %v1609 = vunpack.c.l.s4 1934713408
        %v1610 = vunpack.c.0.s8 %v1609
        %v1611 = vlaneseq
        %v1612 = vshrl.u32 %v1611, 7
        %v1613 = vsub.s32 %v1610, %v1612
        %v1614 = vrot.slane %v1600, %v1613
        %v1615 = vcombine.low %v1591, %v1607
        %v1616 = vcombine.high %v1591, %v1607
        %v1617 = vcombine.low %v1598, %v1614
        %v1618 = vcombine.high %v1598, %v1614
        %vm1619 = vcmask 64512
        %v1621 = vsel %vm1619, %v1323, 0
        %v1624 = vsel %vm1619, %v1469, 0
        %1626 = vmatprep.subr.mxu0 0.0
        %1627 = vmatpush1.xpose.msra.mxu0 %v1624
        %1628 = vmatprep.subr.mxu0 0.0
        %1629 = vmatpush1.xpose.msra.mxu0 0.0
        %1630 = vmatprep.subr.mxu0 0.0
        %1631 = vmatpush1.xpose.msra.mxu0 0.0
        %1632 = vmatprep.subr.mxu0 0.0
        %1633 = vmatpush1.xpose.msra.mxu0 0.0
        %1634 = vmatprep.subr.mxu0 0.0
        %1635 = vmatpush1.xpose.msra.mxu0 0.0
        %1636 = vmatprep.subr.mxu0 0.0
        %1637 = vmatpush1.xpose.msra.mxu0 0.0
        %1638 = vmatprep.subr.mxu0 0.0
        %1639 = vmatpush1.xpose.msra.mxu0 0.0
        %1640 = vmatprep.subr.mxu0 0.0
        %1641 = vmatpush1.xpose.msra.mxu0 0.0
        %1642 = vmatprep.subr.mxu0 0.0
        %1643 = vmatpush1.xpose.msra.mxu0 0.0
        %1644 = vmatprep.subr.mxu0 0.0
        %1645 = vmatpush1.xpose.msra.mxu0 0.0
        %1646 = vmatprep.subr.mxu0 0.0
        %1647 = vmatpush1.xpose.msra.mxu0 0.0
        %1648 = vmatprep.subr.mxu0 0.0
        %1649 = vmatpush1.xpose.msra.mxu0 0.0
        %1650 = vmatprep.subr.mxu0 0.0
        %1651 = vmatpush1.xpose.msra.mxu0 0.0
        %1652 = vmatprep.subr.mxu0 0.0
        %1653 = vmatpush1.xpose.msra.mxu0 0.0
        %1654 = vmatprep.subr.mxu0 0.0
        %1655 = vmatpush1.xpose.msra.mxu0 0.0
        %1656 = vmatprep.subr.mxu0 0.0
        %1657 = vmatpush1.xpose.msra.mxu0 0.0
        %1658 = vmatprep.subr.mxu0 0.0
        %1659 = vmatpush1.xpose.msra.mxu0 0.0
        %1660 = vmatprep.subr.mxu0 0.0
        %1661 = vmatpush1.xpose.msra.mxu0 0.0
        %1662 = vmatprep.subr.mxu0 0.0
        %1663 = vmatpush1.xpose.msra.mxu0 0.0
        %1664 = vmatprep.subr.mxu0 0.0
        %1665 = vmatpush1.xpose.msra.mxu0 0.0
        %1666 = vmatprep.subr.mxu0 0.0
        %1667 = vmatpush1.xpose.msra.mxu0 0.0
        %1668 = vmatprep.subr.mxu0 0.0
        %1669 = vmatpush1.xpose.msra.mxu0 0.0
        %1670 = vmatprep.subr.mxu0 0.0
        %1671 = vmatpush1.xpose.msra.mxu0 0.0
        %1672 = vmatprep.subr.mxu0 0.0
        %1673 = vmatpush1.xpose.msra.mxu0 0.0
        %1674 = vmatprep.subr.mxu0 0.0
        %1675 = vmatpush1.xpose.msra.mxu0 0.0
        %1676 = vmatprep.subr.mxu0 0.0
        %1677 = vmatpush1.xpose.msra.mxu0 0.0
        %1678 = vmatprep.subr.mxu0 0.0
        %1679 = vmatpush1.xpose.msra.mxu0 0.0
        %1680 = vmatprep.subr.mxu0 0.0
        %1681 = vmatpush1.xpose.msra.mxu0 0.0
        %1682 = vmatprep.subr.mxu0 0.0
        %1683 = vmatpush1.xpose.msra.mxu0 0.0
        %1684 = vmatprep.subr.mxu0 0.0
        %1685 = vmatpush1.xpose.msra.mxu0 0.0
        %1686 = vmatprep.subr.mxu0 0.0
        %1687 = vmatpush1.xpose.msra.mxu0 0.0
        %1688 = vmatprep.subr.mxu0 0.0
        %1689 = vmatpush1.xpose.msra.mxu0 0.0
        %1690 = vmatprep.mubr.f32.mxu0 0.0
        %1691 = vmatmul.mubr.f32.gmra.mrb[0].mxu0 %v1621
        %v1692 = vpop.f32.mrb[0].mxu0
        %v1693 = vadd.f32 0.0, %v1692
        %v1694 = vpop.f32.mrb[0].mxu0
        %1695 = vdwg.mxu0
        %v1697 = vsel %vm1619, %v1324, 0
        %v1700 = vsel %vm1619, %v1470, 0
        %1702 = vmatprep.subr.mxu0 0.0
        %1703 = vmatpush1.xpose.msra.mxu0 %v1700
        %1704 = vmatprep.subr.mxu0 0.0
        %1705 = vmatpush1.xpose.msra.mxu0 0.0
        %1706 = vmatprep.subr.mxu0 0.0
        %1707 = vmatpush1.xpose.msra.mxu0 0.0
        %1708 = vmatprep.subr.mxu0 0.0
        %1709 = vmatpush1.xpose.msra.mxu0 0.0
        %1710 = vmatprep.subr.mxu0 0.0
        %1711 = vmatpush1.xpose.msra.mxu0 0.0
        %1712 = vmatprep.subr.mxu0 0.0
        %1713 = vmatpush1.xpose.msra.mxu0 0.0
        %1714 = vmatprep.subr.mxu0 0.0
        %1715 = vmatpush1.xpose.msra.mxu0 0.0
        %1716 = vmatprep.subr.mxu0 0.0
        %1717 = vmatpush1.xpose.msra.mxu0 0.0
        %1718 = vmatprep.subr.mxu0 0.0
        %1719 = vmatpush1.xpose.msra.mxu0 0.0
        %1720 = vmatprep.subr.mxu0 0.0
        %1721 = vmatpush1.xpose.msra.mxu0 0.0
        %1722 = vmatprep.subr.mxu0 0.0
        %1723 = vmatpush1.xpose.msra.mxu0 0.0
        %1724 = vmatprep.subr.mxu0 0.0
        %1725 = vmatpush1.xpose.msra.mxu0 0.0
        %1726 = vmatprep.subr.mxu0 0.0
        %1727 = vmatpush1.xpose.msra.mxu0 0.0
        %1728 = vmatprep.subr.mxu0 0.0
        %1729 = vmatpush1.xpose.msra.mxu0 0.0
        %1730 = vmatprep.subr.mxu0 0.0
        %1731 = vmatpush1.xpose.msra.mxu0 0.0
        %1732 = vmatprep.subr.mxu0 0.0
        %1733 = vmatpush1.xpose.msra.mxu0 0.0
        %1734 = vmatprep.subr.mxu0 0.0
        %1735 = vmatpush1.xpose.msra.mxu0 0.0
        %1736 = vmatprep.subr.mxu0 0.0
        %1737 = vmatpush1.xpose.msra.mxu0 0.0
        %1738 = vmatprep.subr.mxu0 0.0
        %1739 = vmatpush1.xpose.msra.mxu0 0.0
        %1740 = vmatprep.subr.mxu0 0.0
        %1741 = vmatpush1.xpose.msra.mxu0 0.0
        %1742 = vmatprep.subr.mxu0 0.0
        %1743 = vmatpush1.xpose.msra.mxu0 0.0
        %1744 = vmatprep.subr.mxu0 0.0
        %1745 = vmatpush1.xpose.msra.mxu0 0.0
        %1746 = vmatprep.subr.mxu0 0.0
        %1747 = vmatpush1.xpose.msra.mxu0 0.0
        %1748 = vmatprep.subr.mxu0 0.0
        %1749 = vmatpush1.xpose.msra.mxu0 0.0
        %1750 = vmatprep.subr.mxu0 0.0
        %1751 = vmatpush1.xpose.msra.mxu0 0.0
        %1752 = vmatprep.subr.mxu0 0.0
        %1753 = vmatpush1.xpose.msra.mxu0 0.0
        %1754 = vmatprep.subr.mxu0 0.0
        %1755 = vmatpush1.xpose.msra.mxu0 0.0
        %1756 = vmatprep.subr.mxu0 0.0
        %1757 = vmatpush1.xpose.msra.mxu0 0.0
        %1758 = vmatprep.subr.mxu0 0.0
        %1759 = vmatpush1.xpose.msra.mxu0 0.0
        %1760 = vmatprep.subr.mxu0 0.0
        %1761 = vmatpush1.xpose.msra.mxu0 0.0
        %1762 = vmatprep.subr.mxu0 0.0
        %1763 = vmatpush1.xpose.msra.mxu0 0.0
        %1764 = vmatprep.subr.mxu0 0.0
        %1765 = vmatpush1.xpose.msra.mxu0 0.0
        %1766 = vmatprep.mubr.f32.mxu0 0.0
        %1767 = vmatmul.mubr.f32.gmra.mrb[0].mxu0 %v1697
        %v1768 = vpop.f32.mrb[0].mxu0
        %v1769 = vadd.f32 0.0, %v1768
        %v1770 = vpop.f32.mrb[0].mxu0
        %1771 = vdwg.mxu0
        %v1773 = vsel %vm1619, %v1325, 0
        %v1776 = vsel %vm1619, %v1471, 0
        %1778 = vmatprep.subr.mxu0 0.0
        %1779 = vmatpush1.xpose.msra.mxu0 %v1776
        %1780 = vmatprep.subr.mxu0 0.0
        %1781 = vmatpush1.xpose.msra.mxu0 0.0
        %1782 = vmatprep.subr.mxu0 0.0
        %1783 = vmatpush1.xpose.msra.mxu0 0.0
        %1784 = vmatprep.subr.mxu0 0.0
        %1785 = vmatpush1.xpose.msra.mxu0 0.0
        %1786 = vmatprep.subr.mxu0 0.0
        %1787 = vmatpush1.xpose.msra.mxu0 0.0
        %1788 = vmatprep.subr.mxu0 0.0
        %1789 = vmatpush1.xpose.msra.mxu0 0.0
        %1790 = vmatprep.subr.mxu0 0.0
        %1791 = vmatpush1.xpose.msra.mxu0 0.0
        %1792 = vmatprep.subr.mxu0 0.0
        %1793 = vmatpush1.xpose.msra.mxu0 0.0
        %1794 = vmatprep.subr.mxu0 0.0
        %1795 = vmatpush1.xpose.msra.mxu0 0.0
        %1796 = vmatprep.subr.mxu0 0.0
        %1797 = vmatpush1.xpose.msra.mxu0 0.0
        %1798 = vmatprep.subr.mxu0 0.0
        %1799 = vmatpush1.xpose.msra.mxu0 0.0
        %1800 = vmatprep.subr.mxu0 0.0
        %1801 = vmatpush1.xpose.msra.mxu0 0.0
        %1802 = vmatprep.subr.mxu0 0.0
        %1803 = vmatpush1.xpose.msra.mxu0 0.0
        %1804 = vmatprep.subr.mxu0 0.0
        %1805 = vmatpush1.xpose.msra.mxu0 0.0
        %1806 = vmatprep.subr.mxu0 0.0
        %1807 = vmatpush1.xpose.msra.mxu0 0.0
        %1808 = vmatprep.subr.mxu0 0.0
        %1809 = vmatpush1.xpose.msra.mxu0 0.0
        %1810 = vmatprep.subr.mxu0 0.0
        %1811 = vmatpush1.xpose.msra.mxu0 0.0
        %1812 = vmatprep.subr.mxu0 0.0
        %1813 = vmatpush1.xpose.msra.mxu0 0.0
        %1814 = vmatprep.subr.mxu0 0.0
        %1815 = vmatpush1.xpose.msra.mxu0 0.0
        %1816 = vmatprep.subr.mxu0 0.0
        %1817 = vmatpush1.xpose.msra.mxu0 0.0
        %1818 = vmatprep.subr.mxu0 0.0
        %1819 = vmatpush1.xpose.msra.mxu0 0.0
        %1820 = vmatprep.subr.mxu0 0.0
        %1821 = vmatpush1.xpose.msra.mxu0 0.0
        %1822 = vmatprep.subr.mxu0 0.0
        %1823 = vmatpush1.xpose.msra.mxu0 0.0
        %1824 = vmatprep.subr.mxu0 0.0
        %1825 = vmatpush1.xpose.msra.mxu0 0.0
        %1826 = vmatprep.subr.mxu0 0.0
        %1827 = vmatpush1.xpose.msra.mxu0 0.0
        %1828 = vmatprep.subr.mxu0 0.0
        %1829 = vmatpush1.xpose.msra.mxu0 0.0
        %1830 = vmatprep.subr.mxu0 0.0
        %1831 = vmatpush1.xpose.msra.mxu0 0.0
        %1832 = vmatprep.subr.mxu0 0.0
        %1833 = vmatpush1.xpose.msra.mxu0 0.0
        %1834 = vmatprep.subr.mxu0 0.0
        %1835 = vmatpush1.xpose.msra.mxu0 0.0
        %1836 = vmatprep.subr.mxu0 0.0
        %1837 = vmatpush1.xpose.msra.mxu0 0.0
        %1838 = vmatprep.subr.mxu0 0.0
        %1839 = vmatpush1.xpose.msra.mxu0 0.0
        %1840 = vmatprep.subr.mxu0 0.0
        %1841 = vmatpush1.xpose.msra.mxu0 0.0
        %1842 = vmatprep.mubr.f32.mxu0 0.0
        %1843 = vmatmul.mubr.f32.gmra.mrb[0].mxu0 %v1773
        %v1844 = vpop.f32.mrb[0].mxu0
        %v1845 = vadd.f32 0.0, %v1844
        %v1846 = vpop.f32.mrb[0].mxu0
        %1847 = vdwg.mxu0
        %v1849 = vsel %vm1619, %v1326, 0
        %v1852 = vsel %vm1619, %v1472, 0
        %1854 = vmatprep.subr.mxu0 0.0
        %1855 = vmatpush1.xpose.msra.mxu0 %v1852
        %1856 = vmatprep.subr.mxu0 0.0
        %1857 = vmatpush1.xpose.msra.mxu0 0.0
        %1858 = vmatprep.subr.mxu0 0.0
        %1859 = vmatpush1.xpose.msra.mxu0 0.0
        %1860 = vmatprep.subr.mxu0 0.0
        %1861 = vmatpush1.xpose.msra.mxu0 0.0
        %1862 = vmatprep.subr.mxu0 0.0
        %1863 = vmatpush1.xpose.msra.mxu0 0.0
        %1864 = vmatprep.subr.mxu0 0.0
        %1865 = vmatpush1.xpose.msra.mxu0 0.0
        %1866 = vmatprep.subr.mxu0 0.0
        %1867 = vmatpush1.xpose.msra.mxu0 0.0
        %1868 = vmatprep.subr.mxu0 0.0
        %1869 = vmatpush1.xpose.msra.mxu0 0.0
        %1870 = vmatprep.subr.mxu0 0.0
        %1871 = vmatpush1.xpose.msra.mxu0 0.0
        %1872 = vmatprep.subr.mxu0 0.0
        %1873 = vmatpush1.xpose.msra.mxu0 0.0
        %1874 = vmatprep.subr.mxu0 0.0
        %1875 = vmatpush1.xpose.msra.mxu0 0.0
        %1876 = vmatprep.subr.mxu0 0.0
        %1877 = vmatpush1.xpose.msra.mxu0 0.0
        %1878 = vmatprep.subr.mxu0 0.0
        %1879 = vmatpush1.xpose.msra.mxu0 0.0
        %1880 = vmatprep.subr.mxu0 0.0
        %1881 = vmatpush1.xpose.msra.mxu0 0.0
        %1882 = vmatprep.subr.mxu0 0.0
        %1883 = vmatpush1.xpose.msra.mxu0 0.0
        %1884 = vmatprep.subr.mxu0 0.0
        %1885 = vmatpush1.xpose.msra.mxu0 0.0
        %1886 = vmatprep.subr.mxu0 0.0
        %1887 = vmatpush1.xpose.msra.mxu0 0.0
        %1888 = vmatprep.subr.mxu0 0.0
        %1889 = vmatpush1.xpose.msra.mxu0 0.0
        %1890 = vmatprep.subr.mxu0 0.0
        %1891 = vmatpush1.xpose.msra.mxu0 0.0
        %1892 = vmatprep.subr.mxu0 0.0
        %1893 = vmatpush1.xpose.msra.mxu0 0.0
        %1894 = vmatprep.subr.mxu0 0.0
        %1895 = vmatpush1.xpose.msra.mxu0 0.0
        %1896 = vmatprep.subr.mxu0 0.0
        %1897 = vmatpush1.xpose.msra.mxu0 0.0
        %1898 = vmatprep.subr.mxu0 0.0
        %1899 = vmatpush1.xpose.msra.mxu0 0.0
        %1900 = vmatprep.subr.mxu0 0.0
        %1901 = vmatpush1.xpose.msra.mxu0 0.0
        %1902 = vmatprep.subr.mxu0 0.0
        %1903 = vmatpush1.xpose.msra.mxu0 0.0
        %1904 = vmatprep.subr.mxu0 0.0
        %1905 = vmatpush1.xpose.msra.mxu0 0.0
        %1906 = vmatprep.subr.mxu0 0.0
        %1907 = vmatpush1.xpose.msra.mxu0 0.0
        %1908 = vmatprep.subr.mxu0 0.0
        %1909 = vmatpush1.xpose.msra.mxu0 0.0
        %1910 = vmatprep.subr.mxu0 0.0
        %1911 = vmatpush1.xpose.msra.mxu0 0.0
        %1912 = vmatprep.subr.mxu0 0.0
        %1913 = vmatpush1.xpose.msra.mxu0 0.0
        %1914 = vmatprep.subr.mxu0 0.0
        %1915 = vmatpush1.xpose.msra.mxu0 0.0
        %1916 = vmatprep.subr.mxu0 0.0
        %1917 = vmatpush1.xpose.msra.mxu0 0.0
        %1918 = vmatprep.mubr.f32.mxu0 0.0
        %1919 = vmatmul.mubr.f32.gmra.mrb[0].mxu0 %v1849
        %v1920 = vpop.f32.mrb[0].mxu0
        %v1921 = vadd.f32 0.0, %v1920
        %v1922 = vpop.f32.mrb[0].mxu0
        %1923 = vdwg.mxu0
        %v1924 = vmul.f32 %v1693, 0.35355338
        %v1925 = vmul.f32 %v1769, 0.35355338
        %v1926 = vmul.f32 %v1845, 0.35355338
        %v1927 = vmul.f32 %v1921, 0.35355338
        %v1929 = vlaneseq
        %v1930 = vshrl.u32 %v1929, 7
        %v1931 = vsub.s32 0, %v1930
        %v1932 = vrot.slane %v933, %v1931
        %v1934 = vadd.f32 %v1924, %v1932
        %v1935 = vadd.f32 %v1925, %v1932
        %v1936 = vadd.f32 %v1926, %v1932
        %v1937 = vadd.f32 %v1927, %v1932
        %v1938 = vsel %vm1619, %v1934, -inf
        %1939 = vmax.xlane.f32.xlu0 %v1938
        %v1940 = vpop.xlane.xlu0 %1939
        %v1941 = vsel %vm1619, %v1935, -inf
        %1942 = vmax.xlane.f32.xlu0 %v1941
        %v1943 = vpop.xlane.xlu0 %1942
        %v1944 = vsel %vm1619, %v1936, -inf
        %1945 = vmax.xlane.f32.xlu0 %v1944
        %v1946 = vpop.xlane.xlu0 %1945
        %v1947 = vsel %vm1619, %v1937, -inf
        %1948 = vmax.xlane.f32.xlu0 %v1947
        %v1949 = vpop.xlane.xlu0 %1948
        %v1950 = vsub.f32 %v1934, %v1940
        %v1951 = vsub.f32 %v1935, %v1943
        %v1952 = vsub.f32 %v1936, %v1946
        %v1953 = vsub.f32 %v1937, %v1949
        %v1954 = vmul.f32 %v1950, 1.442695
        %v1955 = vpow.pop %v1954
        %v1956 = vmul.f32 %v1951, 1.442695
        %v1957 = vpow.pop %v1956
        %v1958 = vmul.f32 %v1952, 1.442695
        %v1959 = vpow.pop %v1958
        %v1960 = vmul.f32 %v1953, 1.442695
        %v1961 = vpow.pop %v1960
        %v1962 = vsel %vm1619, %v1955, 0.0
        %1963 = vadd.xlane.f32.xlu0 %v1962
        %v1964 = vpop.xlane.xlu0 %1963
        %v1965 = vsel %vm1619, %v1957, 0.0
        %1966 = vadd.xlane.f32.xlu0 %v1965
        %v1967 = vpop.xlane.xlu0 %1966
        %v1968 = vsel %vm1619, %v1959, 0.0
        %1969 = vadd.xlane.f32.xlu0 %v1968
        %v1970 = vpop.xlane.xlu0 %1969
        %v1971 = vsel %vm1619, %v1961, 0.0
        %1972 = vadd.xlane.f32.xlu0 %v1971
        %v1973 = vpop.xlane.xlu0 %1972
        %v1974 = vrcp.pop %v1964
        %v1975 = vrcp.pop %v1967
        %v1976 = vrcp.pop %v1970
        %v1977 = vrcp.pop %v1973
        %v1978 = vmul.f32 %v1955, %v1974
        %v1979 = vmul.f32 %v1957, %v1975
        %v1980 = vmul.f32 %v1959, %v1976
        %v1981 = vmul.f32 %v1961, %v1977
        %v1983 = vsel %vm1619, %v1978, 0
        %1985 = vmatprep.subr.mxu0 0.0
        %1986 = vmatpush1.msra.mxu0 %v1615
        %1987 = vmatprep.subr.mxu0 0.0
        %1988 = vmatpush1.msra.mxu0 0.0
        %1989 = vmatprep.subr.mxu0 0.0
        %1990 = vmatpush1.msra.mxu0 0.0
        %1991 = vmatprep.subr.mxu0 0.0
        %1992 = vmatpush1.msra.mxu0 0.0
        %1993 = vmatprep.subr.mxu0 0.0
        %1994 = vmatpush1.msra.mxu0 0.0
        %1995 = vmatprep.subr.mxu0 0.0
        %1996 = vmatpush1.msra.mxu0 0.0
        %1997 = vmatprep.subr.mxu0 0.0
        %1998 = vmatpush1.msra.mxu0 0.0
        %1999 = vmatprep.subr.mxu0 0.0
        %2000 = vmatpush1.msra.mxu0 0.0
        %2001 = vmatprep.subr.mxu0 0.0
        %2002 = vmatpush1.msra.mxu0 0.0
        %2003 = vmatprep.subr.mxu0 0.0
        %2004 = vmatpush1.msra.mxu0 0.0
        %2005 = vmatprep.subr.mxu0 0.0
        %2006 = vmatpush1.msra.mxu0 0.0
        %2007 = vmatprep.subr.mxu0 0.0
        %2008 = vmatpush1.msra.mxu0 0.0
        %2009 = vmatprep.subr.mxu0 0.0
        %2010 = vmatpush1.msra.mxu0 0.0
        %2011 = vmatprep.subr.mxu0 0.0
        %2012 = vmatpush1.msra.mxu0 0.0
        %2013 = vmatprep.subr.mxu0 0.0
        %2014 = vmatpush1.msra.mxu0 0.0
        %2015 = vmatprep.subr.mxu0 0.0
        %2016 = vmatpush1.msra.mxu0 0.0
        %2017 = vmatprep.subr.mxu0 0.0
        %2018 = vmatpush1.msra.mxu0 0.0
        %2019 = vmatprep.subr.mxu0 0.0
        %2020 = vmatpush1.msra.mxu0 0.0
        %2021 = vmatprep.subr.mxu0 0.0
        %2022 = vmatpush1.msra.mxu0 0.0
        %2023 = vmatprep.subr.mxu0 0.0
        %2024 = vmatpush1.msra.mxu0 0.0
        %2025 = vmatprep.subr.mxu0 0.0
        %2026 = vmatpush1.msra.mxu0 0.0
        %2027 = vmatprep.subr.mxu0 0.0
        %2028 = vmatpush1.msra.mxu0 0.0
        %2029 = vmatprep.subr.mxu0 0.0
        %2030 = vmatpush1.msra.mxu0 0.0
        %2031 = vmatprep.subr.mxu0 0.0
        %2032 = vmatpush1.msra.mxu0 0.0
        %2033 = vmatprep.subr.mxu0 0.0
        %2034 = vmatpush1.msra.mxu0 0.0
        %2035 = vmatprep.subr.mxu0 0.0
        %2036 = vmatpush1.msra.mxu0 0.0
        %2037 = vmatprep.subr.mxu0 0.0
        %2038 = vmatpush1.msra.mxu0 0.0
        %2039 = vmatprep.subr.mxu0 0.0
        %2040 = vmatpush1.msra.mxu0 0.0
        %2041 = vmatprep.subr.mxu0 0.0
        %2042 = vmatpush1.msra.mxu0 0.0
        %2043 = vmatprep.subr.mxu0 0.0
        %2044 = vmatpush1.msra.mxu0 0.0
        %2045 = vmatprep.subr.mxu0 0.0
        %2046 = vmatpush1.msra.mxu0 0.0
        %2047 = vmatprep.subr.mxu0 0.0
        %2048 = vmatpush1.msra.mxu0 0.0
        %2049 = vmatprep.mubr.f32.mxu0 0.0
        %2050 = vmatmul.mubr.f32.gmra.mrb[0].mxu0 %v1983
        %v2051 = vpop.f32.mrb[0].mxu0
        %v2052 = vadd.f32 0.0, %v2051
        %v2053 = vpop.f32.mrb[0].mxu0
        %2054 = vdwg.mxu0
        %v2056 = vsel %vm1619, %v1979, 0
        %2058 = vmatprep.subr.mxu0 0.0
        %2059 = vmatpush1.msra.mxu0 %v1616
        %2060 = vmatprep.subr.mxu0 0.0
        %2061 = vmatpush1.msra.mxu0 0.0
        %2062 = vmatprep.subr.mxu0 0.0
        %2063 = vmatpush1.msra.mxu0 0.0
        %2064 = vmatprep.subr.mxu0 0.0
        %2065 = vmatpush1.msra.mxu0 0.0
        %2066 = vmatprep.subr.mxu0 0.0
        %2067 = vmatpush1.msra.mxu0 0.0
        %2068 = vmatprep.subr.mxu0 0.0
        %2069 = vmatpush1.msra.mxu0 0.0
        %2070 = vmatprep.subr.mxu0 0.0
        %2071 = vmatpush1.msra.mxu0 0.0
        %2072 = vmatprep.subr.mxu0 0.0
        %2073 = vmatpush1.msra.mxu0 0.0
        %2074 = vmatprep.subr.mxu0 0.0
        %2075 = vmatpush1.msra.mxu0 0.0
        %2076 = vmatprep.subr.mxu0 0.0
        %2077 = vmatpush1.msra.mxu0 0.0
        %2078 = vmatprep.subr.mxu0 0.0
        %2079 = vmatpush1.msra.mxu0 0.0
        %2080 = vmatprep.subr.mxu0 0.0
        %2081 = vmatpush1.msra.mxu0 0.0
        %2082 = vmatprep.subr.mxu0 0.0
        %2083 = vmatpush1.msra.mxu0 0.0
        %2084 = vmatprep.subr.mxu0 0.0
        %2085 = vmatpush1.msra.mxu0 0.0
        %2086 = vmatprep.subr.mxu0 0.0
        %2087 = vmatpush1.msra.mxu0 0.0
        %2088 = vmatprep.subr.mxu0 0.0
        %2089 = vmatpush1.msra.mxu0 0.0
        %2090 = vmatprep.subr.mxu0 0.0
        %2091 = vmatpush1.msra.mxu0 0.0
        %2092 = vmatprep.subr.mxu0 0.0
        %2093 = vmatpush1.msra.mxu0 0.0
        %2094 = vmatprep.subr.mxu0 0.0
        %2095 = vmatpush1.msra.mxu0 0.0
        %2096 = vmatprep.subr.mxu0 0.0
        %2097 = vmatpush1.msra.mxu0 0.0
        %2098 = vmatprep.subr.mxu0 0.0
        %2099 = vmatpush1.msra.mxu0 0.0
        %2100 = vmatprep.subr.mxu0 0.0
        %2101 = vmatpush1.msra.mxu0 0.0
        %2102 = vmatprep.subr.mxu0 0.0
        %2103 = vmatpush1.msra.mxu0 0.0
        %2104 = vmatprep.subr.mxu0 0.0
        %2105 = vmatpush1.msra.mxu0 0.0
        %2106 = vmatprep.subr.mxu0 0.0
        %2107 = vmatpush1.msra.mxu0 0.0
        %2108 = vmatprep.subr.mxu0 0.0
        %2109 = vmatpush1.msra.mxu0 0.0
        %2110 = vmatprep.subr.mxu0 0.0
        %2111 = vmatpush1.msra.mxu0 0.0
        %2112 = vmatprep.subr.mxu0 0.0
        %2113 = vmatpush1.msra.mxu0 0.0
        %2114 = vmatprep.subr.mxu0 0.0
        %2115 = vmatpush1.msra.mxu0 0.0
        %2116 = vmatprep.subr.mxu0 0.0
        %2117 = vmatpush1.msra.mxu0 0.0
        %2118 = vmatprep.subr.mxu0 0.0
        %2119 = vmatpush1.msra.mxu0 0.0
        %2120 = vmatprep.subr.mxu0 0.0
        %2121 = vmatpush1.msra.mxu0 0.0
        %2122 = vmatprep.mubr.f32.mxu0 0.0
        %2123 = vmatmul.mubr.f32.gmra.mrb[0].mxu0 %v2056
        %v2124 = vpop.f32.mrb[0].mxu0
        %v2125 = vadd.f32 0.0, %v2124
        %v2126 = vpop.f32.mrb[0].mxu0
        %2127 = vdwg.mxu0
        %v2129 = vsel %vm1619, %v1980, 0
        %2131 = vmatprep.subr.mxu0 0.0
        %2132 = vmatpush1.msra.mxu0 %v1617
        %2133 = vmatprep.subr.mxu0 0.0
        %2134 = vmatpush1.msra.mxu0 0.0
        %2135 = vmatprep.subr.mxu0 0.0
        %2136 = vmatpush1.msra.mxu0 0.0
        %2137 = vmatprep.subr.mxu0 0.0
        %2138 = vmatpush1.msra.mxu0 0.0
        %2139 = vmatprep.subr.mxu0 0.0
        %2140 = vmatpush1.msra.mxu0 0.0
        %2141 = vmatprep.subr.mxu0 0.0
        %2142 = vmatpush1.msra.mxu0 0.0
        %2143 = vmatprep.subr.mxu0 0.0
        %2144 = vmatpush1.msra.mxu0 0.0
        %2145 = vmatprep.subr.mxu0 0.0
        %2146 = vmatpush1.msra.mxu0 0.0
        %2147 = vmatprep.subr.mxu0 0.0
        %2148 = vmatpush1.msra.mxu0 0.0
        %2149 = vmatprep.subr.mxu0 0.0
        %2150 = vmatpush1.msra.mxu0 0.0
        %2151 = vmatprep.subr.mxu0 0.0
        %2152 = vmatpush1.msra.mxu0 0.0
        %2153 = vmatprep.subr.mxu0 0.0
        %2154 = vmatpush1.msra.mxu0 0.0
        %2155 = vmatprep.subr.mxu0 0.0
        %2156 = vmatpush1.msra.mxu0 0.0
        %2157 = vmatprep.subr.mxu0 0.0
        %2158 = vmatpush1.msra.mxu0 0.0
        %2159 = vmatprep.subr.mxu0 0.0
        %2160 = vmatpush1.msra.mxu0 0.0
        %2161 = vmatprep.subr.mxu0 0.0
        %2162 = vmatpush1.msra.mxu0 0.0
        %2163 = vmatprep.subr.mxu0 0.0
        %2164 = vmatpush1.msra.mxu0 0.0
        %2165 = vmatprep.subr.mxu0 0.0
        %2166 = vmatpush1.msra.mxu0 0.0
        %2167 = vmatprep.subr.mxu0 0.0
        %2168 = vmatpush1.msra.mxu0 0.0
        %2169 = vmatprep.subr.mxu0 0.0
        %2170 = vmatpush1.msra.mxu0 0.0
        %2171 = vmatprep.subr.mxu0 0.0
        %2172 = vmatpush1.msra.mxu0 0.0
        %2173 = vmatprep.subr.mxu0 0.0
        %2174 = vmatpush1.msra.mxu0 0.0
        %2175 = vmatprep.subr.mxu0 0.0
        %2176 = vmatpush1.msra.mxu0 0.0
        %2177 = vmatprep.subr.mxu0 0.0
        %2178 = vmatpush1.msra.mxu0 0.0
        %2179 = vmatprep.subr.mxu0 0.0
        %2180 = vmatpush1.msra.mxu0 0.0
        %2181 = vmatprep.subr.mxu0 0.0
        %2182 = vmatpush1.msra.mxu0 0.0
        %2183 = vmatprep.subr.mxu0 0.0
        %2184 = vmatpush1.msra.mxu0 0.0
        %2185 = vmatprep.subr.mxu0 0.0
        %2186 = vmatpush1.msra.mxu0 0.0
        %2187 = vmatprep.subr.mxu0 0.0
        %2188 = vmatpush1.msra.mxu0 0.0
        %2189 = vmatprep.subr.mxu0 0.0
        %2190 = vmatpush1.msra.mxu0 0.0
        %2191 = vmatprep.subr.mxu0 0.0
        %2192 = vmatpush1.msra.mxu0 0.0
        %2193 = vmatprep.subr.mxu0 0.0
        %2194 = vmatpush1.msra.mxu0 0.0
        %2195 = vmatprep.mubr.f32.mxu0 0.0
        %2196 = vmatmul.mubr.f32.gmra.mrb[0].mxu0 %v2129
        %v2197 = vpop.f32.mrb[0].mxu0
        %v2198 = vadd.f32 0.0, %v2197
        %v2199 = vpop.f32.mrb[0].mxu0
        %2200 = vdwg.mxu0
        %v2202 = vsel %vm1619, %v1981, 0
        %2204 = vmatprep.subr.mxu0 0.0
        %2205 = vmatpush1.msra.mxu0 %v1618
        %2206 = vmatprep.subr.mxu0 0.0
        %2207 = vmatpush1.msra.mxu0 0.0
        %2208 = vmatprep.subr.mxu0 0.0
        %2209 = vmatpush1.msra.mxu0 0.0
        %2210 = vmatprep.subr.mxu0 0.0
        %2211 = vmatpush1.msra.mxu0 0.0
        %2212 = vmatprep.subr.mxu0 0.0
        %2213 = vmatpush1.msra.mxu0 0.0
        %2214 = vmatprep.subr.mxu0 0.0
        %2215 = vmatpush1.msra.mxu0 0.0
        %2216 = vmatprep.subr.mxu0 0.0
        %2217 = vmatpush1.msra.mxu0 0.0
        %2218 = vmatprep.subr.mxu0 0.0
        %2219 = vmatpush1.msra.mxu0 0.0
        %2220 = vmatprep.subr.mxu0 0.0
        %2221 = vmatpush1.msra.mxu0 0.0
        %2222 = vmatprep.subr.mxu0 0.0
        %2223 = vmatpush1.msra.mxu0 0.0
        %2224 = vmatprep.subr.mxu0 0.0
        %2225 = vmatpush1.msra.mxu0 0.0
        %2226 = vmatprep.subr.mxu0 0.0
        %2227 = vmatpush1.msra.mxu0 0.0
        %2228 = vmatprep.subr.mxu0 0.0
        %2229 = vmatpush1.msra.mxu0 0.0
        %2230 = vmatprep.subr.mxu0 0.0
        %2231 = vmatpush1.msra.mxu0 0.0
        %2232 = vmatprep.subr.mxu0 0.0
        %2233 = vmatpush1.msra.mxu0 0.0
        %2234 = vmatprep.subr.mxu0 0.0
        %2235 = vmatpush1.msra.mxu0 0.0
        %2236 = vmatprep.subr.mxu0 0.0
        %2237 = vmatpush1.msra.mxu0 0.0
        %2238 = vmatprep.subr.mxu0 0.0
        %2239 = vmatpush1.msra.mxu0 0.0
        %2240 = vmatprep.subr.mxu0 0.0
        %2241 = vmatpush1.msra.mxu0 0.0
        %2242 = vmatprep.subr.mxu0 0.0
        %2243 = vmatpush1.msra.mxu0 0.0
        %2244 = vmatprep.subr.mxu0 0.0
        %2245 = vmatpush1.msra.mxu0 0.0
        %2246 = vmatprep.subr.mxu0 0.0
        %2247 = vmatpush1.msra.mxu0 0.0
        %2248 = vmatprep.subr.mxu0 0.0
        %2249 = vmatpush1.msra.mxu0 0.0
        %2250 = vmatprep.subr.mxu0 0.0
        %2251 = vmatpush1.msra.mxu0 0.0
        %2252 = vmatprep.subr.mxu0 0.0
        %2253 = vmatpush1.msra.mxu0 0.0
        %2254 = vmatprep.subr.mxu0 0.0
        %2255 = vmatpush1.msra.mxu0 0.0
        %2256 = vmatprep.subr.mxu0 0.0
        %2257 = vmatpush1.msra.mxu0 0.0
        %2258 = vmatprep.subr.mxu0 0.0
        %2259 = vmatpush1.msra.mxu0 0.0
        %2260 = vmatprep.subr.mxu0 0.0
        %2261 = vmatpush1.msra.mxu0 0.0
        %2262 = vmatprep.subr.mxu0 0.0
        %2263 = vmatpush1.msra.mxu0 0.0
        %2264 = vmatprep.subr.mxu0 0.0
        %2265 = vmatpush1.msra.mxu0 0.0
        %2266 = vmatprep.subr.mxu0 0.0
        %2267 = vmatpush1.msra.mxu0 0.0
        %2268 = vmatprep.mubr.f32.mxu0 0.0
        %2269 = vmatmul.mubr.f32.gmra.mrb[0].mxu0 %v2202
        %v2270 = vpop.f32.mrb[0].mxu0
        %v2271 = vadd.f32 0.0, %v2270
        %v2272 = vpop.f32.mrb[0].mxu0
        %2273 = vdwg.mxu0
        %v2274 = vcombine.low %v2052, %v2198
        %v2275 = vcombine.high %v2052, %v2198
        %v2277 = vunpack.c.l.s4 1983009808
        %v2278 = vunpack.c.0.s8 %v2277
        %v2279 = vlaneseq
        %v2280 = vshrl.u32 %v2279, 7
        %v2281 = vsub.s32 %v2278, %v2280
        %v2282 = vrot.slane %v2274, %v2281
        %v2284 = vunpack.c.l.s4 1983009808
        %v2285 = vunpack.c.0.s8 %v2284
        %v2286 = vlaneseq
        %v2287 = vshrl.u32 %v2286, 7
        %v2288 = vsub.s32 %v2285, %v2287
        %v2289 = vrot.slane %v2275, %v2288
        %v2290 = vcombine.low %v2125, %v2271
        %v2291 = vcombine.high %v2125, %v2271
        %v2293 = vunpack.c.l.s4 1983009808
        %v2294 = vunpack.c.0.s8 %v2293
        %v2295 = vlaneseq
        %v2296 = vshrl.u32 %v2295, 7
        %v2297 = vsub.s32 %v2294, %v2296
        %v2298 = vrot.slane %v2290, %v2297
        %v2300 = vunpack.c.l.s4 1983009808
        %v2301 = vunpack.c.0.s8 %v2300
        %v2302 = vlaneseq
        %v2303 = vshrl.u32 %v2302, 7
        %v2304 = vsub.s32 %v2301, %v2303
        %v2305 = vrot.slane %v2291, %v2304
        %v2306 = vcombine.low %v2282, %v2298
        %v2307 = vcombine.high %v2282, %v2298
        %v2309 = vunpack.c.l.s4 1934713408
        %v2310 = vunpack.c.0.s8 %v2309
        %v2311 = vlaneseq
        %v2312 = vshrl.u32 %v2311, 7
        %v2313 = vsub.s32 %v2310, %v2312
        %v2314 = vrot.slane %v2306, %v2313
        %v2316 = vunpack.c.l.s4 1934713408
        %v2317 = vunpack.c.0.s8 %v2316
        %v2318 = vlaneseq
        %v2319 = vshrl.u32 %v2318, 7
        %v2320 = vsub.s32 %v2317, %v2319
        %v2321 = vrot.slane %v2307, %v2320
        %v2322 = vcombine.low %v2289, %v2305
        %v2323 = vcombine.high %v2289, %v2305
        %v2325 = vunpack.c.l.s4 1934713408
        %v2326 = vunpack.c.0.s8 %v2325
        %v2327 = vlaneseq
        %v2328 = vshrl.u32 %v2327, 7
        %v2329 = vsub.s32 %v2326, %v2328
        %v2330 = vrot.slane %v2322, %v2329
        %v2332 = vunpack.c.l.s4 1934713408
        %v2333 = vunpack.c.0.s8 %v2332
        %v2334 = vlaneseq
        %v2335 = vshrl.u32 %v2334, 7
        %v2336 = vsub.s32 %v2333, %v2335
        %v2337 = vrot.slane %v2323, %v2336
        %v2338 = vcombine.high %v2314, 0.0
        %v2339 = vcombine.high %v2321, 0.0
        %v2340 = vcombine.high %v2330, 0.0
        %v2341 = vcombine.high %v2337, 0.0
        %v2342 = vcombine.low %v2314, %v2321
        %v2344 = vunpack.c.l.s4 1983009808
        %v2345 = vunpack.c.0.s8 %v2344
        %v2346 = vlaneseq
        %v2347 = vshrl.u32 %v2346, 7
        %v2348 = vsub.s32 %v2345, %v2347
        %v2349 = vrot.slane %v2342, %v2348
        %v2350 = vcombine.low %v2338, %v2339
        %v2352 = vunpack.c.l.s4 1983009808
        %v2353 = vunpack.c.0.s8 %v2352
        %v2354 = vlaneseq
        %v2355 = vshrl.u32 %v2354, 7
        %v2356 = vsub.s32 %v2353, %v2355
        %v2357 = vrot.slane %v2350, %v2356
        %v2358 = vcombine.low %v2330, %v2337
        %v2360 = vunpack.c.l.s4 1983009808
        %v2361 = vunpack.c.0.s8 %v2360
        %v2362 = vlaneseq
        %v2363 = vshrl.u32 %v2362, 7
        %v2364 = vsub.s32 %v2361, %v2363
        %v2365 = vrot.slane %v2358, %v2364
        %v2366 = vcombine.low %v2340, %v2341
        %v2368 = vunpack.c.l.s4 1983009808
        %v2369 = vunpack.c.0.s8 %v2368
        %v2370 = vlaneseq
        %v2371 = vshrl.u32 %v2370, 7
        %v2372 = vsub.s32 %v2369, %v2371
        %v2373 = vrot.slane %v2366, %v2372
        %v2374 = vcombine.low %v2349, %v2357
        %v2375 = vcombine.high %v2349, %v2357
        %v2377 = vunpack.c.l.s4 1934713408
        %v2378 = vunpack.c.0.s8 %v2377
        %v2379 = vlaneseq
        %v2380 = vshrl.u32 %v2379, 7
        %v2381 = vsub.s32 %v2378, %v2380
        %v2382 = vrot.slane %v2374, %v2381
        %v2384 = vunpack.c.l.s4 1934713408
        %v2385 = vunpack.c.0.s8 %v2384
        %v2386 = vlaneseq
        %v2387 = vshrl.u32 %v2386, 7
        %v2388 = vsub.s32 %v2385, %v2387
        %v2389 = vrot.slane %v2375, %v2388
        %v2390 = vcombine.low %v2365, %v2373
        %v2391 = vcombine.high %v2365, %v2373
        %v2393 = vunpack.c.l.s4 1934713408
        %v2394 = vunpack.c.0.s8 %v2393
        %v2395 = vlaneseq
        %v2396 = vshrl.u32 %v2395, 7
        %v2397 = vsub.s32 %v2394, %v2396
        %v2398 = vrot.slane %v2390, %v2397
        %v2400 = vunpack.c.l.s4 1934713408
        %v2401 = vunpack.c.0.s8 %v2400
        %v2402 = vlaneseq
        %v2403 = vshrl.u32 %v2402, 7
        %v2404 = vsub.s32 %v2401, %v2403
        %v2405 = vrot.slane %v2391, %v2404
        %v2406 = vcombine.low %v2382, %v2398
        %v2407 = vcombine.high %v2382, %v2398
        %v2408 = vcombine.low %v2389, %v2405
        %v2409 = vcombine.high %v2389, %v2405
        %2411 = vrot.lane.b32.xlu0 %v2407, 8
        %v2412 = vpop.permute.xlu0 %2411
        %2415 = vrot.lane.b32.xlu0 %v2408, 16
        %v2416 = vpop.permute.xlu0 %2415
        %2419 = vrot.lane.b32.xlu0 %v2409, 24
        %v2420 = vpop.permute.xlu0 %2419
        %v2422 = vsel %vm1619, %v2406, %v2412
        %vm2423 = vcmask 130048
        %v2424 = vsel %vm2423, %v2422, %v2416
        %vm2425 = vcmask 195584
        %v2426 = vsel %vm2425, %v2424, %v2420
        %v2427 = vld [vmem:[#allocation12] sm:$0xff]
        %v2428 = vld [vmem:[#allocation12 + $0x8] sm:$0xff]
        %v2429 = vld [vmem:[#allocation12 + $0x10] sm:$0xff]
        %v2430 = vld [vmem:[#allocation12 + $0x18] sm:$0xff]
        %v2431 = vld [vmem:[#allocation14] sm:$0x1]
        %v2433 = vlaneseq
        %v2434 = vshrl.u32 %v2433, 7
        %v2435 = vsub.s32 0, %v2434
        %v2436 = vrot.slane %v2431, %v2435
        %v2439 = vsel %vm945, %v2426, 0
        %2441 = vmatprep.subr.mxu0 0.0
        %2442 = vmatpush1.msra.mxu0 %v2427
        %2443 = vmatprep.subr.mxu0 0.0
        %2444 = vmatpush1.msra.mxu0 %v2428
        %2445 = vmatprep.subr.mxu0 0.0
        %2446 = vmatpush1.msra.mxu0 %v2429
        %2447 = vmatprep.subr.mxu0 0.0
        %2448 = vmatpush1.msra.mxu0 %v2430
        %2449 = vmatprep.subr.mxu0 0.0
        %2450 = vmatpush1.msra.mxu0 0.0
        %2451 = vmatprep.subr.mxu0 0.0
        %2452 = vmatpush1.msra.mxu0 0.0
        %2453 = vmatprep.subr.mxu0 0.0
        %2454 = vmatpush1.msra.mxu0 0.0
        %2455 = vmatprep.subr.mxu0 0.0
        %2456 = vmatpush1.msra.mxu0 0.0
        %2457 = vmatprep.subr.mxu0 0.0
        %2458 = vmatpush1.msra.mxu0 0.0
        %2459 = vmatprep.subr.mxu0 0.0
        %2460 = vmatpush1.msra.mxu0 0.0
        %2461 = vmatprep.subr.mxu0 0.0
        %2462 = vmatpush1.msra.mxu0 0.0
        %2463 = vmatprep.subr.mxu0 0.0
        %2464 = vmatpush1.msra.mxu0 0.0
        %2465 = vmatprep.subr.mxu0 0.0
        %2466 = vmatpush1.msra.mxu0 0.0
        %2467 = vmatprep.subr.mxu0 0.0
        %2468 = vmatpush1.msra.mxu0 0.0
        %2469 = vmatprep.subr.mxu0 0.0
        %2470 = vmatpush1.msra.mxu0 0.0
        %2471 = vmatprep.subr.mxu0 0.0
        %2472 = vmatpush1.msra.mxu0 0.0
        %2473 = vmatprep.subr.mxu0 0.0
        %2474 = vmatpush1.msra.mxu0 0.0
        %2475 = vmatprep.subr.mxu0 0.0
        %2476 = vmatpush1.msra.mxu0 0.0
        %2477 = vmatprep.subr.mxu0 0.0
        %2478 = vmatpush1.msra.mxu0 0.0
        %2479 = vmatprep.subr.mxu0 0.0
        %2480 = vmatpush1.msra.mxu0 0.0
        %2481 = vmatprep.subr.mxu0 0.0
        %2482 = vmatpush1.msra.mxu0 0.0
        %2483 = vmatprep.subr.mxu0 0.0
        %2484 = vmatpush1.msra.mxu0 0.0
        %2485 = vmatprep.subr.mxu0 0.0
        %2486 = vmatpush1.msra.mxu0 0.0
        %2487 = vmatprep.subr.mxu0 0.0
        %2488 = vmatpush1.msra.mxu0 0.0
        %2489 = vmatprep.subr.mxu0 0.0
        %2490 = vmatpush1.msra.mxu0 0.0
        %2491 = vmatprep.subr.mxu0 0.0
        %2492 = vmatpush1.msra.mxu0 0.0
        %2493 = vmatprep.subr.mxu0 0.0
        %2494 = vmatpush1.msra.mxu0 0.0
        %2495 = vmatprep.subr.mxu0 0.0
        %2496 = vmatpush1.msra.mxu0 0.0
        %2497 = vmatprep.subr.mxu0 0.0
        %2498 = vmatpush1.msra.mxu0 0.0
        %2499 = vmatprep.subr.mxu0 0.0
        %2500 = vmatpush1.msra.mxu0 0.0
        %2501 = vmatprep.subr.mxu0 0.0
        %2502 = vmatpush1.msra.mxu0 0.0
        %2503 = vmatprep.subr.mxu0 0.0
        %2504 = vmatpush1.msra.mxu0 0.0
        %2505 = vmatprep.mubr.f32.mxu0 0.0
        %2506 = vmatmul.mubr.f32.gmra.mrb[0].mxu0 %v2439
        %v2507 = vpop.f32.mrb[0].mxu0
        %v2508 = vadd.f32 %v2436, %v2507
        %v2509 = vpop.f32.mrb[0].mxu0
        %2510 = vdwg.mxu0
        %v2511 = vadd.f32 %v931, %v2508
        %v2512 = vld [vmem:[#allocation15] sm:$0x1]
        %v2513 = vld [vmem:[#allocation17] sm:$0x1]
        %v2514 = vsel %vm945, %v2511, 0.0
        %2515 = vadd.xlane.f32.xlu0 %v2514
        %v2516 = vpop.xlane.xlu0 %2515
        %v2517 = vrcp.pop 32.0
        %v2518 = vmul.f32 %v2516, %v2517
        %v2519 = vsub.f32 %v2511, %v2518
        %v2520 = vmul.f32 %v2519, %v2519
        %v2521 = vsel %vm945, %v2520, 0.0
        %2522 = vadd.xlane.f32.xlu0 %v2521
        %v2523 = vpop.xlane.xlu0 %2522
        %v2524 = vmul.f32 %v2523, %v2517
        %v2525 = vadd.f32 %v2524, 1e-05
        %v2526 = vrsqrt.pop %v2525
        %v2527 = vmul.f32 %v2519, %v2526
        %v2529 = vlaneseq
        %v2530 = vshrl.u32 %v2529, 7
        %v2531 = vsub.s32 0, %v2530
        %v2532 = vrot.slane %v2512, %v2531
        %v2534 = vmul.f32 %v2527, %v2532
        %v2536 = vlaneseq
        %v2537 = vshrl.u32 %v2536, 7
        %v2538 = vsub.s32 0, %v2537
        %v2539 = vrot.slane %v2513, %v2538
        %v2541 = vadd.f32 %v2534, %v2539
        %v2542 = vld [vmem:[#allocation18] sm:$0xff]
        %v2543 = vld [vmem:[#allocation18 + $0x8] sm:$0xff]
        %v2544 = vld [vmem:[#allocation18 + $0x10] sm:$0xff]
        %v2545 = vld [vmem:[#allocation18 + $0x18] sm:$0xff]
        %v2546 = vld [vmem:[#allocation20] sm:$0x1]
        %v2548 = vlaneseq
        %v2549 = vshrl.u32 %v2548, 7
        %v2550 = vsub.s32 0, %v2549
        %v2551 = vrot.slane %v2546, %v2550
        %v2554 = vsel %vm945, %v2541, 0
        %2556 = vmatprep.subr.mxu0 0.0
        %2557 = vmatpush1.msra.mxu0 %v2542
        %2558 = vmatprep.subr.mxu0 0.0
        %2559 = vmatpush1.msra.mxu0 %v2543
        %2560 = vmatprep.subr.mxu0 0.0
        %2561 = vmatpush1.msra.mxu0 %v2544
        %2562 = vmatprep.subr.mxu0 0.0
        %2563 = vmatpush1.msra.mxu0 %v2545
        %2564 = vmatprep.subr.mxu0 0.0
        %2565 = vmatpush1.msra.mxu0 0.0
        %2566 = vmatprep.subr.mxu0 0.0
        %2567 = vmatpush1.msra.mxu0 0.0
        %2568 = vmatprep.subr.mxu0 0.0
        %2569 = vmatpush1.msra.mxu0 0.0
        %2570 = vmatprep.subr.mxu0 0.0
        %2571 = vmatpush1.msra.mxu0 0.0
        %2572 = vmatprep.subr.mxu0 0.0
        %2573 = vmatpush1.msra.mxu0 0.0
        %2574 = vmatprep.subr.mxu0 0.0
        %2575 = vmatpush1.msra.mxu0 0.0
        %2576 = vmatprep.subr.mxu0 0.0
        %2577 = vmatpush1.msra.mxu0 0.0
        %2578 = vmatprep.subr.mxu0 0.0
        %2579 = vmatpush1.msra.mxu0 0.0
        %2580 = vmatprep.subr.mxu0 0.0
        %2581 = vmatpush1.msra.mxu0 0.0
        %2582 = vmatprep.subr.mxu0 0.0
        %2583 = vmatpush1.msra.mxu0 0.0
        %2584 = vmatprep.subr.mxu0 0.0
        %2585 = vmatpush1.msra.mxu0 0.0
        %2586 = vmatprep.subr.mxu0 0.0
        %2587 = vmatpush1.msra.mxu0 0.0
        %2588 = vmatprep.subr.mxu0 0.0
        %2589 = vmatpush1.msra.mxu0 0.0
        %2590 = vmatprep.subr.mxu0 0.0
        %2591 = vmatpush1.msra.mxu0 0.0
        %2592 = vmatprep.subr.mxu0 0.0
        %2593 = vmatpush1.msra.mxu0 0.0
        %2594 = vmatprep.subr.mxu0 0.0
        %2595 = vmatpush1.msra.mxu0 0.0
        %2596 = vmatprep.subr.mxu0 0.0
        %2597 = vmatpush1.msra.mxu0 0.0
        %2598 = vmatprep.subr.mxu0 0.0
        %2599 = vmatpush1.msra.mxu0 0.0
        %2600 = vmatprep.subr.mxu0 0.0
        %2601 = vmatpush1.msra.mxu0 0.0
        %2602 = vmatprep.subr.mxu0 0.0
        %2603 = vmatpush1.msra.mxu0 0.0
        %2604 = vmatprep.subr.mxu0 0.0
        %2605 = vmatpush1.msra.mxu0 0.0
        %2606 = vmatprep.subr.mxu0 0.0
        %2607 = vmatpush1.msra.mxu0 0.0
        %2608 = vmatprep.subr.mxu0 0.0
        %2609 = vmatpush1.msra.mxu0 0.0
        %2610 = vmatprep.subr.mxu0 0.0
        %2611 = vmatpush1.msra.mxu0 0.0
        %2612 = vmatprep.subr.mxu0 0.0
        %2613 = vmatpush1.msra.mxu0 0.0
        %2614 = vmatprep.subr.mxu0 0.0
        %2615 = vmatpush1.msra.mxu0 0.0
        %2616 = vmatprep.subr.mxu0 0.0
        %2617 = vmatpush1.msra.mxu0 0.0
        %2618 = vmatprep.subr.mxu0 0.0
        %2619 = vmatpush1.msra.mxu0 0.0
        %2620 = vmatprep.mubr.f32.mxu0 0.0
        %2621 = vmatmul.mubr.f32.gmra.mrb[0].mxu0 %v2554
        %v2622 = vpop.f32.mrb[0].mxu0
        %v2623 = vadd.f32 %v2551, %v2622
        %v2624 = vpop.f32.mrb[0].mxu0
        %2625 = vdwg.mxu0
        %v2626 = vmax.f32 %v2623, 0.0
        %v2627 = vld [vmem:[%s15] sm:$0xff]
        %v2628 = vld [vmem:[%s15 + $0x8] sm:$0xff]
        %v2629 = vld [vmem:[%s15 + $0x10] sm:$0xff]
        %v2630 = vld [vmem:[%s15 + $0x18] sm:$0xff]
        %v2631 = vld [vmem:[%s15 + $0x20] sm:$0xff]
        %v2632 = vld [vmem:[%s15 + $0x28] sm:$0xff]
        %v2633 = vld [vmem:[%s15 + $0x30] sm:$0xff]
        %v2634 = vld [vmem:[%s15 + $0x38] sm:$0xff]
        %v2635 = vld [vmem:[#allocation21] sm:$0x1]
        %v2637 = vlaneseq
        %v2638 = vshrl.u32 %v2637, 7
        %v2639 = vsub.s32 0, %v2638
        %v2640 = vrot.slane %v2635, %v2639
        %vm2642 = vcmask 523264
        %v2644 = vsel %vm2642, %v2626, 0
        %2646 = vmatprep.subr.mxu0 0.0
        %2647 = vmatpush1.msra.mxu0 %v2627
        %2648 = vmatprep.subr.mxu0 0.0
        %2649 = vmatpush1.msra.mxu0 %v2628
        %2650 = vmatprep.subr.mxu0 0.0
        %2651 = vmatpush1.msra.mxu0 %v2629
        %2652 = vmatprep.subr.mxu0 0.0
        %2653 = vmatpush1.msra.mxu0 %v2630
        %2654 = vmatprep.subr.mxu0 0.0
        %2655 = vmatpush1.msra.mxu0 %v2631
        %2656 = vmatprep.subr.mxu0 0.0
        %2657 = vmatpush1.msra.mxu0 %v2632
        %2658 = vmatprep.subr.mxu0 0.0
        %2659 = vmatpush1.msra.mxu0 %v2633
        %2660 = vmatprep.subr.mxu0 0.0
        %2661 = vmatpush1.msra.mxu0 %v2634
        %2662 = vmatprep.subr.mxu0 0.0
        %2663 = vmatpush1.msra.mxu0 0.0
        %2664 = vmatprep.subr.mxu0 0.0
        %2665 = vmatpush1.msra.mxu0 0.0
        %2666 = vmatprep.subr.mxu0 0.0
        %2667 = vmatpush1.msra.mxu0 0.0
        %2668 = vmatprep.subr.mxu0 0.0
        %2669 = vmatpush1.msra.mxu0 0.0
        %2670 = vmatprep.subr.mxu0 0.0
        %2671 = vmatpush1.msra.mxu0 0.0
        %2672 = vmatprep.subr.mxu0 0.0
        %2673 = vmatpush1.msra.mxu0 0.0
        %2674 = vmatprep.subr.mxu0 0.0
        %2675 = vmatpush1.msra.mxu0 0.0
        %2676 = vmatprep.subr.mxu0 0.0
        %2677 = vmatpush1.msra.mxu0 0.0
        %2678 = vmatprep.subr.mxu0 0.0
        %2679 = vmatpush1.msra.mxu0 0.0
        %2680 = vmatprep.subr.mxu0 0.0
        %2681 = vmatpush1.msra.mxu0 0.0
        %2682 = vmatprep.subr.mxu0 0.0
        %2683 = vmatpush1.msra.mxu0 0.0
        %2684 = vmatprep.subr.mxu0 0.0
        %2685 = vmatpush1.msra.mxu0 0.0
        %2686 = vmatprep.subr.mxu0 0.0
        %2687 = vmatpush1.msra.mxu0 0.0
        %2688 = vmatprep.subr.mxu0 0.0
        %2689 = vmatpush1.msra.mxu0 0.0
        %2690 = vmatprep.subr.mxu0 0.0
        %2691 = vmatpush1.msra.mxu0 0.0
        %2692 = vmatprep.subr.mxu0 0.0
        %2693 = vmatpush1.msra.mxu0 0.0
        %2694 = vmatprep.subr.mxu0 0.0
        %2695 = vmatpush1.msra.mxu0 0.0
        %2696 = vmatprep.subr.mxu0 0.0
        %2697 = vmatpush1.msra.mxu0 0.0
        %2698 = vmatprep.subr.mxu0 0.0
        %2699 = vmatpush1.msra.mxu0 0.0
        %2700 = vmatprep.subr.mxu0 0.0
        %2701 = vmatpush1.msra.mxu0 0.0
        %2702 = vmatprep.subr.mxu0 0.0
        %2703 = vmatpush1.msra.mxu0 0.0
        %2704 = vmatprep.subr.mxu0 0.0
        %2705 = vmatpush1.msra.mxu0 0.0
        %2706 = vmatprep.subr.mxu0 0.0
        %2707 = vmatpush1.msra.mxu0 0.0
        %2708 = vmatprep.subr.mxu0 0.0
        %2709 = vmatpush1.msra.mxu0 0.0
        %2710 = vmatprep.mubr.f32.mxu0 0.0
        %2711 = vmatmul.mubr.f32.gmra.mrb[0].mxu0 %v2644
        %v2712 = vpop.f32.mrb[0].mxu0
        %v2713 = vadd.f32 %v2640, %v2712
        %v2714 = vpop.f32.mrb[0].mxu0
        %2715 = vdwg.mxu0
        %v2716 = vadd.f32 %v2541, %v2713
        %v2717 = vld [vmem:[#allocation23] sm:$0x1]
        %v2718 = vld [vmem:[%s18] sm:$0x1]
        %v2719 = vsel %vm945, %v2716, 0.0
        %2720 = vadd.xlane.f32.xlu0 %v2719
        %v2721 = vpop.xlane.xlu0 %2720
        %v2722 = vmul.f32 %v2721, %v2517
        %v2723 = vsub.f32 %v2716, %v2722
        %v2724 = vmul.f32 %v2723, %v2723
        %v2725 = vsel %vm945, %v2724, 0.0
        %2726 = vadd.xlane.f32.xlu0 %v2725
        %v2727 = vpop.xlane.xlu0 %2726
        %v2728 = vmul.f32 %v2727, %v2517
        %v2729 = vadd.f32 %v2728, 1e-05
        %v2730 = vrsqrt.pop %v2729
        %v2731 = vmul.f32 %v2723, %v2730
        %v2733 = vlaneseq
        %v2734 = vshrl.u32 %v2733, 7
        %v2735 = vsub.s32 0, %v2734
        %v2736 = vrot.slane %v2717, %v2735
        %v2738 = vmul.f32 %v2731, %v2736
        %v2740 = vlaneseq
        %v2741 = vshrl.u32 %v2740, 7
        %v2742 = vsub.s32 0, %v2741
        %v2743 = vrot.slane %v2718, %v2742
        %v2745 = vadd.f32 %v2738, %v2743
        %s2746 = scalar_lea.vmem %s3, 32
        %v2747 = vld [vmem:[%s2746] sm:$0xff]
        %v2748 = vld [vmem:[%s2746 + $0x8] sm:$0xff]
        %v2749 = vld [vmem:[%s2746 + $0x10] sm:$0xff]
        %v2750 = vld [vmem:[%s2746 + $0x18] sm:$0xff]
        %s2751 = scalar_lea.vmem [#allocation8], 1
        %v2752 = vld [vmem:[%s2751] sm:$0x1]
        %v2754 = vlaneseq
        %v2755 = vshrl.u32 %v2754, 7
        %v2756 = vsub.s32 0, %v2755
        %v2757 = vrot.slane %v2752, %v2756
        %v2760 = vsel %vm945, %v2745, 0
        %2762 = vmatprep.subr.mxu0 0.0
        %2763 = vmatpush1.msra.mxu0 %v2747
        %2764 = vmatprep.subr.mxu0 0.0
        %2765 = vmatpush1.msra.mxu0 %v2748
        %2766 = vmatprep.subr.mxu0 0.0
        %2767 = vmatpush1.msra.mxu0 %v2749
        %2768 = vmatprep.subr.mxu0 0.0
        %2769 = vmatpush1.msra.mxu0 %v2750
        %2770 = vmatprep.subr.mxu0 0.0
        %2771 = vmatpush1.msra.mxu0 0.0
        %2772 = vmatprep.subr.mxu0 0.0
        %2773 = vmatpush1.msra.mxu0 0.0
        %2774 = vmatprep.subr.mxu0 0.0
        %2775 = vmatpush1.msra.mxu0 0.0
        %2776 = vmatprep.subr.mxu0 0.0
        %2777 = vmatpush1.msra.mxu0 0.0
        %2778 = vmatprep.subr.mxu0 0.0
        %2779 = vmatpush1.msra.mxu0 0.0
        %2780 = vmatprep.subr.mxu0 0.0
        %2781 = vmatpush1.msra.mxu0 0.0
        %2782 = vmatprep.subr.mxu0 0.0
        %2783 = vmatpush1.msra.mxu0 0.0
        %2784 = vmatprep.subr.mxu0 0.0
        %2785 = vmatpush1.msra.mxu0 0.0
        %2786 = vmatprep.subr.mxu0 0.0
        %2787 = vmatpush1.msra.mxu0 0.0
        %2788 = vmatprep.subr.mxu0 0.0
        %2789 = vmatpush1.msra.mxu0 0.0
        %2790 = vmatprep.subr.mxu0 0.0
        %2791 = vmatpush1.msra.mxu0 0.0
        %2792 = vmatprep.subr.mxu0 0.0
        %2793 = vmatpush1.msra.mxu0 0.0
        %2794 = vmatprep.subr.mxu0 0.0
        %2795 = vmatpush1.msra.mxu0 0.0
        %2796 = vmatprep.subr.mxu0 0.0
        %2797 = vmatpush1.msra.mxu0 0.0
        %2798 = vmatprep.subr.mxu0 0.0
        %2799 = vmatpush1.msra.mxu0 0.0
        %2800 = vmatprep.subr.mxu0 0.0
        %2801 = vmatpush1.msra.mxu0 0.0
        %2802 = vmatprep.subr.mxu0 0.0
        %2803 = vmatpush1.msra.mxu0 0.0
        %2804 = vmatprep.subr.mxu0 0.0
        %2805 = vmatpush1.msra.mxu0 0.0
        %2806 = vmatprep.subr.mxu0 0.0
        %2807 = vmatpush1.msra.mxu0 0.0
        %2808 = vmatprep.subr.mxu0 0.0
        %2809 = vmatpush1.msra.mxu0 0.0
        %2810 = vmatprep.subr.mxu0 0.0
        %2811 = vmatpush1.msra.mxu0 0.0
        %2812 = vmatprep.subr.mxu0 0.0
        %2813 = vmatpush1.msra.mxu0 0.0
        %2814 = vmatprep.subr.mxu0 0.0
        %2815 = vmatpush1.msra.mxu0 0.0
        %2816 = vmatprep.subr.mxu0 0.0
        %2817 = vmatpush1.msra.mxu0 0.0
        %2818 = vmatprep.subr.mxu0 0.0
        %2819 = vmatpush1.msra.mxu0 0.0
        %2820 = vmatprep.subr.mxu0 0.0
        %2821 = vmatpush1.msra.mxu0 0.0
        %2822 = vmatprep.subr.mxu0 0.0
        %2823 = vmatpush1.msra.mxu0 0.0
        %2824 = vmatprep.subr.mxu0 0.0
        %2825 = vmatpush1.msra.mxu0 0.0
        %2826 = vmatprep.mubr.f32.mxu0 0.0
        %2827 = vmatmul.mubr.f32.gmra.mrb[0].mxu0 %v2760
        %v2828 = vpop.f32.mrb[0].mxu0
        %v2829 = vadd.f32 %v2757, %v2828
        %v2830 = vpop.f32.mrb[0].mxu0
        %2831 = vdwg.mxu0
        %s2832 = scalar_lea.vmem %s5, 32
        %v2833 = vld [vmem:[%s2832] sm:$0xff]
        %v2834 = vld [vmem:[%s2832 + $0x8] sm:$0xff]
        %v2835 = vld [vmem:[%s2832 + $0x10] sm:$0xff]
        %v2836 = vld [vmem:[%s2832 + $0x18] sm:$0xff]
        %s2837 = scalar_lea.vmem [#allocation9], 1
        %v2838 = vld [vmem:[%s2837] sm:$0x1]
        %v2840 = vlaneseq
        %v2841 = vshrl.u32 %v2840, 7
        %v2842 = vsub.s32 0, %v2841
        %v2843 = vrot.slane %v2838, %v2842
        %2845 = vmatprep.subr.mxu0 0.0
        %2846 = vmatpush1.msra.mxu0 %v2833
        %2847 = vmatprep.subr.mxu0 0.0
        %2848 = vmatpush1.msra.mxu0 %v2834
        %2849 = vmatprep.subr.mxu0 0.0
        %2850 = vmatpush1.msra.mxu0 %v2835
        %2851 = vmatprep.subr.mxu0 0.0
        %2852 = vmatpush1.msra.mxu0 %v2836
        %2853 = vmatprep.subr.mxu0 0.0
        %2854 = vmatpush1.msra.mxu0 0.0
        %2855 = vmatprep.subr.mxu0 0.0
        %2856 = vmatpush1.msra.mxu0 0.0
        %2857 = vmatprep.subr.mxu0 0.0
        %2858 = vmatpush1.msra.mxu0 0.0
        %2859 = vmatprep.subr.mxu0 0.0
        %2860 = vmatpush1.msra.mxu0 0.0
        %2861 = vmatprep.subr.mxu0 0.0
        %2862 = vmatpush1.msra.mxu0 0.0
        %2863 = vmatprep.subr.mxu0 0.0
        %2864 = vmatpush1.msra.mxu0 0.0
        %2865 = vmatprep.subr.mxu0 0.0
        %2866 = vmatpush1.msra.mxu0 0.0
        %2867 = vmatprep.subr.mxu0 0.0
        %2868 = vmatpush1.msra.mxu0 0.0
        %2869 = vmatprep.subr.mxu0 0.0
        %2870 = vmatpush1.msra.mxu0 0.0
        %2871 = vmatprep.subr.mxu0 0.0
        %2872 = vmatpush1.msra.mxu0 0.0
        %2873 = vmatprep.subr.mxu0 0.0
        %2874 = vmatpush1.msra.mxu0 0.0
        %2875 = vmatprep.subr.mxu0 0.0
        %2876 = vmatpush1.msra.mxu0 0.0
        %2877 = vmatprep.subr.mxu0 0.0
        %2878 = vmatpush1.msra.mxu0 0.0
        %2879 = vmatprep.subr.mxu0 0.0
        %2880 = vmatpush1.msra.mxu0 0.0
        %2881 = vmatprep.subr.mxu0 0.0
        %2882 = vmatpush1.msra.mxu0 0.0
        %2883 = vmatprep.subr.mxu0 0.0
        %2884 = vmatpush1.msra.mxu0 0.0
        %2885 = vmatprep.subr.mxu0 0.0
        %2886 = vmatpush1.msra.mxu0 0.0
        %2887 = vmatprep.subr.mxu0 0.0
        %2888 = vmatpush1.msra.mxu0 0.0
        %2889 = vmatprep.subr.mxu0 0.0
        %2890 = vmatpush1.msra.mxu0 0.0
        %2891 = vmatprep.subr.mxu0 0.0
        %2892 = vmatpush1.msra.mxu0 0.0
        %2893 = vmatprep.subr.mxu0 0.0
        %2894 = vmatpush1.msra.mxu0 0.0
        %2895 = vmatprep.subr.mxu0 0.0
        %2896 = vmatpush1.msra.mxu0 0.0
        %2897 = vmatprep.subr.mxu0 0.0
        %2898 = vmatpush1.msra.mxu0 0.0
        %2899 = vmatprep.subr.mxu0 0.0
        %2900 = vmatpush1.msra.mxu0 0.0
        %2901 = vmatprep.subr.mxu0 0.0
        %2902 = vmatpush1.msra.mxu0 0.0
        %2903 = vmatprep.subr.mxu0 0.0
        %2904 = vmatpush1.msra.mxu0 0.0
        %2905 = vmatprep.subr.mxu0 0.0
        %2906 = vmatpush1.msra.mxu0 0.0
        %2907 = vmatprep.subr.mxu0 0.0
        %2908 = vmatpush1.msra.mxu0 0.0
        %2909 = vmatprep.mubr.f32.mxu0 0.0
        %2910 = vmatmul.mubr.f32.gmra.mrb[0].mxu0 %v2760
        %v2911 = vpop.f32.mrb[0].mxu0
        %v2912 = vadd.f32 %v2843, %v2911
        %v2913 = vpop.f32.mrb[0].mxu0
        %2914 = vdwg.mxu0
        %s2915 = scalar_lea.vmem %s7, 32
        %v2916 = vld [vmem:[%s2915] sm:$0xff]
        %v2917 = vld [vmem:[%s2915 + $0x8] sm:$0xff]
        %v2918 = vld [vmem:[%s2915 + $0x10] sm:$0xff]
        %v2919 = vld [vmem:[%s2915 + $0x18] sm:$0xff]
        %s2920 = scalar_lea.vmem [#allocation11], 1
        %v2921 = vld [vmem:[%s2920] sm:$0x1]
        %v2923 = vlaneseq
        %v2924 = vshrl.u32 %v2923, 7
        %v2925 = vsub.s32 0, %v2924
        %v2926 = vrot.slane %v2921, %v2925
        %2928 = vmatprep.subr.mxu0 0.0
        %2929 = vmatpush1.msra.mxu0 %v2916
        %2930 = vmatprep.subr.mxu0 0.0
        %2931 = vmatpush1.msra.mxu0 %v2917
        %2932 = vmatprep.subr.mxu0 0.0
        %2933 = vmatpush1.msra.mxu0 %v2918
        %2934 = vmatprep.subr.mxu0 0.0
        %2935 = vmatpush1.msra.mxu0 %v2919
        %2936 = vmatprep.subr.mxu0 0.0
        %2937 = vmatpush1.msra.mxu0 0.0
        %2938 = vmatprep.subr.mxu0 0.0
        %2939 = vmatpush1.msra.mxu0 0.0
        %2940 = vmatprep.subr.mxu0 0.0
        %2941 = vmatpush1.msra.mxu0 0.0
        %2942 = vmatprep.subr.mxu0 0.0
        %2943 = vmatpush1.msra.mxu0 0.0
        %2944 = vmatprep.subr.mxu0 0.0
        %2945 = vmatpush1.msra.mxu0 0.0
        %2946 = vmatprep.subr.mxu0 0.0
        %2947 = vmatpush1.msra.mxu0 0.0
        %2948 = vmatprep.subr.mxu0 0.0
        %2949 = vmatpush1.msra.mxu0 0.0
        %2950 = vmatprep.subr.mxu0 0.0
        %2951 = vmatpush1.msra.mxu0 0.0
        %2952 = vmatprep.subr.mxu0 0.0
        %2953 = vmatpush1.msra.mxu0 0.0
        %2954 = vmatprep.subr.mxu0 0.0
        %2955 = vmatpush1.msra.mxu0 0.0
        %2956 = vmatprep.subr.mxu0 0.0
        %2957 = vmatpush1.msra.mxu0 0.0
        %2958 = vmatprep.subr.mxu0 0.0
        %2959 = vmatpush1.msra.mxu0 0.0
        %2960 = vmatprep.subr.mxu0 0.0
        %2961 = vmatpush1.msra.mxu0 0.0
        %2962 = vmatprep.subr.mxu0 0.0
        %2963 = vmatpush1.msra.mxu0 0.0
        %2964 = vmatprep.subr.mxu0 0.0
        %2965 = vmatpush1.msra.mxu0 0.0
        %2966 = vmatprep.subr.mxu0 0.0
        %2967 = vmatpush1.msra.mxu0 0.0
        %2968 = vmatprep.subr.mxu0 0.0
        %2969 = vmatpush1.msra.mxu0 0.0
        %2970 = vmatprep.subr.mxu0 0.0
        %2971 = vmatpush1.msra.mxu0 0.0
        %2972 = vmatprep.subr.mxu0 0.0
        %2973 = vmatpush1.msra.mxu0 0.0
        %2974 = vmatprep.subr.mxu0 0.0
        %2975 = vmatpush1.msra.mxu0 0.0
        %2976 = vmatprep.subr.mxu0 0.0
        %2977 = vmatpush1.msra.mxu0 0.0
        %2978 = vmatprep.subr.mxu0 0.0
        %2979 = vmatpush1.msra.mxu0 0.0
        %2980 = vmatprep.subr.mxu0 0.0
        %2981 = vmatpush1.msra.mxu0 0.0
        %2982 = vmatprep.subr.mxu0 0.0
        %2983 = vmatpush1.msra.mxu0 0.0
        %2984 = vmatprep.subr.mxu0 0.0
        %2985 = vmatpush1.msra.mxu0 0.0
        %2986 = vmatprep.subr.mxu0 0.0
        %2987 = vmatpush1.msra.mxu0 0.0
        %2988 = vmatprep.subr.mxu0 0.0
        %2989 = vmatpush1.msra.mxu0 0.0
        %2990 = vmatprep.subr.mxu0 0.0
        %2991 = vmatpush1.msra.mxu0 0.0
        %2992 = vmatprep.mubr.f32.mxu0 0.0
        %2993 = vmatmul.mubr.f32.gmra.mrb[0].mxu0 %v2760
        %v2994 = vpop.f32.mrb[0].mxu0
        %v2995 = vadd.f32 %v2926, %v2994
        %v2996 = vpop.f32.mrb[0].mxu0
        %2997 = vdwg.mxu0
        %2999 = vrot.lane.b32.xlu0 %v2829, 120
        %v3000 = vpop.permute.xlu0 %2999
        %3002 = vrot.lane.b32.xlu0 %v2829, 112
        %v3003 = vpop.permute.xlu0 %3002
        %3005 = vrot.lane.b32.xlu0 %v2829, 104
        %v3006 = vpop.permute.xlu0 %3005
        %v3008 = vcombine.low %v2829, %v3003
        %v3009 = vcombine.high %v2829, %v3003
        %v3011 = vunpack.c.l.s4 1983009808
        %v3012 = vunpack.c.0.s8 %v3011
        %v3013 = vlaneseq
        %v3014 = vshrl.u32 %v3013, 7
        %v3015 = vsub.s32 %v3012, %v3014
        %v3016 = vrot.slane %v3008, %v3015
        %v3018 = vunpack.c.l.s4 1983009808
        %v3019 = vunpack.c.0.s8 %v3018
        %v3020 = vlaneseq
        %v3021 = vshrl.u32 %v3020, 7
        %v3022 = vsub.s32 %v3019, %v3021
        %v3023 = vrot.slane %v3009, %v3022
        %v3024 = vcombine.low %v3000, %v3006
        %v3025 = vcombine.high %v3000, %v3006
        %v3027 = vunpack.c.l.s4 1983009808
        %v3028 = vunpack.c.0.s8 %v3027
        %v3029 = vlaneseq
        %v3030 = vshrl.u32 %v3029, 7
        %v3031 = vsub.s32 %v3028, %v3030
        %v3032 = vrot.slane %v3024, %v3031
        %v3034 = vunpack.c.l.s4 1983009808
        %v3035 = vunpack.c.0.s8 %v3034
        %v3036 = vlaneseq
        %v3037 = vshrl.u32 %v3036, 7
        %v3038 = vsub.s32 %v3035, %v3037
        %v3039 = vrot.slane %v3025, %v3038
        %v3040 = vcombine.low %v3016, %v3032
        %v3041 = vcombine.high %v3016, %v3032
        %v3043 = vunpack.c.l.s4 1934713408
        %v3044 = vunpack.c.0.s8 %v3043
        %v3045 = vlaneseq
        %v3046 = vshrl.u32 %v3045, 7
        %v3047 = vsub.s32 %v3044, %v3046
        %v3048 = vrot.slane %v3040, %v3047
        %v3050 = vunpack.c.l.s4 1934713408
        %v3051 = vunpack.c.0.s8 %v3050
        %v3052 = vlaneseq
        %v3053 = vshrl.u32 %v3052, 7
        %v3054 = vsub.s32 %v3051, %v3053
        %v3055 = vrot.slane %v3041, %v3054
        %v3056 = vcombine.low %v3023, %v3039
        %v3057 = vcombine.high %v3023, %v3039
        %v3059 = vunpack.c.l.s4 1934713408
        %v3060 = vunpack.c.0.s8 %v3059
        %v3061 = vlaneseq
        %v3062 = vshrl.u32 %v3061, 7
        %v3063 = vsub.s32 %v3060, %v3062
        %v3064 = vrot.slane %v3056, %v3063
        %v3066 = vunpack.c.l.s4 1934713408
        %v3067 = vunpack.c.0.s8 %v3066
        %v3068 = vlaneseq
        %v3069 = vshrl.u32 %v3068, 7
        %v3070 = vsub.s32 %v3067, %v3069
        %v3071 = vrot.slane %v3057, %v3070
        %v3072 = vcombine.high %v3048, 0.0
        %v3073 = vcombine.high %v3055, 0.0
        %v3074 = vcombine.high %v3064, 0.0
        %v3075 = vcombine.high %v3071, 0.0
        %v3076 = vcombine.low %v3048, %v3055
        %v3078 = vunpack.c.l.s4 1983009808
        %v3079 = vunpack.c.0.s8 %v3078
        %v3080 = vlaneseq
        %v3081 = vshrl.u32 %v3080, 7
        %v3082 = vsub.s32 %v3079, %v3081
        %v3083 = vrot.slane %v3076, %v3082
        %v3084 = vcombine.low %v3072, %v3073
        %v3086 = vunpack.c.l.s4 1983009808
        %v3087 = vunpack.c.0.s8 %v3086
        %v3088 = vlaneseq
        %v3089 = vshrl.u32 %v3088, 7
        %v3090 = vsub.s32 %v3087, %v3089
        %v3091 = vrot.slane %v3084, %v3090
        %v3092 = vcombine.low %v3064, %v3071
        %v3094 = vunpack.c.l.s4 1983009808
        %v3095 = vunpack.c.0.s8 %v3094
        %v3096 = vlaneseq
        %v3097 = vshrl.u32 %v3096, 7
        %v3098 = vsub.s32 %v3095, %v3097
        %v3099 = vrot.slane %v3092, %v3098
        %v3100 = vcombine.low %v3074, %v3075
        %v3102 = vunpack.c.l.s4 1983009808
        %v3103 = vunpack.c.0.s8 %v3102
        %v3104 = vlaneseq
        %v3105 = vshrl.u32 %v3104, 7
        %v3106 = vsub.s32 %v3103, %v3105
        %v3107 = vrot.slane %v3100, %v3106
        %v3108 = vcombine.low %v3083, %v3091
        %v3109 = vcombine.high %v3083, %v3091
        %v3111 = vunpack.c.l.s4 1934713408
        %v3112 = vunpack.c.0.s8 %v3111
        %v3113 = vlaneseq
        %v3114 = vshrl.u32 %v3113, 7
        %v3115 = vsub.s32 %v3112, %v3114
        %v3116 = vrot.slane %v3108, %v3115
        %v3118 = vunpack.c.l.s4 1934713408
        %v3119 = vunpack.c.0.s8 %v3118
        %v3120 = vlaneseq
        %v3121 = vshrl.u32 %v3120, 7
        %v3122 = vsub.s32 %v3119, %v3121
        %v3123 = vrot.slane %v3109, %v3122
        %v3124 = vcombine.low %v3099, %v3107
        %v3125 = vcombine.high %v3099, %v3107
        %v3127 = vunpack.c.l.s4 1934713408
        %v3128 = vunpack.c.0.s8 %v3127
        %v3129 = vlaneseq
        %v3130 = vshrl.u32 %v3129, 7
        %v3131 = vsub.s32 %v3128, %v3130
        %v3132 = vrot.slane %v3124, %v3131
        %v3134 = vunpack.c.l.s4 1934713408
        %v3135 = vunpack.c.0.s8 %v3134
        %v3136 = vlaneseq
        %v3137 = vshrl.u32 %v3136, 7
        %v3138 = vsub.s32 %v3135, %v3137
        %v3139 = vrot.slane %v3125, %v3138
        %v3140 = vcombine.low %v3116, %v3132
        %v3141 = vcombine.high %v3116, %v3132
        %v3142 = vcombine.low %v3123, %v3139
        %v3143 = vcombine.high %v3123, %v3139
        %3145 = vrot.lane.b32.xlu0 %v2912, 120
        %v3146 = vpop.permute.xlu0 %3145
        %3148 = vrot.lane.b32.xlu0 %v2912, 112
        %v3149 = vpop.permute.xlu0 %3148
        %3151 = vrot.lane.b32.xlu0 %v2912, 104
        %v3152 = vpop.permute.xlu0 %3151
        %v3154 = vcombine.low %v2912, %v3149
        %v3155 = vcombine.high %v2912, %v3149
        %v3157 = vunpack.c.l.s4 1983009808
        %v3158 = vunpack.c.0.s8 %v3157
        %v3159 = vlaneseq
        %v3160 = vshrl.u32 %v3159, 7
        %v3161 = vsub.s32 %v3158, %v3160
        %v3162 = vrot.slane %v3154, %v3161
        %v3164 = vunpack.c.l.s4 1983009808
        %v3165 = vunpack.c.0.s8 %v3164
        %v3166 = vlaneseq
        %v3167 = vshrl.u32 %v3166, 7
        %v3168 = vsub.s32 %v3165, %v3167
        %v3169 = vrot.slane %v3155, %v3168
        %v3170 = vcombine.low %v3146, %v3152
        %v3171 = vcombine.high %v3146, %v3152
        %v3173 = vunpack.c.l.s4 1983009808
        %v3174 = vunpack.c.0.s8 %v3173
        %v3175 = vlaneseq
        %v3176 = vshrl.u32 %v3175, 7
        %v3177 = vsub.s32 %v3174, %v3176
        %v3178 = vrot.slane %v3170, %v3177
        %v3180 = vunpack.c.l.s4 1983009808
        %v3181 = vunpack.c.0.s8 %v3180
        %v3182 = vlaneseq
        %v3183 = vshrl.u32 %v3182, 7
        %v3184 = vsub.s32 %v3181, %v3183
        %v3185 = vrot.slane %v3171, %v3184
        %v3186 = vcombine.low %v3162, %v3178
        %v3187 = vcombine.high %v3162, %v3178
        %v3189 = vunpack.c.l.s4 1934713408
        %v3190 = vunpack.c.0.s8 %v3189
        %v3191 = vlaneseq
        %v3192 = vshrl.u32 %v3191, 7
        %v3193 = vsub.s32 %v3190, %v3192
        %v3194 = vrot.slane %v3186, %v3193
        %v3196 = vunpack.c.l.s4 1934713408
        %v3197 = vunpack.c.0.s8 %v3196
        %v3198 = vlaneseq
        %v3199 = vshrl.u32 %v3198, 7
        %v3200 = vsub.s32 %v3197, %v3199
        %v3201 = vrot.slane %v3187, %v3200
        %v3202 = vcombine.low %v3169, %v3185
        %v3203 = vcombine.high %v3169, %v3185
        %v3205 = vunpack.c.l.s4 1934713408
        %v3206 = vunpack.c.0.s8 %v3205
        %v3207 = vlaneseq
        %v3208 = vshrl.u32 %v3207, 7
        %v3209 = vsub.s32 %v3206, %v3208
        %v3210 = vrot.slane %v3202, %v3209
        %v3212 = vunpack.c.l.s4 1934713408
        %v3213 = vunpack.c.0.s8 %v3212
        %v3214 = vlaneseq
        %v3215 = vshrl.u32 %v3214, 7
        %v3216 = vsub.s32 %v3213, %v3215
        %v3217 = vrot.slane %v3203, %v3216
        %v3218 = vcombine.high %v3194, 0.0
        %v3219 = vcombine.high %v3201, 0.0
        %v3220 = vcombine.high %v3210, 0.0
        %v3221 = vcombine.high %v3217, 0.0
        %v3222 = vcombine.low %v3194, %v3201
        %v3224 = vunpack.c.l.s4 1983009808
        %v3225 = vunpack.c.0.s8 %v3224
        %v3226 = vlaneseq
        %v3227 = vshrl.u32 %v3226, 7
        %v3228 = vsub.s32 %v3225, %v3227
        %v3229 = vrot.slane %v3222, %v3228
        %v3230 = vcombine.low %v3218, %v3219
        %v3232 = vunpack.c.l.s4 1983009808
        %v3233 = vunpack.c.0.s8 %v3232
        %v3234 = vlaneseq
        %v3235 = vshrl.u32 %v3234, 7
        %v3236 = vsub.s32 %v3233, %v3235
        %v3237 = vrot.slane %v3230, %v3236
        %v3238 = vcombine.low %v3210, %v3217
        %v3240 = vunpack.c.l.s4 1983009808
        %v3241 = vunpack.c.0.s8 %v3240
        %v3242 = vlaneseq
        %v3243 = vshrl.u32 %v3242, 7
        %v3244 = vsub.s32 %v3241, %v3243
        %v3245 = vrot.slane %v3238, %v3244
        %v3246 = vcombine.low %v3220, %v3221
        %v3248 = vunpack.c.l.s4 1983009808
        %v3249 = vunpack.c.0.s8 %v3248
        %v3250 = vlaneseq
        %v3251 = vshrl.u32 %v3250, 7
        %v3252 = vsub.s32 %v3249, %v3251
        %v3253 = vrot.slane %v3246, %v3252
        %v3254 = vcombine.low %v3229, %v3237
        %v3255 = vcombine.high %v3229, %v3237
        %v3257 = vunpack.c.l.s4 1934713408
        %v3258 = vunpack.c.0.s8 %v3257
        %v3259 = vlaneseq
        %v3260 = vshrl.u32 %v3259, 7
        %v3261 = vsub.s32 %v3258, %v3260
        %v3262 = vrot.slane %v3254, %v3261
        %v3264 = vunpack.c.l.s4 1934713408
        %v3265 = vunpack.c.0.s8 %v3264
        %v3266 = vlaneseq
        %v3267 = vshrl.u32 %v3266, 7
        %v3268 = vsub.s32 %v3265, %v3267
        %v3269 = vrot.slane %v3255, %v3268
        %v3270 = vcombine.low %v3245, %v3253
        %v3271 = vcombine.high %v3245, %v3253
        %v3273 = vunpack.c.l.s4 1934713408
        %v3274 = vunpack.c.0.s8 %v3273
        %v3275 = vlaneseq
        %v3276 = vshrl.u32 %v3275, 7
        %v3277 = vsub.s32 %v3274, %v3276
        %v3278 = vrot.slane %v3270, %v3277
        %v3280 = vunpack.c.l.s4 1934713408
        %v3281 = vunpack.c.0.s8 %v3280
        %v3282 = vlaneseq
        %v3283 = vshrl.u32 %v3282, 7
        %v3284 = vsub.s32 %v3281, %v3283
        %v3285 = vrot.slane %v3271, %v3284
        %v3286 = vcombine.low %v3262, %v3278
        %v3287 = vcombine.high %v3262, %v3278
        %v3288 = vcombine.low %v3269, %v3285
        %v3289 = vcombine.high %v3269, %v3285
        %3291 = vrot.lane.b32.xlu0 %v2995, 120
        %v3292 = vpop.permute.xlu0 %3291
        %3294 = vrot.lane.b32.xlu0 %v2995, 112
        %v3295 = vpop.permute.xlu0 %3294
        %3297 = vrot.lane.b32.xlu0 %v2995, 104
        %v3298 = vpop.permute.xlu0 %3297
        %v3300 = vcombine.low %v2995, %v3295
        %v3301 = vcombine.high %v2995, %v3295
        %v3303 = vunpack.c.l.s4 1983009808
        %v3304 = vunpack.c.0.s8 %v3303
        %v3305 = vlaneseq
        %v3306 = vshrl.u32 %v3305, 7
        %v3307 = vsub.s32 %v3304, %v3306
        %v3308 = vrot.slane %v3300, %v3307
        %v3310 = vunpack.c.l.s4 1983009808
        %v3311 = vunpack.c.0.s8 %v3310
        %v3312 = vlaneseq
        %v3313 = vshrl.u32 %v3312, 7
        %v3314 = vsub.s32 %v3311, %v3313
        %v3315 = vrot.slane %v3301, %v3314
        %v3316 = vcombine.low %v3292, %v3298
        %v3317 = vcombine.high %v3292, %v3298
        %v3319 = vunpack.c.l.s4 1983009808
        %v3320 = vunpack.c.0.s8 %v3319
        %v3321 = vlaneseq
        %v3322 = vshrl.u32 %v3321, 7
        %v3323 = vsub.s32 %v3320, %v3322
        %v3324 = vrot.slane %v3316, %v3323
        %v3326 = vunpack.c.l.s4 1983009808
        %v3327 = vunpack.c.0.s8 %v3326
        %v3328 = vlaneseq
        %v3329 = vshrl.u32 %v3328, 7
        %v3330 = vsub.s32 %v3327, %v3329
        %v3331 = vrot.slane %v3317, %v3330
        %v3332 = vcombine.low %v3308, %v3324
        %v3333 = vcombine.high %v3308, %v3324
        %v3335 = vunpack.c.l.s4 1934713408
        %v3336 = vunpack.c.0.s8 %v3335
        %v3337 = vlaneseq
        %v3338 = vshrl.u32 %v3337, 7
        %v3339 = vsub.s32 %v3336, %v3338
        %v3340 = vrot.slane %v3332, %v3339
        %v3342 = vunpack.c.l.s4 1934713408
        %v3343 = vunpack.c.0.s8 %v3342
        %v3344 = vlaneseq
        %v3345 = vshrl.u32 %v3344, 7
        %v3346 = vsub.s32 %v3343, %v3345
        %v3347 = vrot.slane %v3333, %v3346
        %v3348 = vcombine.low %v3315, %v3331
        %v3349 = vcombine.high %v3315, %v3331
        %v3351 = vunpack.c.l.s4 1934713408
        %v3352 = vunpack.c.0.s8 %v3351
        %v3353 = vlaneseq
        %v3354 = vshrl.u32 %v3353, 7
        %v3355 = vsub.s32 %v3352, %v3354
        %v3356 = vrot.slane %v3348, %v3355
        %v3358 = vunpack.c.l.s4 1934713408
        %v3359 = vunpack.c.0.s8 %v3358
        %v3360 = vlaneseq
        %v3361 = vshrl.u32 %v3360, 7
        %v3362 = vsub.s32 %v3359, %v3361
        %v3363 = vrot.slane %v3349, %v3362
        %v3364 = vcombine.high %v3340, 0.0
        %v3365 = vcombine.high %v3347, 0.0
        %v3366 = vcombine.high %v3356, 0.0
        %v3367 = vcombine.high %v3363, 0.0
        %v3368 = vcombine.low %v3340, %v3347
        %v3370 = vunpack.c.l.s4 1983009808
        %v3371 = vunpack.c.0.s8 %v3370
        %v3372 = vlaneseq
        %v3373 = vshrl.u32 %v3372, 7
        %v3374 = vsub.s32 %v3371, %v3373
        %v3375 = vrot.slane %v3368, %v3374
        %v3376 = vcombine.low %v3364, %v3365
        %v3378 = vunpack.c.l.s4 1983009808
        %v3379 = vunpack.c.0.s8 %v3378
        %v3380 = vlaneseq
        %v3381 = vshrl.u32 %v3380, 7
        %v3382 = vsub.s32 %v3379, %v3381
        %v3383 = vrot.slane %v3376, %v3382
        %v3384 = vcombine.low %v3356, %v3363
        %v3386 = vunpack.c.l.s4 1983009808
        %v3387 = vunpack.c.0.s8 %v3386
        %v3388 = vlaneseq
        %v3389 = vshrl.u32 %v3388, 7
        %v3390 = vsub.s32 %v3387, %v3389
        %v3391 = vrot.slane %v3384, %v3390
        %v3392 = vcombine.low %v3366, %v3367
        %v3394 = vunpack.c.l.s4 1983009808
        %v3395 = vunpack.c.0.s8 %v3394
        %v3396 = vlaneseq
        %v3397 = vshrl.u32 %v3396, 7
        %v3398 = vsub.s32 %v3395, %v3397
        %v3399 = vrot.slane %v3392, %v3398
        %v3400 = vcombine.low %v3375, %v3383
        %v3401 = vcombine.high %v3375, %v3383
        %v3403 = vunpack.c.l.s4 1934713408
        %v3404 = vunpack.c.0.s8 %v3403
        %v3405 = vlaneseq
        %v3406 = vshrl.u32 %v3405, 7
        %v3407 = vsub.s32 %v3404, %v3406
        %v3408 = vrot.slane %v3400, %v3407
        %v3410 = vunpack.c.l.s4 1934713408
        %v3411 = vunpack.c.0.s8 %v3410
        %v3412 = vlaneseq
        %v3413 = vshrl.u32 %v3412, 7
        %v3414 = vsub.s32 %v3411, %v3413
        %v3415 = vrot.slane %v3401, %v3414
        %v3416 = vcombine.low %v3391, %v3399
        %v3417 = vcombine.high %v3391, %v3399
        %v3419 = vunpack.c.l.s4 1934713408
        %v3420 = vunpack.c.0.s8 %v3419
        %v3421 = vlaneseq
        %v3422 = vshrl.u32 %v3421, 7
        %v3423 = vsub.s32 %v3420, %v3422
        %v3424 = vrot.slane %v3416, %v3423
        %v3426 = vunpack.c.l.s4 1934713408
        %v3427 = vunpack.c.0.s8 %v3426
        %v3428 = vlaneseq
        %v3429 = vshrl.u32 %v3428, 7
        %v3430 = vsub.s32 %v3427, %v3429
        %v3431 = vrot.slane %v3417, %v3430
        %v3432 = vcombine.low %v3408, %v3424
        %v3433 = vcombine.high %v3408, %v3424
        %v3434 = vcombine.low %v3415, %v3431
        %v3435 = vcombine.high %v3415, %v3431
        %v3437 = vsel %vm1619, %v3140, 0
        %v3440 = vsel %vm1619, %v3286, 0
        %3442 = vmatprep.subr.mxu0 0.0
        %3443 = vmatpush1.xpose.msra.mxu0 %v3440
        %3444 = vmatprep.subr.mxu0 0.0
        %3445 = vmatpush1.xpose.msra.mxu0 0.0
        %3446 = vmatprep.subr.mxu0 0.0
        %3447 = vmatpush1.xpose.msra.mxu0 0.0
        %3448 = vmatprep.subr.mxu0 0.0
        %3449 = vmatpush1.xpose.msra.mxu0 0.0
        %3450 = vmatprep.subr.mxu0 0.0
        %3451 = vmatpush1.xpose.msra.mxu0 0.0
        %3452 = vmatprep.subr.mxu0 0.0
        %3453 = vmatpush1.xpose.msra.mxu0 0.0
        %3454 = vmatprep.subr.mxu0 0.0
        %3455 = vmatpush1.xpose.msra.mxu0 0.0
        %3456 = vmatprep.subr.mxu0 0.0
        %3457 = vmatpush1.xpose.msra.mxu0 0.0
        %3458 = vmatprep.subr.mxu0 0.0
        %3459 = vmatpush1.xpose.msra.mxu0 0.0
        %3460 = vmatprep.subr.mxu0 0.0
        %3461 = vmatpush1.xpose.msra.mxu0 0.0
        %3462 = vmatprep.subr.mxu0 0.0
        %3463 = vmatpush1.xpose.msra.mxu0 0.0
        %3464 = vmatprep.subr.mxu0 0.0
        %3465 = vmatpush1.xpose.msra.mxu0 0.0
        %3466 = vmatprep.subr.mxu0 0.0
        %3467 = vmatpush1.xpose.msra.mxu0 0.0
        %3468 = vmatprep.subr.mxu0 0.0
        %3469 = vmatpush1.xpose.msra.mxu0 0.0
        %3470 = vmatprep.subr.mxu0 0.0
        %3471 = vmatpush1.xpose.msra.mxu0 0.0
        %3472 = vmatprep.subr.mxu0 0.0
        %3473 = vmatpush1.xpose.msra.mxu0 0.0
        %3474 = vmatprep.subr.mxu0 0.0
        %3475 = vmatpush1.xpose.msra.mxu0 0.0
        %3476 = vmatprep.subr.mxu0 0.0
        %3477 = vmatpush1.xpose.msra.mxu0 0.0
        %3478 = vmatprep.subr.mxu0 0.0
        %3479 = vmatpush1.xpose.msra.mxu0 0.0
        %3480 = vmatprep.subr.mxu0 0.0
        %3481 = vmatpush1.xpose.msra.mxu0 0.0
        %3482 = vmatprep.subr.mxu0 0.0
        %3483 = vmatpush1.xpose.msra.mxu0 0.0
        %3484 = vmatprep.subr.mxu0 0.0
        %3485 = vmatpush1.xpose.msra.mxu0 0.0
        %3486 = vmatprep.subr.mxu0 0.0
        %3487 = vmatpush1.xpose.msra.mxu0 0.0
        %3488 = vmatprep.subr.mxu0 0.0
        %3489 = vmatpush1.xpose.msra.mxu0 0.0
        %3490 = vmatprep.subr.mxu0 0.0
        %3491 = vmatpush1.xpose.msra.mxu0 0.0
        %3492 = vmatprep.subr.mxu0 0.0
        %3493 = vmatpush1.xpose.msra.mxu0 0.0
        %3494 = vmatprep.subr.mxu0 0.0
        %3495 = vmatpush1.xpose.msra.mxu0 0.0
        %3496 = vmatprep.subr.mxu0 0.0
        %3497 = vmatpush1.xpose.msra.mxu0 0.0
        %3498 = vmatprep.subr.mxu0 0.0
        %3499 = vmatpush1.xpose.msra.mxu0 0.0
        %3500 = vmatprep.subr.mxu0 0.0
        %3501 = vmatpush1.xpose.msra.mxu0 0.0
        %3502 = vmatprep.subr.mxu0 0.0
        %3503 = vmatpush1.xpose.msra.mxu0 0.0
        %3504 = vmatprep.subr.mxu0 0.0
        %3505 = vmatpush1.xpose.msra.mxu0 0.0
        %3506 = vmatprep.mubr.f32.mxu0 0.0
        %3507 = vmatmul.mubr.f32.gmra.mrb[0].mxu0 %v3437
        %v3508 = vpop.f32.mrb[0].mxu0
        %v3509 = vadd.f32 0.0, %v3508
        %v3510 = vpop.f32.mrb[0].mxu0
        %3511 = vdwg.mxu0
        %v3513 = vsel %vm1619, %v3141, 0
        %v3516 = vsel %vm1619, %v3287, 0
        %3518 = vmatprep.subr.mxu0 0.0
        %3519 = vmatpush1.xpose.msra.mxu0 %v3516
        %3520 = vmatprep.subr.mxu0 0.0
        %3521 = vmatpush1.xpose.msra.mxu0 0.0
        %3522 = vmatprep.subr.mxu0 0.0
        %3523 = vmatpush1.xpose.msra.mxu0 0.0
        %3524 = vmatprep.subr.mxu0 0.0
        %3525 = vmatpush1.xpose.msra.mxu0 0.0
        %3526 = vmatprep.subr.mxu0 0.0
        %3527 = vmatpush1.xpose.msra.mxu0 0.0
        %3528 = vmatprep.subr.mxu0 0.0
        %3529 = vmatpush1.xpose.msra.mxu0 0.0
        %3530 = vmatprep.subr.mxu0 0.0
        %3531 = vmatpush1.xpose.msra.mxu0 0.0
        %3532 = vmatprep.subr.mxu0 0.0
        %3533 = vmatpush1.xpose.msra.mxu0 0.0
        %3534 = vmatprep.subr.mxu0 0.0
        %3535 = vmatpush1.xpose.msra.mxu0 0.0
        %3536 = vmatprep.subr.mxu0 0.0
        %3537 = vmatpush1.xpose.msra.mxu0 0.0
        %3538 = vmatprep.subr.mxu0 0.0
        %3539 = vmatpush1.xpose.msra.mxu0 0.0
        %3540 = vmatprep.subr.mxu0 0.0
        %3541 = vmatpush1.xpose.msra.mxu0 0.0
        %3542 = vmatprep.subr.mxu0 0.0
        %3543 = vmatpush1.xpose.msra.mxu0 0.0
        %3544 = vmatprep.subr.mxu0 0.0
        %3545 = vmatpush1.xpose.msra.mxu0 0.0
        %3546 = vmatprep.subr.mxu0 0.0
        %3547 = vmatpush1.xpose.msra.mxu0 0.0
        %3548 = vmatprep.subr.mxu0 0.0
        %3549 = vmatpush1.xpose.msra.mxu0 0.0
        %3550 = vmatprep.subr.mxu0 0.0
        %3551 = vmatpush1.xpose.msra.mxu0 0.0
        %3552 = vmatprep.subr.mxu0 0.0
        %3553 = vmatpush1.xpose.msra.mxu0 0.0
        %3554 = vmatprep.subr.mxu0 0.0
        %3555 = vmatpush1.xpose.msra.mxu0 0.0
        %3556 = vmatprep.subr.mxu0 0.0
        %3557 = vmatpush1.xpose.msra.mxu0 0.0
        %3558 = vmatprep.subr.mxu0 0.0
        %3559 = vmatpush1.xpose.msra.mxu0 0.0
        %3560 = vmatprep.subr.mxu0 0.0
        %3561 = vmatpush1.xpose.msra.mxu0 0.0
        %3562 = vmatprep.subr.mxu0 0.0
        %3563 = vmatpush1.xpose.msra.mxu0 0.0
        %3564 = vmatprep.subr.mxu0 0.0
        %3565 = vmatpush1.xpose.msra.mxu0 0.0
        %3566 = vmatprep.subr.mxu0 0.0
        %3567 = vmatpush1.xpose.msra.mxu0 0.0
        %3568 = vmatprep.subr.mxu0 0.0
        %3569 = vmatpush1.xpose.msra.mxu0 0.0
        %3570 = vmatprep.subr.mxu0 0.0
        %3571 = vmatpush1.xpose.msra.mxu0 0.0
        %3572 = vmatprep.subr.mxu0 0.0
        %3573 = vmatpush1.xpose.msra.mxu0 0.0
        %3574 = vmatprep.subr.mxu0 0.0
        %3575 = vmatpush1.xpose.msra.mxu0 0.0
        %3576 = vmatprep.subr.mxu0 0.0
        %3577 = vmatpush1.xpose.msra.mxu0 0.0
        %3578 = vmatprep.subr.mxu0 0.0
        %3579 = vmatpush1.xpose.msra.mxu0 0.0
        %3580 = vmatprep.subr.mxu0 0.0
        %3581 = vmatpush1.xpose.msra.mxu0 0.0
        %3582 = vmatprep.mubr.f32.mxu0 0.0
        %3583 = vmatmul.mubr.f32.gmra.mrb[0].mxu0 %v3513
        %v3584 = vpop.f32.mrb[0].mxu0
        %v3585 = vadd.f32 0.0, %v3584
        %v3586 = vpop.f32.mrb[0].mxu0
        %3587 = vdwg.mxu0
        %v3589 = vsel %vm1619, %v3142, 0
        %v3592 = vsel %vm1619, %v3288, 0
        %3594 = vmatprep.subr.mxu0 0.0
        %3595 = vmatpush1.xpose.msra.mxu0 %v3592
        %3596 = vmatprep.subr.mxu0 0.0
        %3597 = vmatpush1.xpose.msra.mxu0 0.0
        %3598 = vmatprep.subr.mxu0 0.0
        %3599 = vmatpush1.xpose.msra.mxu0 0.0
        %3600 = vmatprep.subr.mxu0 0.0
        %3601 = vmatpush1.xpose.msra.mxu0 0.0
        %3602 = vmatprep.subr.mxu0 0.0
        %3603 = vmatpush1.xpose.msra.mxu0 0.0
        %3604 = vmatprep.subr.mxu0 0.0
        %3605 = vmatpush1.xpose.msra.mxu0 0.0
        %3606 = vmatprep.subr.mxu0 0.0
        %3607 = vmatpush1.xpose.msra.mxu0 0.0
        %3608 = vmatprep.subr.mxu0 0.0
        %3609 = vmatpush1.xpose.msra.mxu0 0.0
        %3610 = vmatprep.subr.mxu0 0.0
        %3611 = vmatpush1.xpose.msra.mxu0 0.0
        %3612 = vmatprep.subr.mxu0 0.0
        %3613 = vmatpush1.xpose.msra.mxu0 0.0
        %3614 = vmatprep.subr.mxu0 0.0
        %3615 = vmatpush1.xpose.msra.mxu0 0.0
        %3616 = vmatprep.subr.mxu0 0.0
        %3617 = vmatpush1.xpose.msra.mxu0 0.0
        %3618 = vmatprep.subr.mxu0 0.0
        %3619 = vmatpush1.xpose.msra.mxu0 0.0
        %3620 = vmatprep.subr.mxu0 0.0
        %3621 = vmatpush1.xpose.msra.mxu0 0.0
        %3622 = vmatprep.subr.mxu0 0.0
        %3623 = vmatpush1.xpose.msra.mxu0 0.0
        %3624 = vmatprep.subr.mxu0 0.0
        %3625 = vmatpush1.xpose.msra.mxu0 0.0
        %3626 = vmatprep.subr.mxu0 0.0
        %3627 = vmatpush1.xpose.msra.mxu0 0.0
        %3628 = vmatprep.subr.mxu0 0.0
        %3629 = vmatpush1.xpose.msra.mxu0 0.0
        %3630 = vmatprep.subr.mxu0 0.0
        %3631 = vmatpush1.xpose.msra.mxu0 0.0
        %3632 = vmatprep.subr.mxu0 0.0
        %3633 = vmatpush1.xpose.msra.mxu0 0.0
        %3634 = vmatprep.subr.mxu0 0.0
        %3635 = vmatpush1.xpose.msra.mxu0 0.0
        %3636 = vmatprep.subr.mxu0 0.0
        %3637 = vmatpush1.xpose.msra.mxu0 0.0
        %3638 = vmatprep.subr.mxu0 0.0
        %3639 = vmatpush1.xpose.msra.mxu0 0.0
        %3640 = vmatprep.subr.mxu0 0.0
        %3641 = vmatpush1.xpose.msra.mxu0 0.0
        %3642 = vmatprep.subr.mxu0 0.0
        %3643 = vmatpush1.xpose.msra.mxu0 0.0
        %3644 = vmatprep.subr.mxu0 0.0
        %3645 = vmatpush1.xpose.msra.mxu0 0.0
        %3646 = vmatprep.subr.mxu0 0.0
        %3647 = vmatpush1.xpose.msra.mxu0 0.0
        %3648 = vmatprep.subr.mxu0 0.0
        %3649 = vmatpush1.xpose.msra.mxu0 0.0
        %3650 = vmatprep.subr.mxu0 0.0
        %3651 = vmatpush1.xpose.msra.mxu0 0.0
        %3652 = vmatprep.subr.mxu0 0.0
        %3653 = vmatpush1.xpose.msra.mxu0 0.0
        %3654 = vmatprep.subr.mxu0 0.0
        %3655 = vmatpush1.xpose.msra.mxu0 0.0
        %3656 = vmatprep.subr.mxu0 0.0
        %3657 = vmatpush1.xpose.msra.mxu0 0.0
        %3658 = vmatprep.mubr.f32.mxu0 0.0
        %3659 = vmatmul.mubr.f32.gmra.mrb[0].mxu0 %v3589
        %v3660 = vpop.f32.mrb[0].mxu0
        %v3661 = vadd.f32 0.0, %v3660
        %v3662 = vpop.f32.mrb[0].mxu0
        %3663 = vdwg.mxu0
        %v3665 = vsel %vm1619, %v3143, 0
        %v3668 = vsel %vm1619, %v3289, 0
        %3670 = vmatprep.subr.mxu0 0.0
        %3671 = vmatpush1.xpose.msra.mxu0 %v3668
        %3672 = vmatprep.subr.mxu0 0.0
        %3673 = vmatpush1.xpose.msra.mxu0 0.0
        %3674 = vmatprep.subr.mxu0 0.0
        %3675 = vmatpush1.xpose.msra.mxu0 0.0
        %3676 = vmatprep.subr.mxu0 0.0
        %3677 = vmatpush1.xpose.msra.mxu0 0.0
        %3678 = vmatprep.subr.mxu0 0.0
        %3679 = vmatpush1.xpose.msra.mxu0 0.0
        %3680 = vmatprep.subr.mxu0 0.0
        %3681 = vmatpush1.xpose.msra.mxu0 0.0
        %3682 = vmatprep.subr.mxu0 0.0
        %3683 = vmatpush1.xpose.msra.mxu0 0.0
        %3684 = vmatprep.subr.mxu0 0.0
        %3685 = vmatpush1.xpose.msra.mxu0 0.0
        %3686 = vmatprep.subr.mxu0 0.0
        %3687 = vmatpush1.xpose.msra.mxu0 0.0
        %3688 = vmatprep.subr.mxu0 0.0
        %3689 = vmatpush1.xpose.msra.mxu0 0.0
        %3690 = vmatprep.subr.mxu0 0.0
        %3691 = vmatpush1.xpose.msra.mxu0 0.0
        %3692 = vmatprep.subr.mxu0 0.0
        %3693 = vmatpush1.xpose.msra.mxu0 0.0
        %3694 = vmatprep.subr.mxu0 0.0
        %3695 = vmatpush1.xpose.msra.mxu0 0.0
        %3696 = vmatprep.subr.mxu0 0.0
        %3697 = vmatpush1.xpose.msra.mxu0 0.0
        %3698 = vmatprep.subr.mxu0 0.0
        %3699 = vmatpush1.xpose.msra.mxu0 0.0
        %3700 = vmatprep.subr.mxu0 0.0
        %3701 = vmatpush1.xpose.msra.mxu0 0.0
        %3702 = vmatprep.subr.mxu0 0.0
        %3703 = vmatpush1.xpose.msra.mxu0 0.0
        %3704 = vmatprep.subr.mxu0 0.0
        %3705 = vmatpush1.xpose.msra.mxu0 0.0
        %3706 = vmatprep.subr.mxu0 0.0
        %3707 = vmatpush1.xpose.msra.mxu0 0.0
        %3708 = vmatprep.subr.mxu0 0.0
        %3709 = vmatpush1.xpose.msra.mxu0 0.0
        %3710 = vmatprep.subr.mxu0 0.0
        %3711 = vmatpush1.xpose.msra.mxu0 0.0
        %3712 = vmatprep.subr.mxu0 0.0
        %3713 = vmatpush1.xpose.msra.mxu0 0.0
        %3714 = vmatprep.subr.mxu0 0.0
        %3715 = vmatpush1.xpose.msra.mxu0 0.0
        %3716 = vmatprep.subr.mxu0 0.0
        %3717 = vmatpush1.xpose.msra.mxu0 0.0
        %3718 = vmatprep.subr.mxu0 0.0
        %3719 = vmatpush1.xpose.msra.mxu0 0.0
        %3720 = vmatprep.subr.mxu0 0.0
        %3721 = vmatpush1.xpose.msra.mxu0 0.0
        %3722 = vmatprep.subr.mxu0 0.0
        %3723 = vmatpush1.xpose.msra.mxu0 0.0
        %3724 = vmatprep.subr.mxu0 0.0
        %3725 = vmatpush1.xpose.msra.mxu0 0.0
        %3726 = vmatprep.subr.mxu0 0.0
        %3727 = vmatpush1.xpose.msra.mxu0 0.0
        %3728 = vmatprep.subr.mxu0 0.0
        %3729 = vmatpush1.xpose.msra.mxu0 0.0
        %3730 = vmatprep.subr.mxu0 0.0
        %3731 = vmatpush1.xpose.msra.mxu0 0.0
        %3732 = vmatprep.subr.mxu0 0.0
        %3733 = vmatpush1.xpose.msra.mxu0 0.0
        %3734 = vmatprep.mubr.f32.mxu0 0.0
        %3735 = vmatmul.mubr.f32.gmra.mrb[0].mxu0 %v3665
        %v3736 = vpop.f32.mrb[0].mxu0
        %v3737 = vadd.f32 0.0, %v3736
        %v3738 = vpop.f32.mrb[0].mxu0
        %3739 = vdwg.mxu0
        %v3740 = vmul.f32 %v3509, 0.35355338
        %v3741 = vmul.f32 %v3585, 0.35355338
        %v3742 = vmul.f32 %v3661, 0.35355338
        %v3743 = vmul.f32 %v3737, 0.35355338
        %v3744 = vadd.f32 %v3740, %v1932
        %v3745 = vadd.f32 %v3741, %v1932
        %v3746 = vadd.f32 %v3742, %v1932
        %v3747 = vadd.f32 %v3743, %v1932
        %v3748 = vsel %vm1619, %v3744, -inf
        %3749 = vmax.xlane.f32.xlu0 %v3748
        %v3750 = vpop.xlane.xlu0 %3749
        %v3751 = vsel %vm1619, %v3745, -inf
        %3752 = vmax.xlane.f32.xlu0 %v3751
        %v3753 = vpop.xlane.xlu0 %3752
        %v3754 = vsel %vm1619, %v3746, -inf
        %3755 = vmax.xlane.f32.xlu0 %v3754
        %v3756 = vpop.xlane.xlu0 %3755
        %v3757 = vsel %vm1619, %v3747, -inf
        %3758 = vmax.xlane.f32.xlu0 %v3757
        %v3759 = vpop.xlane.xlu0 %3758
        %v3760 = vsub.f32 %v3744, %v3750
        %v3761 = vsub.f32 %v3745, %v3753
        %v3762 = vsub.f32 %v3746, %v3756
        %v3763 = vsub.f32 %v3747, %v3759
        %v3764 = vmul.f32 %v3760, 1.442695
        %v3765 = vpow.pop %v3764
        %v3766 = vmul.f32 %v3761, 1.442695
        %v3767 = vpow.pop %v3766
        %v3768 = vmul.f32 %v3762, 1.442695
        %v3769 = vpow.pop %v3768
        %v3770 = vmul.f32 %v3763, 1.442695
        %v3771 = vpow.pop %v3770
        %v3772 = vsel %vm1619, %v3765, 0.0
        %3773 = vadd.xlane.f32.xlu0 %v3772
        %v3774 = vpop.xlane.xlu0 %3773
        %v3775 = vsel %vm1619, %v3767, 0.0
        %3776 = vadd.xlane.f32.xlu0 %v3775
        %v3777 = vpop.xlane.xlu0 %3776
        %v3778 = vsel %vm1619, %v3769, 0.0
        %3779 = vadd.xlane.f32.xlu0 %v3778
        %v3780 = vpop.xlane.xlu0 %3779
        %v3781 = vsel %vm1619, %v3771, 0.0
        %3782 = vadd.xlane.f32.xlu0 %v3781
        %v3783 = vpop.xlane.xlu0 %3782
        %v3784 = vrcp.pop %v3774
        %v3785 = vrcp.pop %v3777
        %v3786 = vrcp.pop %v3780
        %v3787 = vrcp.pop %v3783
        %v3788 = vmul.f32 %v3765, %v3784
        %v3789 = vmul.f32 %v3767, %v3785
        %v3790 = vmul.f32 %v3769, %v3786
        %v3791 = vmul.f32 %v3771, %v3787
        %v3793 = vsel %vm1619, %v3788, 0
        %3795 = vmatprep.subr.mxu0 0.0
        %3796 = vmatpush1.msra.mxu0 %v3432
        %3797 = vmatprep.subr.mxu0 0.0
        %3798 = vmatpush1.msra.mxu0 0.0
        %3799 = vmatprep.subr.mxu0 0.0
        %3800 = vmatpush1.msra.mxu0 0.0
        %3801 = vmatprep.subr.mxu0 0.0
        %3802 = vmatpush1.msra.mxu0 0.0
        %3803 = vmatprep.subr.mxu0 0.0
        %3804 = vmatpush1.msra.mxu0 0.0
        %3805 = vmatprep.subr.mxu0 0.0
        %3806 = vmatpush1.msra.mxu0 0.0
        %3807 = vmatprep.subr.mxu0 0.0
        %3808 = vmatpush1.msra.mxu0 0.0
        %3809 = vmatprep.subr.mxu0 0.0
        %3810 = vmatpush1.msra.mxu0 0.0
        %3811 = vmatprep.subr.mxu0 0.0
        %3812 = vmatpush1.msra.mxu0 0.0
        %3813 = vmatprep.subr.mxu0 0.0
        %3814 = vmatpush1.msra.mxu0 0.0
        %3815 = vmatprep.subr.mxu0 0.0
        %3816 = vmatpush1.msra.mxu0 0.0
        %3817 = vmatprep.subr.mxu0 0.0
        %3818 = vmatpush1.msra.mxu0 0.0
        %3819 = vmatprep.subr.mxu0 0.0
        %3820 = vmatpush1.msra.mxu0 0.0
        %3821 = vmatprep.subr.mxu0 0.0
        %3822 = vmatpush1.msra.mxu0 0.0
        %3823 = vmatprep.subr.mxu0 0.0
        %3824 = vmatpush1.msra.mxu0 0.0
        %3825 = vmatprep.subr.mxu0 0.0
        %3826 = vmatpush1.msra.mxu0 0.0
        %3827 = vmatprep.subr.mxu0 0.0
        %3828 = vmatpush1.msra.mxu0 0.0
        %3829 = vmatprep.subr.mxu0 0.0
        %3830 = vmatpush1.msra.mxu0 0.0
        %3831 = vmatprep.subr.mxu0 0.0
        %3832 = vmatpush1.msra.mxu0 0.0
        %3833 = vmatprep.subr.mxu0 0.0
        %3834 = vmatpush1.msra.mxu0 0.0
        %3835 = vmatprep.subr.mxu0 0.0
        %3836 = vmatpush1.msra.mxu0 0.0
        %3837 = vmatprep.subr.mxu0 0.0
        %3838 = vmatpush1.msra.mxu0 0.0
        %3839 = vmatprep.subr.mxu0 0.0
        %3840 = vmatpush1.msra.mxu0 0.0
        %3841 = vmatprep.subr.mxu0 0.0
        %3842 = vmatpush1.msra.mxu0 0.0
        %3843 = vmatprep.subr.mxu0 0.0
        %3844 = vmatpush1.msra.mxu0 0.0
        %3845 = vmatprep.subr.mxu0 0.0
        %3846 = vmatpush1.msra.mxu0 0.0
        %3847 = vmatprep.subr.mxu0 0.0
        %3848 = vmatpush1.msra.mxu0 0.0
        %3849 = vmatprep.subr.mxu0 0.0
        %3850 = vmatpush1.msra.mxu0 0.0
        %3851 = vmatprep.subr.mxu0 0.0
        %3852 = vmatpush1.msra.mxu0 0.0
        %3853 = vmatprep.subr.mxu0 0.0
        %3854 = vmatpush1.msra.mxu0 0.0
        %3855 = vmatprep.subr.mxu0 0.0
        %3856 = vmatpush1.msra.mxu0 0.0
        %3857 = vmatprep.subr.mxu0 0.0
        %3858 = vmatpush1.msra.mxu0 0.0
        %3859 = vmatprep.mubr.f32.mxu0 0.0
        %3860 = vmatmul.mubr.f32.gmra.mrb[0].mxu0 %v3793
        %v3861 = vpop.f32.mrb[0].mxu0
        %v3862 = vadd.f32 0.0, %v3861
        %v3863 = vpop.f32.mrb[0].mxu0
        %3864 = vdwg.mxu0
        %v3866 = vsel %vm1619, %v3789, 0
        %3868 = vmatprep.subr.mxu0 0.0
        %3869 = vmatpush1.msra.mxu0 %v3433
        %3870 = vmatprep.subr.mxu0 0.0
        %3871 = vmatpush1.msra.mxu0 0.0
        %3872 = vmatprep.subr.mxu0 0.0
        %3873 = vmatpush1.msra.mxu0 0.0
        %3874 = vmatprep.subr.mxu0 0.0
        %3875 = vmatpush1.msra.mxu0 0.0
        %3876 = vmatprep.subr.mxu0 0.0
        %3877 = vmatpush1.msra.mxu0 0.0
        %3878 = vmatprep.subr.mxu0 0.0
        %3879 = vmatpush1.msra.mxu0 0.0
        %3880 = vmatprep.subr.mxu0 0.0
        %3881 = vmatpush1.msra.mxu0 0.0
        %3882 = vmatprep.subr.mxu0 0.0
        %3883 = vmatpush1.msra.mxu0 0.0
        %3884 = vmatprep.subr.mxu0 0.0
        %3885 = vmatpush1.msra.mxu0 0.0
        %3886 = vmatprep.subr.mxu0 0.0
        %3887 = vmatpush1.msra.mxu0 0.0
        %3888 = vmatprep.subr.mxu0 0.0
        %3889 = vmatpush1.msra.mxu0 0.0
        %3890 = vmatprep.subr.mxu0 0.0
        %3891 = vmatpush1.msra.mxu0 0.0
        %3892 = vmatprep.subr.mxu0 0.0
        %3893 = vmatpush1.msra.mxu0 0.0
        %3894 = vmatprep.subr.mxu0 0.0
        %3895 = vmatpush1.msra.mxu0 0.0
        %3896 = vmatprep.subr.mxu0 0.0
        %3897 = vmatpush1.msra.mxu0 0.0
        %3898 = vmatprep.subr.mxu0 0.0
        %3899 = vmatpush1.msra.mxu0 0.0
        %3900 = vmatprep.subr.mxu0 0.0
        %3901 = vmatpush1.msra.mxu0 0.0
        %3902 = vmatprep.subr.mxu0 0.0
        %3903 = vmatpush1.msra.mxu0 0.0
        %3904 = vmatprep.subr.mxu0 0.0
        %3905 = vmatpush1.msra.mxu0 0.0
        %3906 = vmatprep.subr.mxu0 0.0
        %3907 = vmatpush1.msra.mxu0 0.0
        %3908 = vmatprep.subr.mxu0 0.0
        %3909 = vmatpush1.msra.mxu0 0.0
        %3910 = vmatprep.subr.mxu0 0.0
        %3911 = vmatpush1.msra.mxu0 0.0
        %3912 = vmatprep.subr.mxu0 0.0
        %3913 = vmatpush1.msra.mxu0 0.0
        %3914 = vmatprep.subr.mxu0 0.0
        %3915 = vmatpush1.msra.mxu0 0.0
        %3916 = vmatprep.subr.mxu0 0.0
        %3917 = vmatpush1.msra.mxu0 0.0
        %3918 = vmatprep.subr.mxu0 0.0
        %3919 = vmatpush1.msra.mxu0 0.0
        %3920 = vmatprep.subr.mxu0 0.0
        %3921 = vmatpush1.msra.mxu0 0.0
        %3922 = vmatprep.subr.mxu0 0.0
        %3923 = vmatpush1.msra.mxu0 0.0
        %3924 = vmatprep.subr.mxu0 0.0
        %3925 = vmatpush1.msra.mxu0 0.0
        %3926 = vmatprep.subr.mxu0 0.0
        %3927 = vmatpush1.msra.mxu0 0.0
        %3928 = vmatprep.subr.mxu0 0.0
        %3929 = vmatpush1.msra.mxu0 0.0
        %3930 = vmatprep.subr.mxu0 0.0
        %3931 = vmatpush1.msra.mxu0 0.0
        %3932 = vmatprep.mubr.f32.mxu0 0.0
        %3933 = vmatmul.mubr.f32.gmra.mrb[0].mxu0 %v3866
        %v3934 = vpop.f32.mrb[0].mxu0
        %v3935 = vadd.f32 0.0, %v3934
        %v3936 = vpop.f32.mrb[0].mxu0
        %3937 = vdwg.mxu0
        %v3939 = vsel %vm1619, %v3790, 0
        %3941 = vmatprep.subr.mxu0 0.0
        %3942 = vmatpush1.msra.mxu0 %v3434
        %3943 = vmatprep.subr.mxu0 0.0
        %3944 = vmatpush1.msra.mxu0 0.0
        %3945 = vmatprep.subr.mxu0 0.0
        %3946 = vmatpush1.msra.mxu0 0.0
        %3947 = vmatprep.subr.mxu0 0.0
        %3948 = vmatpush1.msra.mxu0 0.0
        %3949 = vmatprep.subr.mxu0 0.0
        %3950 = vmatpush1.msra.mxu0 0.0
        %3951 = vmatprep.subr.mxu0 0.0
        %3952 = vmatpush1.msra.mxu0 0.0
        %3953 = vmatprep.subr.mxu0 0.0
        %3954 = vmatpush1.msra.mxu0 0.0
        %3955 = vmatprep.subr.mxu0 0.0
        %3956 = vmatpush1.msra.mxu0 0.0
        %3957 = vmatprep.subr.mxu0 0.0
        %3958 = vmatpush1.msra.mxu0 0.0
        %3959 = vmatprep.subr.mxu0 0.0
        %3960 = vmatpush1.msra.mxu0 0.0
        %3961 = vmatprep.subr.mxu0 0.0
        %3962 = vmatpush1.msra.mxu0 0.0
        %3963 = vmatprep.subr.mxu0 0.0
        %3964 = vmatpush1.msra.mxu0 0.0
        %3965 = vmatprep.subr.mxu0 0.0
        %3966 = vmatpush1.msra.mxu0 0.0
        %3967 = vmatprep.subr.mxu0 0.0
        %3968 = vmatpush1.msra.mxu0 0.0
        %3969 = vmatprep.subr.mxu0 0.0
        %3970 = vmatpush1.msra.mxu0 0.0
        %3971 = vmatprep.subr.mxu0 0.0
        %3972 = vmatpush1.msra.mxu0 0.0
        %3973 = vmatprep.subr.mxu0 0.0
        %3974 = vmatpush1.msra.mxu0 0.0
        %3975 = vmatprep.subr.mxu0 0.0
        %3976 = vmatpush1.msra.mxu0 0.0
        %3977 = vmatprep.subr.mxu0 0.0
        %3978 = vmatpush1.msra.mxu0 0.0
        %3979 = vmatprep.subr.mxu0 0.0
        %3980 = vmatpush1.msra.mxu0 0.0
        %3981 = vmatprep.subr.mxu0 0.0
        %3982 = vmatpush1.msra.mxu0 0.0
        %3983 = vmatprep.subr.mxu0 0.0
        %3984 = vmatpush1.msra.mxu0 0.0
        %3985 = vmatprep.subr.mxu0 0.0
        %3986 = vmatpush1.msra.mxu0 0.0
        %3987 = vmatprep.subr.mxu0 0.0
        %3988 = vmatpush1.msra.mxu0 0.0
        %3989 = vmatprep.subr.mxu0 0.0
        %3990 = vmatpush1.msra.mxu0 0.0
        %3991 = vmatprep.subr.mxu0 0.0
        %3992 = vmatpush1.msra.mxu0 0.0
        %3993 = vmatprep.subr.mxu0 0.0
        %3994 = vmatpush1.msra.mxu0 0.0
        %3995 = vmatprep.subr.mxu0 0.0
        %3996 = vmatpush1.msra.mxu0 0.0
        %3997 = vmatprep.subr.mxu0 0.0
        %3998 = vmatpush1.msra.mxu0 0.0
        %3999 = vmatprep.subr.mxu0 0.0
        %4000 = vmatpush1.msra.mxu0 0.0
        %4001 = vmatprep.subr.mxu0 0.0
        %4002 = vmatpush1.msra.mxu0 0.0
        %4003 = vmatprep.subr.mxu0 0.0
        %4004 = vmatpush1.msra.mxu0 0.0
        %4005 = vmatprep.mubr.f32.mxu0 0.0
        %4006 = vmatmul.mubr.f32.gmra.mrb[0].mxu0 %v3939
        %v4007 = vpop.f32.mrb[0].mxu0
        %v4008 = vadd.f32 0.0, %v4007
        %v4009 = vpop.f32.mrb[0].mxu0
        %4010 = vdwg.mxu0
        %v4012 = vsel %vm1619, %v3791, 0
        %4014 = vmatprep.subr.mxu0 0.0
        %4015 = vmatpush1.msra.mxu0 %v3435
        %4016 = vmatprep.subr.mxu0 0.0
        %4017 = vmatpush1.msra.mxu0 0.0
        %4018 = vmatprep.subr.mxu0 0.0
        %4019 = vmatpush1.msra.mxu0 0.0
        %4020 = vmatprep.subr.mxu0 0.0
        %4021 = vmatpush1.msra.mxu0 0.0
        %4022 = vmatprep.subr.mxu0 0.0
        %4023 = vmatpush1.msra.mxu0 0.0
        %4024 = vmatprep.subr.mxu0 0.0
        %4025 = vmatpush1.msra.mxu0 0.0
        %4026 = vmatprep.subr.mxu0 0.0
        %4027 = vmatpush1.msra.mxu0 0.0
        %4028 = vmatprep.subr.mxu0 0.0
        %4029 = vmatpush1.msra.mxu0 0.0
        %4030 = vmatprep.subr.mxu0 0.0
        %4031 = vmatpush1.msra.mxu0 0.0
        %4032 = vmatprep.subr.mxu0 0.0
        %4033 = vmatpush1.msra.mxu0 0.0
        %4034 = vmatprep.subr.mxu0 0.0
        %4035 = vmatpush1.msra.mxu0 0.0
        %4036 = vmatprep.subr.mxu0 0.0
        %4037 = vmatpush1.msra.mxu0 0.0
        %4038 = vmatprep.subr.mxu0 0.0
        %4039 = vmatpush1.msra.mxu0 0.0
        %4040 = vmatprep.subr.mxu0 0.0
        %4041 = vmatpush1.msra.mxu0 0.0
        %4042 = vmatprep.subr.mxu0 0.0
        %4043 = vmatpush1.msra.mxu0 0.0
        %4044 = vmatprep.subr.mxu0 0.0
        %4045 = vmatpush1.msra.mxu0 0.0
        %4046 = vmatprep.subr.mxu0 0.0
        %4047 = vmatpush1.msra.mxu0 0.0
        %4048 = vmatprep.subr.mxu0 0.0
        %4049 = vmatpush1.msra.mxu0 0.0
        %4050 = vmatprep.subr.mxu0 0.0
        %4051 = vmatpush1.msra.mxu0 0.0
        %4052 = vmatprep.subr.mxu0 0.0
        %4053 = vmatpush1.msra.mxu0 0.0
        %4054 = vmatprep.subr.mxu0 0.0
        %4055 = vmatpush1.msra.mxu0 0.0
        %4056 = vmatprep.subr.mxu0 0.0
        %4057 = vmatpush1.msra.mxu0 0.0
        %4058 = vmatprep.subr.mxu0 0.0
        %4059 = vmatpush1.msra.mxu0 0.0
        %4060 = vmatprep.subr.mxu0 0.0
        %4061 = vmatpush1.msra.mxu0 0.0
        %4062 = vmatprep.subr.mxu0 0.0
        %4063 = vmatpush1.msra.mxu0 0.0
        %4064 = vmatprep.subr.mxu0 0.0
        %4065 = vmatpush1.msra.mxu0 0.0
        %4066 = vmatprep.subr.mxu0 0.0
        %4067 = vmatpush1.msra.mxu0 0.0
        %4068 = vmatprep.subr.mxu0 0.0
        %4069 = vmatpush1.msra.mxu0 0.0
        %4070 = vmatprep.subr.mxu0 0.0
        %4071 = vmatpush1.msra.mxu0 0.0
        %4072 = vmatprep.subr.mxu0 0.0
        %4073 = vmatpush1.msra.mxu0 0.0
        %4074 = vmatprep.subr.mxu0 0.0
        %4075 = vmatpush1.msra.mxu0 0.0
        %4076 = vmatprep.subr.mxu0 0.0
        %4077 = vmatpush1.msra.mxu0 0.0
        %4078 = vmatprep.mubr.f32.mxu0 0.0
        %4079 = vmatmul.mubr.f32.gmra.mrb[0].mxu0 %v4012
        %v4080 = vpop.f32.mrb[0].mxu0
        %v4081 = vadd.f32 0.0, %v4080
        %v4082 = vpop.f32.mrb[0].mxu0
        %4083 = vdwg.mxu0
        %v4084 = vcombine.low %v3862, %v4008
        %v4085 = vcombine.high %v3862, %v4008
        %v4087 = vunpack.c.l.s4 1983009808
        %v4088 = vunpack.c.0.s8 %v4087
        %v4089 = vlaneseq
        %v4090 = vshrl.u32 %v4089, 7
        %v4091 = vsub.s32 %v4088, %v4090
        %v4092 = vrot.slane %v4084, %v4091
        %v4094 = vunpack.c.l.s4 1983009808
        %v4095 = vunpack.c.0.s8 %v4094
        %v4096 = vlaneseq
        %v4097 = vshrl.u32 %v4096, 7
        %v4098 = vsub.s32 %v4095, %v4097
        %v4099 = vrot.slane %v4085, %v4098
        %v4100 = vcombine.low %v3935, %v4081
        %v4101 = vcombine.high %v3935, %v4081
        %v4103 = vunpack.c.l.s4 1983009808
        %v4104 = vunpack.c.0.s8 %v4103
        %v4105 = vlaneseq
        %v4106 = vshrl.u32 %v4105, 7
        %v4107 = vsub.s32 %v4104, %v4106
        %v4108 = vrot.slane %v4100, %v4107
        %v4110 = vunpack.c.l.s4 1983009808
        %v4111 = vunpack.c.0.s8 %v4110
        %v4112 = vlaneseq
        %v4113 = vshrl.u32 %v4112, 7
        %v4114 = vsub.s32 %v4111, %v4113
        %v4115 = vrot.slane %v4101, %v4114
        %v4116 = vcombine.low %v4092, %v4108
        %v4117 = vcombine.high %v4092, %v4108
        %v4119 = vunpack.c.l.s4 1934713408
        %v4120 = vunpack.c.0.s8 %v4119
        %v4121 = vlaneseq
        %v4122 = vshrl.u32 %v4121, 7
        %v4123 = vsub.s32 %v4120, %v4122
        %v4124 = vrot.slane %v4116, %v4123
        %v4126 = vunpack.c.l.s4 1934713408
        %v4127 = vunpack.c.0.s8 %v4126
        %v4128 = vlaneseq
        %v4129 = vshrl.u32 %v4128, 7
        %v4130 = vsub.s32 %v4127, %v4129
        %v4131 = vrot.slane %v4117, %v4130
        %v4132 = vcombine.low %v4099, %v4115
        %v4133 = vcombine.high %v4099, %v4115
        %v4135 = vunpack.c.l.s4 1934713408
        %v4136 = vunpack.c.0.s8 %v4135
        %v4137 = vlaneseq
        %v4138 = vshrl.u32 %v4137, 7
        %v4139 = vsub.s32 %v4136, %v4138
        %v4140 = vrot.slane %v4132, %v4139
        %v4142 = vunpack.c.l.s4 1934713408
        %v4143 = vunpack.c.0.s8 %v4142
        %v4144 = vlaneseq
        %v4145 = vshrl.u32 %v4144, 7
        %v4146 = vsub.s32 %v4143, %v4145
        %v4147 = vrot.slane %v4133, %v4146
        %v4148 = vcombine.high %v4124, 0.0
        %v4149 = vcombine.high %v4131, 0.0
        %v4150 = vcombine.high %v4140, 0.0
        %v4151 = vcombine.high %v4147, 0.0
        %v4152 = vcombine.low %v4124, %v4131
        %v4154 = vunpack.c.l.s4 1983009808
        %v4155 = vunpack.c.0.s8 %v4154
        %v4156 = vlaneseq
        %v4157 = vshrl.u32 %v4156, 7
        %v4158 = vsub.s32 %v4155, %v4157
        %v4159 = vrot.slane %v4152, %v4158
        %v4160 = vcombine.low %v4148, %v4149
        %v4162 = vunpack.c.l.s4 1983009808
        %v4163 = vunpack.c.0.s8 %v4162
        %v4164 = vlaneseq
        %v4165 = vshrl.u32 %v4164, 7
        %v4166 = vsub.s32 %v4163, %v4165
        %v4167 = vrot.slane %v4160, %v4166
        %v4168 = vcombine.low %v4140, %v4147
        %v4170 = vunpack.c.l.s4 1983009808
        %v4171 = vunpack.c.0.s8 %v4170
        %v4172 = vlaneseq
        %v4173 = vshrl.u32 %v4172, 7
        %v4174 = vsub.s32 %v4171, %v4173
        %v4175 = vrot.slane %v4168, %v4174
        %v4176 = vcombine.low %v4150, %v4151
        %v4178 = vunpack.c.l.s4 1983009808
        %v4179 = vunpack.c.0.s8 %v4178
        %v4180 = vlaneseq
        %v4181 = vshrl.u32 %v4180, 7
        %v4182 = vsub.s32 %v4179, %v4181
        %v4183 = vrot.slane %v4176, %v4182
        %v4184 = vcombine.low %v4159, %v4167
        %v4185 = vcombine.high %v4159, %v4167
        %v4187 = vunpack.c.l.s4 1934713408
        %v4188 = vunpack.c.0.s8 %v4187
        %v4189 = vlaneseq
        %v4190 = vshrl.u32 %v4189, 7
        %v4191 = vsub.s32 %v4188, %v4190
        %v4192 = vrot.slane %v4184, %v4191
        %v4194 = vunpack.c.l.s4 1934713408
        %v4195 = vunpack.c.0.s8 %v4194
        %v4196 = vlaneseq
        %v4197 = vshrl.u32 %v4196, 7
        %v4198 = vsub.s32 %v4195, %v4197
        %v4199 = vrot.slane %v4185, %v4198
        %v4200 = vcombine.low %v4175, %v4183
        %v4201 = vcombine.high %v4175, %v4183
        %v4203 = vunpack.c.l.s4 1934713408
        %v4204 = vunpack.c.0.s8 %v4203
        %v4205 = vlaneseq
        %v4206 = vshrl.u32 %v4205, 7
        %v4207 = vsub.s32 %v4204, %v4206
        %v4208 = vrot.slane %v4200, %v4207
        %v4210 = vunpack.c.l.s4 1934713408
        %v4211 = vunpack.c.0.s8 %v4210
        %v4212 = vlaneseq
        %v4213 = vshrl.u32 %v4212, 7
        %v4214 = vsub.s32 %v4211, %v4213
        %v4215 = vrot.slane %v4201, %v4214
        %v4216 = vcombine.low %v4192, %v4208
        %v4217 = vcombine.high %v4192, %v4208
        %v4218 = vcombine.low %v4199, %v4215
        %v4219 = vcombine.high %v4199, %v4215
        %4221 = vrot.lane.b32.xlu0 %v4217, 8
        %v4222 = vpop.permute.xlu0 %4221
        %4225 = vrot.lane.b32.xlu0 %v4218, 16
        %v4226 = vpop.permute.xlu0 %4225
        %4229 = vrot.lane.b32.xlu0 %v4219, 24
        %v4230 = vpop.permute.xlu0 %4229
        %v4232 = vsel %vm1619, %v4216, %v4222
        %v4233 = vsel %vm2423, %v4232, %v4226
        %v4234 = vsel %vm2425, %v4233, %v4230
        %s4235 = scalar_lea.vmem [#allocation12], 32
        %v4236 = vld [vmem:[%s4235] sm:$0xff]
        %v4237 = vld [vmem:[%s4235 + $0x8] sm:$0xff]
        %v4238 = vld [vmem:[%s4235 + $0x10] sm:$0xff]
        %v4239 = vld [vmem:[%s4235 + $0x18] sm:$0xff]
        %s4240 = scalar_lea.vmem [#allocation14], 1
        %v4241 = vld [vmem:[%s4240] sm:$0x1]
        %v4243 = vlaneseq
        %v4244 = vshrl.u32 %v4243, 7
        %v4245 = vsub.s32 0, %v4244
        %v4246 = vrot.slane %v4241, %v4245
        %v4249 = vsel %vm945, %v4234, 0
        %4251 = vmatprep.subr.mxu0 0.0
        %4252 = vmatpush1.msra.mxu0 %v4236
        %4253 = vmatprep.subr.mxu0 0.0
        %4254 = vmatpush1.msra.mxu0 %v4237
        %4255 = vmatprep.subr.mxu0 0.0
        %4256 = vmatpush1.msra.mxu0 %v4238
        %4257 = vmatprep.subr.mxu0 0.0
        %4258 = vmatpush1.msra.mxu0 %v4239
        %4259 = vmatprep.subr.mxu0 0.0
        %4260 = vmatpush1.msra.mxu0 0.0
        %4261 = vmatprep.subr.mxu0 0.0
        %4262 = vmatpush1.msra.mxu0 0.0
        %4263 = vmatprep.subr.mxu0 0.0
        %4264 = vmatpush1.msra.mxu0 0.0
        %4265 = vmatprep.subr.mxu0 0.0
        %4266 = vmatpush1.msra.mxu0 0.0
        %4267 = vmatprep.subr.mxu0 0.0
        %4268 = vmatpush1.msra.mxu0 0.0
        %4269 = vmatprep.subr.mxu0 0.0
        %4270 = vmatpush1.msra.mxu0 0.0
        %4271 = vmatprep.subr.mxu0 0.0
        %4272 = vmatpush1.msra.mxu0 0.0
        %4273 = vmatprep.subr.mxu0 0.0
        %4274 = vmatpush1.msra.mxu0 0.0
        %4275 = vmatprep.subr.mxu0 0.0
        %4276 = vmatpush1.msra.mxu0 0.0
        %4277 = vmatprep.subr.mxu0 0.0
        %4278 = vmatpush1.msra.mxu0 0.0
        %4279 = vmatprep.subr.mxu0 0.0
        %4280 = vmatpush1.msra.mxu0 0.0
        %4281 = vmatprep.subr.mxu0 0.0
        %4282 = vmatpush1.msra.mxu0 0.0
        %4283 = vmatprep.subr.mxu0 0.0
        %4284 = vmatpush1.msra.mxu0 0.0
        %4285 = vmatprep.subr.mxu0 0.0
        %4286 = vmatpush1.msra.mxu0 0.0
        %4287 = vmatprep.subr.mxu0 0.0
        %4288 = vmatpush1.msra.mxu0 0.0
        %4289 = vmatprep.subr.mxu0 0.0
        %4290 = vmatpush1.msra.mxu0 0.0
        %4291 = vmatprep.subr.mxu0 0.0
        %4292 = vmatpush1.msra.mxu0 0.0
        %4293 = vmatprep.subr.mxu0 0.0
        %4294 = vmatpush1.msra.mxu0 0.0
        %4295 = vmatprep.subr.mxu0 0.0
        %4296 = vmatpush1.msra.mxu0 0.0
        %4297 = vmatprep.subr.mxu0 0.0
        %4298 = vmatpush1.msra.mxu0 0.0
        %4299 = vmatprep.subr.mxu0 0.0
        %4300 = vmatpush1.msra.mxu0 0.0
        %4301 = vmatprep.subr.mxu0 0.0
        %4302 = vmatpush1.msra.mxu0 0.0
        %4303 = vmatprep.subr.mxu0 0.0
        %4304 = vmatpush1.msra.mxu0 0.0
        %4305 = vmatprep.subr.mxu0 0.0
        %4306 = vmatpush1.msra.mxu0 0.0
        %4307 = vmatprep.subr.mxu0 0.0
        %4308 = vmatpush1.msra.mxu0 0.0
        %4309 = vmatprep.subr.mxu0 0.0
        %4310 = vmatpush1.msra.mxu0 0.0
        %4311 = vmatprep.subr.mxu0 0.0
        %4312 = vmatpush1.msra.mxu0 0.0
        %4313 = vmatprep.subr.mxu0 0.0
        %4314 = vmatpush1.msra.mxu0 0.0
        %4315 = vmatprep.mubr.f32.mxu0 0.0
        %4316 = vmatmul.mubr.f32.gmra.mrb[0].mxu0 %v4249
        %v4317 = vpop.f32.mrb[0].mxu0
        %v4318 = vadd.f32 %v4246, %v4317
        %v4319 = vpop.f32.mrb[0].mxu0
        %4320 = vdwg.mxu0
        %v4321 = vadd.f32 %v2745, %v4318
        %s4322 = scalar_lea.vmem [#allocation15], 1
        %v4323 = vld [vmem:[%s4322] sm:$0x1]
        %s4324 = scalar_lea.vmem [#allocation17], 1
        %v4325 = vld [vmem:[%s4324] sm:$0x1]
        %v4326 = vsel %vm945, %v4321, 0.0
        %4327 = vadd.xlane.f32.xlu0 %v4326
        %v4328 = vpop.xlane.xlu0 %4327
        %v4329 = vmul.f32 %v4328, %v2517
        %v4330 = vsub.f32 %v4321, %v4329
        %v4331 = vmul.f32 %v4330, %v4330
        %v4332 = vsel %vm945, %v4331, 0.0
        %4333 = vadd.xlane.f32.xlu0 %v4332
        %v4334 = vpop.xlane.xlu0 %4333
        %v4335 = vmul.f32 %v4334, %v2517
        %v4336 = vadd.f32 %v4335, 1e-05
        %v4337 = vrsqrt.pop %v4336
        %v4338 = vmul.f32 %v4330, %v4337
        %v4340 = vlaneseq
        %v4341 = vshrl.u32 %v4340, 7
        %v4342 = vsub.s32 0, %v4341
        %v4343 = vrot.slane %v4323, %v4342
        %v4345 = vmul.f32 %v4338, %v4343
        %v4347 = vlaneseq
        %v4348 = vshrl.u32 %v4347, 7
        %v4349 = vsub.s32 0, %v4348
        %v4350 = vrot.slane %v4325, %v4349
        %v4352 = vadd.f32 %v4345, %v4350
        %s4353 = scalar_lea.vmem [#allocation18], 32
        %v4354 = vld [vmem:[%s4353] sm:$0xff]
        %v4355 = vld [vmem:[%s4353 + $0x8] sm:$0xff]
        %v4356 = vld [vmem:[%s4353 + $0x10] sm:$0xff]
        %v4357 = vld [vmem:[%s4353 + $0x18] sm:$0xff]
        %s4358 = scalar_lea.vmem [#allocation20], 1
        %v4359 = vld [vmem:[%s4358] sm:$0x1]
        %v4361 = vlaneseq
        %v4362 = vshrl.u32 %v4361, 7
        %v4363 = vsub.s32 0, %v4362
        %v4364 = vrot.slane %v4359, %v4363
        %v4367 = vsel %vm945, %v4352, 0
        %4369 = vmatprep.subr.mxu0 0.0
        %4370 = vmatpush1.msra.mxu0 %v4354
        %4371 = vmatprep.subr.mxu0 0.0
        %4372 = vmatpush1.msra.mxu0 %v4355
        %4373 = vmatprep.subr.mxu0 0.0
        %4374 = vmatpush1.msra.mxu0 %v4356
        %4375 = vmatprep.subr.mxu0 0.0
        %4376 = vmatpush1.msra.mxu0 %v4357
        %4377 = vmatprep.subr.mxu0 0.0
        %4378 = vmatpush1.msra.mxu0 0.0
        %4379 = vmatprep.subr.mxu0 0.0
        %4380 = vmatpush1.msra.mxu0 0.0
        %4381 = vmatprep.subr.mxu0 0.0
        %4382 = vmatpush1.msra.mxu0 0.0
        %4383 = vmatprep.subr.mxu0 0.0
        %4384 = vmatpush1.msra.mxu0 0.0
        %4385 = vmatprep.subr.mxu0 0.0
        %4386 = vmatpush1.msra.mxu0 0.0
        %4387 = vmatprep.subr.mxu0 0.0
        %4388 = vmatpush1.msra.mxu0 0.0
        %4389 = vmatprep.subr.mxu0 0.0
        %4390 = vmatpush1.msra.mxu0 0.0
        %4391 = vmatprep.subr.mxu0 0.0
        %4392 = vmatpush1.msra.mxu0 0.0
        %4393 = vmatprep.subr.mxu0 0.0
        %4394 = vmatpush1.msra.mxu0 0.0
        %4395 = vmatprep.subr.mxu0 0.0
        %4396 = vmatpush1.msra.mxu0 0.0
        %4397 = vmatprep.subr.mxu0 0.0
        %4398 = vmatpush1.msra.mxu0 0.0
        %4399 = vmatprep.subr.mxu0 0.0
        %4400 = vmatpush1.msra.mxu0 0.0
        %4401 = vmatprep.subr.mxu0 0.0
        %4402 = vmatpush1.msra.mxu0 0.0
        %4403 = vmatprep.subr.mxu0 0.0
        %4404 = vmatpush1.msra.mxu0 0.0
        %4405 = vmatprep.subr.mxu0 0.0
        %4406 = vmatpush1.msra.mxu0 0.0
        %4407 = vmatprep.subr.mxu0 0.0
        %4408 = vmatpush1.msra.mxu0 0.0
        %4409 = vmatprep.subr.mxu0 0.0
        %4410 = vmatpush1.msra.mxu0 0.0
        %4411 = vmatprep.subr.mxu0 0.0
        %4412 = vmatpush1.msra.mxu0 0.0
        %4413 = vmatprep.subr.mxu0 0.0
        %4414 = vmatpush1.msra.mxu0 0.0
        %4415 = vmatprep.subr.mxu0 0.0
        %4416 = vmatpush1.msra.mxu0 0.0
        %4417 = vmatprep.subr.mxu0 0.0
        %4418 = vmatpush1.msra.mxu0 0.0
        %4419 = vmatprep.subr.mxu0 0.0
        %4420 = vmatpush1.msra.mxu0 0.0
        %4421 = vmatprep.subr.mxu0 0.0
        %4422 = vmatpush1.msra.mxu0 0.0
        %4423 = vmatprep.subr.mxu0 0.0
        %4424 = vmatpush1.msra.mxu0 0.0
        %4425 = vmatprep.subr.mxu0 0.0
        %4426 = vmatpush1.msra.mxu0 0.0
        %4427 = vmatprep.subr.mxu0 0.0
        %4428 = vmatpush1.msra.mxu0 0.0
        %4429 = vmatprep.subr.mxu0 0.0
        %4430 = vmatpush1.msra.mxu0 0.0
        %4431 = vmatprep.subr.mxu0 0.0
        %4432 = vmatpush1.msra.mxu0 0.0
        %4433 = vmatprep.mubr.f32.mxu0 0.0
        %4434 = vmatmul.mubr.f32.gmra.mrb[0].mxu0 %v4367
        %v4435 = vpop.f32.mrb[0].mxu0
        %v4436 = vadd.f32 %v4364, %v4435
        %v4437 = vpop.f32.mrb[0].mxu0
        %4438 = vdwg.mxu0
        %v4439 = vmax.f32 %v4436, 0.0
        %s4440 = scalar_lea.vmem %s15, 64
        %v4441 = vld [vmem:[%s4440] sm:$0xff]
        %v4442 = vld [vmem:[%s4440 + $0x8] sm:$0xff]
        %v4443 = vld [vmem:[%s4440 + $0x10] sm:$0xff]
        %v4444 = vld [vmem:[%s4440 + $0x18] sm:$0xff]
        %v4445 = vld [vmem:[%s4440 + $0x20] sm:$0xff]
        %v4446 = vld [vmem:[%s4440 + $0x28] sm:$0xff]
        %v4447 = vld [vmem:[%s4440 + $0x30] sm:$0xff]
        %v4448 = vld [vmem:[%s4440 + $0x38] sm:$0xff]
        %s4449 = scalar_lea.vmem [#allocation21], 1
        %v4450 = vld [vmem:[%s4449] sm:$0x1]
        %v4452 = vlaneseq
        %v4453 = vshrl.u32 %v4452, 7
        %v4454 = vsub.s32 0, %v4453
        %v4455 = vrot.slane %v4450, %v4454
        %v4458 = vsel %vm2642, %v4439, 0
        %4460 = vmatprep.subr.mxu0 0.0
        %4461 = vmatpush1.msra.mxu0 %v4441
        %4462 = vmatprep.subr.mxu0 0.0
        %4463 = vmatpush1.msra.mxu0 %v4442
        %4464 = vmatprep.subr.mxu0 0.0
        %4465 = vmatpush1.msra.mxu0 %v4443
        %4466 = vmatprep.subr.mxu0 0.0
        %4467 = vmatpush1.msra.mxu0 %v4444
        %4468 = vmatprep.subr.mxu0 0.0
        %4469 = vmatpush1.msra.mxu0 %v4445
        %4470 = vmatprep.subr.mxu0 0.0
        %4471 = vmatpush1.msra.mxu0 %v4446
        %4472 = vmatprep.subr.mxu0 0.0
        %4473 = vmatpush1.msra.mxu0 %v4447
        %4474 = vmatprep.subr.mxu0 0.0
        %4475 = vmatpush1.msra.mxu0 %v4448
        %4476 = vmatprep.subr.mxu0 0.0
        %4477 = vmatpush1.msra.mxu0 0.0
        %4478 = vmatprep.subr.mxu0 0.0
        %4479 = vmatpush1.msra.mxu0 0.0
        %4480 = vmatprep.subr.mxu0 0.0
        %4481 = vmatpush1.msra.mxu0 0.0
        %4482 = vmatprep.subr.mxu0 0.0
        %4483 = vmatpush1.msra.mxu0 0.0
        %4484 = vmatprep.subr.mxu0 0.0
        %4485 = vmatpush1.msra.mxu0 0.0
        %4486 = vmatprep.subr.mxu0 0.0
        %4487 = vmatpush1.msra.mxu0 0.0
        %4488 = vmatprep.subr.mxu0 0.0
        %4489 = vmatpush1.msra.mxu0 0.0
        %4490 = vmatprep.subr.mxu0 0.0
        %4491 = vmatpush1.msra.mxu0 0.0
        %4492 = vmatprep.subr.mxu0 0.0
        %4493 = vmatpush1.msra.mxu0 0.0
        %4494 = vmatprep.subr.mxu0 0.0
        %4495 = vmatpush1.msra.mxu0 0.0
        %4496 = vmatprep.subr.mxu0 0.0
        %4497 = vmatpush1.msra.mxu0 0.0
        %4498 = vmatprep.subr.mxu0 0.0
        %4499 = vmatpush1.msra.mxu0 0.0
        %4500 = vmatprep.subr.mxu0 0.0
        %4501 = vmatpush1.msra.mxu0 0.0
        %4502 = vmatprep.subr.mxu0 0.0
        %4503 = vmatpush1.msra.mxu0 0.0
        %4504 = vmatprep.subr.mxu0 0.0
        %4505 = vmatpush1.msra.mxu0 0.0
        %4506 = vmatprep.subr.mxu0 0.0
        %4507 = vmatpush1.msra.mxu0 0.0
        %4508 = vmatprep.subr.mxu0 0.0
        %4509 = vmatpush1.msra.mxu0 0.0
        %4510 = vmatprep.subr.mxu0 0.0
        %4511 = vmatpush1.msra.mxu0 0.0
        %4512 = vmatprep.subr.mxu0 0.0
        %4513 = vmatpush1.msra.mxu0 0.0
        %4514 = vmatprep.subr.mxu0 0.0
        %4515 = vmatpush1.msra.mxu0 0.0
        %4516 = vmatprep.subr.mxu0 0.0
        %4517 = vmatpush1.msra.mxu0 0.0
        %4518 = vmatprep.subr.mxu0 0.0
        %4519 = vmatpush1.msra.mxu0 0.0
        %4520 = vmatprep.subr.mxu0 0.0
        %4521 = vmatpush1.msra.mxu0 0.0
        %4522 = vmatprep.subr.mxu0 0.0
        %4523 = vmatpush1.msra.mxu0 0.0
        %4524 = vmatprep.mubr.f32.mxu0 0.0
        %4525 = vmatmul.mubr.f32.gmra.mrb[0].mxu0 %v4458
        %v4526 = vpop.f32.mrb[0].mxu0
        %v4527 = vadd.f32 %v4455, %v4526
        %v4528 = vpop.f32.mrb[0].mxu0
        %4529 = vdwg.mxu0
        %v4530 = vadd.f32 %v4352, %v4527
        %s4531 = scalar_lea.vmem [#allocation23], 1
        %v4532 = vld [vmem:[%s4531] sm:$0x1]
        %s4533 = scalar_lea.vmem %s18, 1
        %v4534 = vld [vmem:[%s4533] sm:$0x1]
        %v4535 = vsel %vm945, %v4530, 0.0
        %4536 = vadd.xlane.f32.xlu0 %v4535
        %v4537 = vpop.xlane.xlu0 %4536
        %v4538 = vmul.f32 %v4537, %v2517
        %v4539 = vsub.f32 %v4530, %v4538
        %v4540 = vmul.f32 %v4539, %v4539
        %v4541 = vsel %vm945, %v4540, 0.0
        %4542 = vadd.xlane.f32.xlu0 %v4541
        %v4543 = vpop.xlane.xlu0 %4542
        %v4544 = vmul.f32 %v4543, %v2517
        %v4545 = vadd.f32 %v4544, 1e-05
        %v4546 = vrsqrt.pop %v4545
        %v4547 = vmul.f32 %v4539, %v4546
        %v4549 = vlaneseq
        %v4550 = vshrl.u32 %v4549, 7
        %v4551 = vsub.s32 0, %v4550
        %v4552 = vrot.slane %v4532, %v4551
        %v4554 = vmul.f32 %v4547, %v4552
        %v4556 = vlaneseq
        %v4557 = vshrl.u32 %v4556, 7
        %v4558 = vsub.s32 0, %v4557
        %v4559 = vrot.slane %v4534, %v4558
        %v4561 = vadd.f32 %v4554, %v4559
        %v4562 = vld [vmem:[%s19] sm:$0xff]
        %v4563 = vld [vmem:[%s19 + $0x8] sm:$0xff]
        %v4564 = vld [vmem:[%s19 + $0x10] sm:$0xff]
        %v4565 = vld [vmem:[%s19 + $0x18] sm:$0xff]
        %v4566 = vld [vmem:[%s20] sm:$0x1]
        %v4568 = vsel %vm945, %v4561, 0
        %4570 = vmatprep.subr.mxu0 0.0
        %4571 = vmatpush1.msra.mxu0 %v4562
        %4572 = vmatprep.subr.mxu0 0.0
        %4573 = vmatpush1.msra.mxu0 %v4563
        %4574 = vmatprep.subr.mxu0 0.0
        %4575 = vmatpush1.msra.mxu0 %v4564
        %4576 = vmatprep.subr.mxu0 0.0
        %4577 = vmatpush1.msra.mxu0 %v4565
        %4578 = vmatprep.subr.mxu0 0.0
        %4579 = vmatpush1.msra.mxu0 0.0
        %4580 = vmatprep.subr.mxu0 0.0
        %4581 = vmatpush1.msra.mxu0 0.0
        %4582 = vmatprep.subr.mxu0 0.0
        %4583 = vmatpush1.msra.mxu0 0.0
        %4584 = vmatprep.subr.mxu0 0.0
        %4585 = vmatpush1.msra.mxu0 0.0
        %4586 = vmatprep.subr.mxu0 0.0
        %4587 = vmatpush1.msra.mxu0 0.0
        %4588 = vmatprep.subr.mxu0 0.0
        %4589 = vmatpush1.msra.mxu0 0.0
        %4590 = vmatprep.subr.mxu0 0.0
        %4591 = vmatpush1.msra.mxu0 0.0
        %4592 = vmatprep.subr.mxu0 0.0
        %4593 = vmatpush1.msra.mxu0 0.0
        %4594 = vmatprep.subr.mxu0 0.0
        %4595 = vmatpush1.msra.mxu0 0.0
        %4596 = vmatprep.subr.mxu0 0.0
        %4597 = vmatpush1.msra.mxu0 0.0
        %4598 = vmatprep.subr.mxu0 0.0
        %4599 = vmatpush1.msra.mxu0 0.0
        %4600 = vmatprep.subr.mxu0 0.0
        %4601 = vmatpush1.msra.mxu0 0.0
        %4602 = vmatprep.subr.mxu0 0.0
        %4603 = vmatpush1.msra.mxu0 0.0
        %4604 = vmatprep.subr.mxu0 0.0
        %4605 = vmatpush1.msra.mxu0 0.0
        %4606 = vmatprep.subr.mxu0 0.0
        %4607 = vmatpush1.msra.mxu0 0.0
        %4608 = vmatprep.subr.mxu0 0.0
        %4609 = vmatpush1.msra.mxu0 0.0
        %4610 = vmatprep.subr.mxu0 0.0
        %4611 = vmatpush1.msra.mxu0 0.0
        %4612 = vmatprep.subr.mxu0 0.0
        %4613 = vmatpush1.msra.mxu0 0.0
        %4614 = vmatprep.subr.mxu0 0.0
        %4615 = vmatpush1.msra.mxu0 0.0
        %4616 = vmatprep.subr.mxu0 0.0
        %4617 = vmatpush1.msra.mxu0 0.0
        %4618 = vmatprep.subr.mxu0 0.0
        %4619 = vmatpush1.msra.mxu0 0.0
        %4620 = vmatprep.subr.mxu0 0.0
        %4621 = vmatpush1.msra.mxu0 0.0
        %4622 = vmatprep.subr.mxu0 0.0
        %4623 = vmatpush1.msra.mxu0 0.0
        %4624 = vmatprep.subr.mxu0 0.0
        %4625 = vmatpush1.msra.mxu0 0.0
        %4626 = vmatprep.subr.mxu0 0.0
        %4627 = vmatpush1.msra.mxu0 0.0
        %4628 = vmatprep.subr.mxu0 0.0
        %4629 = vmatpush1.msra.mxu0 0.0
        %4630 = vmatprep.subr.mxu0 0.0
        %4631 = vmatpush1.msra.mxu0 0.0
        %4632 = vmatprep.subr.mxu0 0.0
        %4633 = vmatpush1.msra.mxu0 0.0
        %4634 = vmatprep.mubr.f32.mxu0 0.0
        %4635 = vmatmul.mubr.f32.gmra.mrb[0].mxu0 %v4568
        %v4636 = vpop.f32.mrb[0].mxu0
        %v4637 = vadd.f32 %v4566, %v4636
        %v4638 = vpop.f32.mrb[0].mxu0
        %4639 = vdwg.mxu0
        %v4640 = vtanh.pop %v4637
        %v4641 = vld [vmem:[%s21] sm:$0xff]
        %v4642 = vld [vmem:[%s21 + $0x8] sm:$0xff]
        %v4643 = vld [vmem:[%s21 + $0x10] sm:$0xff]
        %v4644 = vld [vmem:[%s21 + $0x18] sm:$0xff]
        %v4645 = vld [vmem:[%s22] sm:$0x1]
        %v4647 = vsel %vm945, %v4640, 0
        %4649 = vmatprep.subr.mxu0 0.0
        %4650 = vmatpush1.msra.mxu0 %v4641
        %4651 = vmatprep.subr.mxu0 0.0
        %4652 = vmatpush1.msra.mxu0 %v4642
        %4653 = vmatprep.subr.mxu0 0.0
        %4654 = vmatpush1.msra.mxu0 %v4643
        %4655 = vmatprep.subr.mxu0 0.0
        %4656 = vmatpush1.msra.mxu0 %v4644
        %4657 = vmatprep.subr.mxu0 0.0
        %4658 = vmatpush1.msra.mxu0 0.0
        %4659 = vmatprep.subr.mxu0 0.0
        %4660 = vmatpush1.msra.mxu0 0.0
        %4661 = vmatprep.subr.mxu0 0.0
        %4662 = vmatpush1.msra.mxu0 0.0
        %4663 = vmatprep.subr.mxu0 0.0
        %4664 = vmatpush1.msra.mxu0 0.0
        %4665 = vmatprep.subr.mxu0 0.0
        %4666 = vmatpush1.msra.mxu0 0.0
        %4667 = vmatprep.subr.mxu0 0.0
        %4668 = vmatpush1.msra.mxu0 0.0
        %4669 = vmatprep.subr.mxu0 0.0
        %4670 = vmatpush1.msra.mxu0 0.0
        %4671 = vmatprep.subr.mxu0 0.0
        %4672 = vmatpush1.msra.mxu0 0.0
        %4673 = vmatprep.subr.mxu0 0.0
        %4674 = vmatpush1.msra.mxu0 0.0
        %4675 = vmatprep.subr.mxu0 0.0
        %4676 = vmatpush1.msra.mxu0 0.0
        %4677 = vmatprep.subr.mxu0 0.0
        %4678 = vmatpush1.msra.mxu0 0.0
        %4679 = vmatprep.subr.mxu0 0.0
        %4680 = vmatpush1.msra.mxu0 0.0
        %4681 = vmatprep.subr.mxu0 0.0
        %4682 = vmatpush1.msra.mxu0 0.0
        %4683 = vmatprep.subr.mxu0 0.0
        %4684 = vmatpush1.msra.mxu0 0.0
        %4685 = vmatprep.subr.mxu0 0.0
        %4686 = vmatpush1.msra.mxu0 0.0
        %4687 = vmatprep.subr.mxu0 0.0
        %4688 = vmatpush1.msra.mxu0 0.0
        %4689 = vmatprep.subr.mxu0 0.0
        %4690 = vmatpush1.msra.mxu0 0.0
        %4691 = vmatprep.subr.mxu0 0.0
        %4692 = vmatpush1.msra.mxu0 0.0
        %4693 = vmatprep.subr.mxu0 0.0
        %4694 = vmatpush1.msra.mxu0 0.0
        %4695 = vmatprep.subr.mxu0 0.0
        %4696 = vmatpush1.msra.mxu0 0.0
        %4697 = vmatprep.subr.mxu0 0.0
        %4698 = vmatpush1.msra.mxu0 0.0
        %4699 = vmatprep.subr.mxu0 0.0
        %4700 = vmatpush1.msra.mxu0 0.0
        %4701 = vmatprep.subr.mxu0 0.0
        %4702 = vmatpush1.msra.mxu0 0.0
        %4703 = vmatprep.subr.mxu0 0.0
        %4704 = vmatpush1.msra.mxu0 0.0
        %4705 = vmatprep.subr.mxu0 0.0
        %4706 = vmatpush1.msra.mxu0 0.0
        %4707 = vmatprep.subr.mxu0 0.0
        %4708 = vmatpush1.msra.mxu0 0.0
        %4709 = vmatprep.subr.mxu0 0.0
        %4710 = vmatpush1.msra.mxu0 0.0
        %4711 = vmatprep.subr.mxu0 0.0
        %4712 = vmatpush1.msra.mxu0 0.0
        %4713 = vmatprep.mubr.f32.mxu0 0.0
        %4714 = vmatmul.mubr.f32.gmra.mrb[0].mxu0 %v4647
        %v4715 = vpop.f32.mrb[0].mxu0
        %v4716 = vadd.f32 %v4645, %v4715
        %v4717 = vpop.f32.mrb[0].mxu0
        %4718 = vdwg.mxu0
        %vm4719 = vcmask 122880
        %4720 = vst.msk [vmem:[%s927] sm:$0x1] %vm4719, %v4716
        %s4721 = sand.u32 %s547, 1
        %s4722 = scalar_lea.sflag [#allocation4], %s4721
        %s4723 = sand.u32 %s547, 1
        %s4724 = scalar_lea.vmem [#allocation24], %s4723
        // Predicated region
        $region169: #{tpu_custom_call.1} parent=111 // pred_check
          %p4725 = pneg %p557
        $region170: #{tpu_custom_call.1} parent=111 // pred_check_branch
          %4727 = sbr.rel (%p4725) target = $region172
        $region171: #{tpu_custom_call.1} parent=111 // pred_region
          %s4729 = ssub.s32 16, 16
          %4730 = vsyncadd %s4722, %s4729
          %s4731 = smul.addr %s46, 16
          %s4732 = scalar_lea.hbm %s23, %s4731
          %s4734 = sshll.u32 %s4724, 4
          %s4735 = int_to_ptr.vmem [resolvable:$true] %s4734
          %4737 = dma.vmem_to_hbm [thread:$0]  %s4735, 16, %s4732, %s4722
        $region172: #{tpu_custom_call.1} parent=111 // pred_fallthru
          _
      $region112: #{tpu_custom_call.1} parent=5 // pred_fallthru
        _
      %p4738 = scmp.le.s32.totalorder 2, %s41
      // Predicated region
      $region173: #{tpu_custom_call.1} parent=5 // pred_check
        %p4739 = pneg %p4738
      $region174: #{tpu_custom_call.1} parent=5 // pred_check_branch
        %4741 = sbr.rel (%p4739) target = $region176
      $region175: #{tpu_custom_call.1} parent=5 // pred_region
        %s4742 = ssub.s32 %s41, 2
        // Predicated region
        $region177: #{tpu_custom_call.1} parent=175 // pred_check
          %p4743 = pneg %p563
        $region178: #{tpu_custom_call.1} parent=175 // pred_check_branch
          %4745 = sbr.rel (%p4743) target = $region180
        $region179: #{tpu_custom_call.1} parent=175 // pred_region
          %s4746 = sand.u32 %s548, 1
          %s4747 = scalar_lea.sflag [#allocation4], %s4746
          %s4748 = sand.u32 %s548, 1
          %s4749 = scalar_lea.vmem [#allocation24], %s4748
          %4750 = dma.done %s4747, 16
        $region180: #{tpu_custom_call.1} parent=175 // pred_fallthru
          _
      $region176: #{tpu_custom_call.1} parent=5 // pred_fallthru
        _
    $region6: #{tpu_custom_call.1} parent=1 // loop_footer
      %s45 = sadd.s32 1, %s41
    $region7: #{tpu_custom_call.1} parent=1 // loop_footer_branch
      %40 = sbr.rel target = $region3
    $region8: #{tpu_custom_call.1} parent=1 // loop_exit
      _
    %4751 = vsyncpa [#allocation3], 1
    %s4752 = scalar_lea.sflag [#allocation3], 1
    %4753 = vsyncpa %s4752, 1
    %4754 = vsyncpa [#allocation6], 1
    %4755 = vsyncpa [#allocation10], 1
    %4756 = vsyncpa [#allocation13], 1
    %4757 = vsyncpa [#allocation16], 1
    %4758 = vsyncpa [#allocation19], 1
    %4759 = vsyncpa [#allocation22], 1
    %4760 = vsyncpa [#allocation4], 1
    %s4761 = scalar_lea.sflag [#allocation4], 1
    %4762 = vsyncpa %s4761, 1

</llo_original>
